<compile_context>
chip_gen: v5e
topology: v5e:2x2
jax: 0.10.0
libtpu: 0.0.40
codegen_flags: <defaults>
</compile_context>

<pallas_src>
import jax
import jax.numpy as jnp
from jax import lax
from jax.experimental import pallas as pl
from jax.experimental.pallas import tpu as pltpu

HIDDEN = 128          # num_hidden_dims (config default)
VOCAB = 32            # text_vocab_size (small synthetic)
SEQ = 8               # input sequence length
NUM_CLASSES = 16      # bitvector_encoder_dims (small synthetic)
NUM_SEQS = 16         # sequences classified per call in the demo
TILE_B = 8            # sequences per grid step (sublane-aligned)
CLASS_PAD = 128       # lane-dense padded classifier width


def tgen_classifier_kernel(ids_ref, gtab_ref, whh_ref, wc_ref, bc_ref,
                           out_ref, gx_ref):
    """One tile of TILE_B sequences.

    ids_ref : (N_pad, SEQ) int32, SMEM (scalar-prefetched, full array)
    gtab_ref: (VOCAB, 4H) f32  -- precomputed emb @ W_ih^T + bias, gates [i|f|o|g]
    whh_ref : (H, 4H) f32      -- W_hh^T, gates [i|f|o|g]
    wc_ref  : (H, C_PAD) f32   -- classifier weight, zero-padded to lane width
    bc_ref  : (1, C_PAD) f32
    out_ref : (TILE_B, C_PAD) f32
    gx_ref  : (SEQ, TILE_B, 4H) f32 VMEM scratch (per-timestep input gates)
    """
    seq, tile_b, _ = gx_ref.shape
    H = whh_ref.shape[0]
    base = pl.program_id(0) * tile_b

    # Gather the precomputed per-token gate rows for this tile into VMEM.
    for t in range(seq):
        for b in range(tile_b):
            tok = ids_ref[base + b, t]                           # scalar from SMEM
            gx_ref[t, pl.ds(b, 1), :] = gtab_ref[pl.ds(tok, 1), :]

    # Recurrence: h/c carried in registers; only h @ W_hh is on the serial path.
    h = jnp.zeros((tile_b, H), jnp.float32)
    c = jnp.zeros((tile_b, H), jnp.float32)
    for t in range(seq):                                         # fully unrolled (SEQ static)
        g = gx_ref[t] + jnp.dot(h, whh_ref[...],
                                preferred_element_type=jnp.float32)
        ifo = jax.nn.sigmoid(g[:, :3 * H])                       # one sigmoid for i, f, o
        g_g = jnp.tanh(g[:, 3 * H:])                             # cell gate
        i_g = ifo[:, 0 * H:1 * H]
        f_g = ifo[:, 1 * H:2 * H]
        o_g = ifo[:, 2 * H:3 * H]
        c = f_g * c + i_g * g_g
        h = o_g * jnp.tanh(c)

    # classif_linear on the last hidden state (lane-dense padded), then sigmoid.
    logits = jnp.dot(h, wc_ref[...], preferred_element_type=jnp.float32) + bc_ref[...]
    out_ref[...] = jax.nn.sigmoid(logits)


def _repack_gates(w_or_b, H):
    """Reorder PyTorch LSTM gate packing [i, f, g, o] -> [i, f, o, g] (leading 4H axis)."""
    i = w_or_b[0 * H:1 * H]
    f = w_or_b[1 * H:2 * H]
    g = w_or_b[2 * H:3 * H]
    o = w_or_b[3 * H:4 * H]
    return jnp.concatenate([i, f, o, g], axis=0)


def prepare_tgen_params(emb, w_ih, w_hh, b_ih, b_hh, w_c, b_c, class_pad=CLASS_PAD):
    """One-time parameter layout prep (hoisted out of the per-call path)."""
    H = emb.shape[1]
    num_classes = w_c.shape[0]
    c_pad = max(class_pad, ((num_classes + 127) // 128) * 128)

    wih_r = _repack_gates(w_ih.astype(jnp.float32), H)                 # (4H, H), [i|f|o|g]
    bias_r = _repack_gates((b_ih + b_hh).astype(jnp.float32), H)       # (4H,)
    # Fold embedding lookup + input projection + bias into one table (exact, linear).
    gate_table = emb.astype(jnp.float32) @ wih_r.T + bias_r            # (V, 4H)
    w_hh_t = _repack_gates(w_hh.astype(jnp.float32), H).T              # (H, 4H)

    w_c_pad = jnp.zeros((H, c_pad), jnp.float32).at[:, :num_classes].set(
        w_c.T.astype(jnp.float32))
    b_c_pad = jnp.zeros((1, c_pad), jnp.float32).at[0, :num_classes].set(
        b_c.astype(jnp.float32))

    return {
        "gate_table": gate_table,
        "w_hh_t": w_hh_t,
        "w_c_pad": w_c_pad,
        "b_c_pad": b_c_pad,
        "num_classes": num_classes,
        "hidden": H,
    }


def tgen_sem_classifier_forward_batch(ids_batch, params, *, tile_b=TILE_B):
    """Classify a batch of sequences: (N, SEQ) int -> (N, NUM_CLASSES) f32."""
    gtab = params["gate_table"]
    whh = params["w_hh_t"]
    wc = params["w_c_pad"]
    bc = params["b_c_pad"]
    num_classes = params["num_classes"]
    vocab, four_h = gtab.shape
    H = whh.shape[0]
    c_pad = wc.shape[1]

    n, seq = ids_batch.shape
    n_pad = ((n + tile_b - 1) // tile_b) * tile_b
    ids = jnp.clip(ids_batch.astype(jnp.int32), 0, vocab - 1)           # bounds safety
    if n_pad != n:
        ids = jnp.concatenate([ids, jnp.zeros((n_pad - n, seq), jnp.int32)], axis=0)

    out = pl.pallas_call(
        tgen_classifier_kernel,
        out_shape=jax.ShapeDtypeStruct((n_pad, c_pad), jnp.float32),
        grid_spec=pltpu.PrefetchScalarGridSpec(
            num_scalar_prefetch=1,                       # token ids -> SMEM
            grid=(n_pad // tile_b,),
            in_specs=[
                pl.BlockSpec((vocab, four_h), lambda b, ids: (0, 0)),   # gate table (resident)
                pl.BlockSpec((H, four_h), lambda b, ids: (0, 0)),       # W_hh^T   (resident)
                pl.BlockSpec((H, c_pad), lambda b, ids: (0, 0)),        # W_c^T pad (resident)
                pl.BlockSpec((1, c_pad), lambda b, ids: (0, 0)),        # b_c pad   (resident)
            ],
            out_specs=pl.BlockSpec((tile_b, c_pad), lambda b, ids: (b, 0)),
            scratch_shapes=[pltpu.VMEM((seq, tile_b, four_h), jnp.float32)],
        ),
        compiler_params=pltpu.CompilerParams(
            dimension_semantics=("parallel",)),          # shards tiles across v7x's 2 TCs
    )(ids, gtab, whh, wc, bc)

    return out[:n, :num_classes]


def tgen_sem_classifier_forward(input_text_ints, params):
    """Single-sequence forward matching the PyTorch module: (SEQ,) -> (NUM_CLASSES,)."""
    return tgen_sem_classifier_forward_batch(input_text_ints[None, :], params)[0]


def _reference_forward(ids, emb, w_ih, w_hh, b_ih, b_hh, w_c, b_c):
    """Pure-JAX reference of the same forward pass (PyTorch gate order [i,f,g,o])."""
    H = emb.shape[1]
    x_seq = emb[ids]                                      # (seq, H)

    def step(carry, x):
        h, c = carry
        gates = x @ w_ih.T + b_ih + h @ w_hh.T + b_hh
        i_g = jax.nn.sigmoid(gates[0 * H:1 * H])
        f_g = jax.nn.sigmoid(gates[1 * H:2 * H])
        g_g = jnp.tanh(gates[2 * H:3 * H])
        o_g = jax.nn.sigmoid(gates[3 * H:4 * H])
        c = f_g * c + i_g * g_g
        h = o_g * jnp.tanh(c)
        return (h, c), h

    (h_last, _), _ = lax.scan(step, (jnp.zeros(H), jnp.zeros(H)), x_seq)
    return jax.nn.sigmoid(h_last @ w_c.T + b_c)


if __name__ == "__main__":
    key = jax.random.PRNGKey(0)
    k_ids, k_emb, k_wih, k_whh, k_bih, k_bhh, k_wc, k_bc = jax.random.split(key, 8)

    scale = 1.0 / jnp.sqrt(HIDDEN)
    ids_batch = jax.random.randint(k_ids, (NUM_SEQS, SEQ), 0, VOCAB, dtype=jnp.int32)
    emb = jax.random.normal(k_emb, (VOCAB, HIDDEN), jnp.float32)
    w_ih = jax.random.uniform(k_wih, (4 * HIDDEN, HIDDEN), jnp.float32, -scale, scale)
    w_hh = jax.random.uniform(k_whh, (4 * HIDDEN, HIDDEN), jnp.float32, -scale, scale)
    b_ih = jax.random.uniform(k_bih, (4 * HIDDEN,), jnp.float32, -scale, scale)
    b_hh = jax.random.uniform(k_bhh, (4 * HIDDEN,), jnp.float32, -scale, scale)
    w_c = jax.random.uniform(k_wc, (NUM_CLASSES, HIDDEN), jnp.float32, -scale, scale)
    b_c = jax.random.uniform(k_bc, (NUM_CLASSES,), jnp.float32, -scale, scale)

    # One-time parameter prep (hoisted out of the forward path).
    params = prepare_tgen_params(emb, w_ih, w_hh, b_ih, b_hh, w_c, b_c)
    params = jax.tree_util.tree_map(
        lambda x: jax.block_until_ready(x) if isinstance(x, jax.Array) else x, params)

    # Batched forward over NUM_SEQS sequences.
    out_batch = tgen_sem_classifier_forward_batch(ids_batch, params)
    out_batch = jax.block_until_ready(out_batch)
    assert out_batch.shape == (NUM_SEQS, NUM_CLASSES)

    ref_batch = jax.vmap(
        lambda ids: _reference_forward(ids, emb, w_ih, w_hh, b_ih, b_hh, w_c, b_c)
    )(ids_batch)
    max_err = float(jnp.max(jnp.abs(out_batch - ref_batch)))
    assert jnp.allclose(out_batch, ref_batch, rtol=1e-3, atol=1e-3), max_err

    # Single-sequence forward (module semantics: (SEQ,) -> (NUM_CLASSES,)).
    out_single = tgen_sem_classifier_forward(ids_batch[0], params)
    out_single = jax.block_until_ready(out_single)
    assert out_single.shape == (NUM_CLASSES,)
    assert jnp.allclose(out_single, ref_batch[0], rtol=1e-3, atol=1e-3)

    print("KERNEL_OK")
</pallas_src>

<mosaic_0001>
module attributes {stable_mosaic.version = 11 : i64} {
  func.func @tgen_classifier_kernel(%arg0: i32, %arg1: memref<16x8xi32, #tpu.memory_space<smem>>, %arg2: memref<32x512xf32, #tpu.memory_space<vmem>>, %arg3: memref<128x512xf32, #tpu.memory_space<vmem>>, %arg4: memref<128x128xf32, #tpu.memory_space<vmem>>, %arg5: memref<1x128xf32, #tpu.memory_space<vmem>>, %arg6: memref<8x128xf32, #tpu.memory_space<vmem>>, %arg7: memref<8x8x512xf32, #tpu.memory_space<vmem>>) attributes {dimension_semantics = [#tpu.dimension_semantics<parallel>], iteration_bounds = array<i64: 2>, scalar_prefetch = 1 : i64, scratch_operands = 1 : i64, tpu.core_type = #tpu.core_type<tc>, window_params = [{pipeline_mode = #tpu.pipeline_mode<synchronous>, transform_indices = @transform_0, window_bounds = array<i64: 32, 512>}, {pipeline_mode = #tpu.pipeline_mode<synchronous>, transform_indices = @transform_1, window_bounds = array<i64: 128, 512>}, {pipeline_mode = #tpu.pipeline_mode<synchronous>, transform_indices = @transform_2, window_bounds = array<i64: 128, 128>}, {pipeline_mode = #tpu.pipeline_mode<synchronous>, transform_indices = @transform_3, window_bounds = array<i64: 1, 128>}, {transform_indices = @transform_4, window_bounds = array<i64: 8, 128>}]} {
    %c8_i32 = arith.constant 8 : i32
    %0 = arith.muli %arg0, %c8_i32 : i32
    %c0_i32 = arith.constant 0 : i32
    %1 = arith.addi %0, %c0_i32 : i32
    %2 = arith.index_cast %1 : i32 to index
    %c0 = arith.constant 0 : index
    %3 = memref.load %arg1[%2, %c0] : memref<16x8xi32, #tpu.memory_space<smem>>
    %4 = arith.index_cast %3 : i32 to index
    %c0_0 = arith.constant 0 : index
    %5 = vector.load %arg2[%4, %c0_0] : memref<32x512xf32, #tpu.memory_space<vmem>>, vector<1x512xf32>
    %c0_1 = arith.constant 0 : index
    %c0_2 = arith.constant 0 : index
    %c0_3 = arith.constant 0 : index
    %6 = vector.load %arg7[%c0_1, %c0_2, %c0_3] : memref<8x8x512xf32, #tpu.memory_space<vmem>>, vector<1x1x512xf32>
    %7 = vector.shape_cast %6 : vector<1x1x512xf32> to vector<1x512xf32>
    %8 = vector.shape_cast %5 : vector<1x512xf32> to vector<1x1x512xf32>
    tpu.vector_store %arg7[%c0_1, %c0_2, %c0_3], %8 {strides = array<i32>} : memref<8x8x512xf32, #tpu.memory_space<vmem>>, vector<1x1x512xf32>,
    %c1_i32 = arith.constant 1 : i32
    %9 = arith.addi %0, %c1_i32 : i32
    %10 = arith.index_cast %9 : i32 to index
    %c0_4 = arith.constant 0 : index
    %11 = memref.load %arg1[%10, %c0_4] : memref<16x8xi32, #tpu.memory_space<smem>>
    %12 = arith.index_cast %11 : i32 to index
    %c0_5 = arith.constant 0 : index
    %13 = vector.load %arg2[%12, %c0_5] : memref<32x512xf32, #tpu.memory_space<vmem>>, vector<1x512xf32>
    %c0_6 = arith.constant 0 : index
    %c1 = arith.constant 1 : index
    %c0_7 = arith.constant 0 : index
    %14 = vector.load %arg7[%c0_6, %c1, %c0_7] : memref<8x8x512xf32, #tpu.memory_space<vmem>>, vector<1x1x512xf32>
    %15 = vector.shape_cast %14 : vector<1x1x512xf32> to vector<1x512xf32>
    %16 = vector.shape_cast %13 : vector<1x512xf32> to vector<1x1x512xf32>
    tpu.vector_store %arg7[%c0_6, %c1, %c0_7], %16 {strides = array<i32>} : memref<8x8x512xf32, #tpu.memory_space<vmem>>, vector<1x1x512xf32>,
    %c2_i32 = arith.constant 2 : i32
    %17 = arith.addi %0, %c2_i32 : i32
    %18 = arith.index_cast %17 : i32 to index
    %c0_8 = arith.constant 0 : index
    %19 = memref.load %arg1[%18, %c0_8] : memref<16x8xi32, #tpu.memory_space<smem>>
    %20 = arith.index_cast %19 : i32 to index
    %c0_9 = arith.constant 0 : index
    %21 = vector.load %arg2[%20, %c0_9] : memref<32x512xf32, #tpu.memory_space<vmem>>, vector<1x512xf32>
    %c0_10 = arith.constant 0 : index
    %c2 = arith.constant 2 : index
    %c0_11 = arith.constant 0 : index
    %22 = vector.load %arg7[%c0_10, %c2, %c0_11] : memref<8x8x512xf32, #tpu.memory_space<vmem>>, vector<1x1x512xf32>
    %23 = vector.shape_cast %22 : vector<1x1x512xf32> to vector<1x512xf32>
    %24 = vector.shape_cast %21 : vector<1x512xf32> to vector<1x1x512xf32>
    tpu.vector_store %arg7[%c0_10, %c2, %c0_11], %24 {strides = array<i32>} : memref<8x8x512xf32, #tpu.memory_space<vmem>>, vector<1x1x512xf32>,
    %c3_i32 = arith.constant 3 : i32
    %25 = arith.addi %0, %c3_i32 : i32
    %26 = arith.index_cast %25 : i32 to index
    %c0_12 = arith.constant 0 : index
    %27 = memref.load %arg1[%26, %c0_12] : memref<16x8xi32, #tpu.memory_space<smem>>
    %28 = arith.index_cast %27 : i32 to index
    %c0_13 = arith.constant 0 : index
    %29 = vector.load %arg2[%28, %c0_13] : memref<32x512xf32, #tpu.memory_space<vmem>>, vector<1x512xf32>
    %c0_14 = arith.constant 0 : index
    %c3 = arith.constant 3 : index
    %c0_15 = arith.constant 0 : index
    %30 = vector.load %arg7[%c0_14, %c3, %c0_15] : memref<8x8x512xf32, #tpu.memory_space<vmem>>, vector<1x1x512xf32>
    %31 = vector.shape_cast %30 : vector<1x1x512xf32> to vector<1x512xf32>
    %32 = vector.shape_cast %29 : vector<1x512xf32> to vector<1x1x512xf32>
    tpu.vector_store %arg7[%c0_14, %c3, %c0_15], %32 {strides = array<i32>} : memref<8x8x512xf32, #tpu.memory_space<vmem>>, vector<1x1x512xf32>,
    %c4_i32 = arith.constant 4 : i32
    %33 = arith.addi %0, %c4_i32 : i32
    %34 = arith.index_cast %33 : i32 to index
    %c0_16 = arith.constant 0 : index
    %35 = memref.load %arg1[%34, %c0_16] : memref<16x8xi32, #tpu.memory_space<smem>>
    %36 = arith.index_cast %35 : i32 to index
    %c0_17 = arith.constant 0 : index
    %37 = vector.load %arg2[%36, %c0_17] : memref<32x512xf32, #tpu.memory_space<vmem>>, vector<1x512xf32>
    %c0_18 = arith.constant 0 : index
    %c4 = arith.constant 4 : index
    %c0_19 = arith.constant 0 : index
    %38 = vector.load %arg7[%c0_18, %c4, %c0_19] : memref<8x8x512xf32, #tpu.memory_space<vmem>>, vector<1x1x512xf32>
    %39 = vector.shape_cast %38 : vector<1x1x512xf32> to vector<1x512xf32>
    %40 = vector.shape_cast %37 : vector<1x512xf32> to vector<1x1x512xf32>
    tpu.vector_store %arg7[%c0_18, %c4, %c0_19], %40 {strides = array<i32>} : memref<8x8x512xf32, #tpu.memory_space<vmem>>, vector<1x1x512xf32>,
    %c5_i32 = arith.constant 5 : i32
    %41 = arith.addi %0, %c5_i32 : i32
    %42 = arith.index_cast %41 : i32 to index
    %c0_20 = arith.constant 0 : index
    %43 = memref.load %arg1[%42, %c0_20] : memref<16x8xi32, #tpu.memory_space<smem>>
    %44 = arith.index_cast %43 : i32 to index
    %c0_21 = arith.constant 0 : index
    %45 = vector.load %arg2[%44, %c0_21] : memref<32x512xf32, #tpu.memory_space<vmem>>, vector<1x512xf32>
    %c0_22 = arith.constant 0 : index
    %c5 = arith.constant 5 : index
    %c0_23 = arith.constant 0 : index
    %46 = vector.load %arg7[%c0_22, %c5, %c0_23] : memref<8x8x512xf32, #tpu.memory_space<vmem>>, vector<1x1x512xf32>
    %47 = vector.shape_cast %46 : vector<1x1x512xf32> to vector<1x512xf32>
    %48 = vector.shape_cast %45 : vector<1x512xf32> to vector<1x1x512xf32>
    tpu.vector_store %arg7[%c0_22, %c5, %c0_23], %48 {strides = array<i32>} : memref<8x8x512xf32, #tpu.memory_space<vmem>>, vector<1x1x512xf32>,
    %c6_i32 = arith.constant 6 : i32
    %49 = arith.addi %0, %c6_i32 : i32
    %50 = arith.index_cast %49 : i32 to index
    %c0_24 = arith.constant 0 : index
    %51 = memref.load %arg1[%50, %c0_24] : memref<16x8xi32, #tpu.memory_space<smem>>
    %52 = arith.index_cast %51 : i32 to index
    %c0_25 = arith.constant 0 : index
    %53 = vector.load %arg2[%52, %c0_25] : memref<32x512xf32, #tpu.memory_space<vmem>>, vector<1x512xf32>
    %c0_26 = arith.constant 0 : index
    %c6 = arith.constant 6 : index
    %c0_27 = arith.constant 0 : index
    %54 = vector.load %arg7[%c0_26, %c6, %c0_27] : memref<8x8x512xf32, #tpu.memory_space<vmem>>, vector<1x1x512xf32>
    %55 = vector.shape_cast %54 : vector<1x1x512xf32> to vector<1x512xf32>
    %56 = vector.shape_cast %53 : vector<1x512xf32> to vector<1x1x512xf32>
    tpu.vector_store %arg7[%c0_26, %c6, %c0_27], %56 {strides = array<i32>} : memref<8x8x512xf32, #tpu.memory_space<vmem>>, vector<1x1x512xf32>,
    %c7_i32 = arith.constant 7 : i32
    %57 = arith.addi %0, %c7_i32 : i32
    %58 = arith.index_cast %57 : i32 to index
    %c0_28 = arith.constant 0 : index
    %59 = memref.load %arg1[%58, %c0_28] : memref<16x8xi32, #tpu.memory_space<smem>>
    %60 = arith.index_cast %59 : i32 to index
    %c0_29 = arith.constant 0 : index
    %61 = vector.load %arg2[%60, %c0_29] : memref<32x512xf32, #tpu.memory_space<vmem>>, vector<1x512xf32>
    %c0_30 = arith.constant 0 : index
    %c7 = arith.constant 7 : index
    %c0_31 = arith.constant 0 : index
    %62 = vector.load %arg7[%c0_30, %c7, %c0_31] : memref<8x8x512xf32, #tpu.memory_space<vmem>>, vector<1x1x512xf32>
    %63 = vector.shape_cast %62 : vector<1x1x512xf32> to vector<1x512xf32>
    %64 = vector.shape_cast %61 : vector<1x512xf32> to vector<1x1x512xf32>
    tpu.vector_store %arg7[%c0_30, %c7, %c0_31], %64 {strides = array<i32>} : memref<8x8x512xf32, #tpu.memory_space<vmem>>, vector<1x1x512xf32>,
    %c0_i32_32 = arith.constant 0 : i32
    %65 = arith.addi %0, %c0_i32_32 : i32
    %66 = arith.index_cast %65 : i32 to index
    %c1_33 = arith.constant 1 : index
    %67 = memref.load %arg1[%66, %c1_33] : memref<16x8xi32, #tpu.memory_space<smem>>
    %68 = arith.index_cast %67 : i32 to index
    %c0_34 = arith.constant 0 : index
    %69 = vector.load %arg2[%68, %c0_34] : memref<32x512xf32, #tpu.memory_space<vmem>>, vector<1x512xf32>
    %c1_35 = arith.constant 1 : index
    %c0_36 = arith.constant 0 : index
    %c0_37 = arith.constant 0 : index
    %70 = vector.load %arg7[%c1_35, %c0_36, %c0_37] : memref<8x8x512xf32, #tpu.memory_space<vmem>>, vector<1x1x512xf32>
    %71 = vector.shape_cast %70 : vector<1x1x512xf32> to vector<1x512xf32>
    %72 = vector.shape_cast %69 : vector<1x512xf32> to vector<1x1x512xf32>
    tpu.vector_store %arg7[%c1_35, %c0_36, %c0_37], %72 {strides = array<i32>} : memref<8x8x512xf32, #tpu.memory_space<vmem>>, vector<1x1x512xf32>,
    %c1_i32_38 = arith.constant 1 : i32
    %73 = arith.addi %0, %c1_i32_38 : i32
    %74 = arith.index_cast %73 : i32 to index
    %c1_39 = arith.constant 1 : index
    %75 = memref.load %arg1[%74, %c1_39] : memref<16x8xi32, #tpu.memory_space<smem>>
    %76 = arith.index_cast %75 : i32 to index
    %c0_40 = arith.constant 0 : index
    %77 = vector.load %arg2[%76, %c0_40] : memref<32x512xf32, #tpu.memory_space<vmem>>, vector<1x512xf32>
    %c1_41 = arith.constant 1 : index
    %c1_42 = arith.constant 1 : index
    %c0_43 = arith.constant 0 : index
    %78 = vector.load %arg7[%c1_41, %c1_42, %c0_43] : memref<8x8x512xf32, #tpu.memory_space<vmem>>, vector<1x1x512xf32>
    %79 = vector.shape_cast %78 : vector<1x1x512xf32> to vector<1x512xf32>
    %80 = vector.shape_cast %77 : vector<1x512xf32> to vector<1x1x512xf32>
    tpu.vector_store %arg7[%c1_41, %c1_42, %c0_43], %80 {strides = array<i32>} : memref<8x8x512xf32, #tpu.memory_space<vmem>>, vector<1x1x512xf32>,
    %c2_i32_44 = arith.constant 2 : i32
    %81 = arith.addi %0, %c2_i32_44 : i32
    %82 = arith.index_cast %81 : i32 to index
    %c1_45 = arith.constant 1 : index
    %83 = memref.load %arg1[%82, %c1_45] : memref<16x8xi32, #tpu.memory_space<smem>>
    %84 = arith.index_cast %83 : i32 to index
    %c0_46 = arith.constant 0 : index
    %85 = vector.load %arg2[%84, %c0_46] : memref<32x512xf32, #tpu.memory_space<vmem>>, vector<1x512xf32>
    %c1_47 = arith.constant 1 : index
    %c2_48 = arith.constant 2 : index
    %c0_49 = arith.constant 0 : index
    %86 = vector.load %arg7[%c1_47, %c2_48, %c0_49] : memref<8x8x512xf32, #tpu.memory_space<vmem>>, vector<1x1x512xf32>
    %87 = vector.shape_cast %86 : vector<1x1x512xf32> to vector<1x512xf32>
    %88 = vector.shape_cast %85 : vector<1x512xf32> to vector<1x1x512xf32>
    tpu.vector_store %arg7[%c1_47, %c2_48, %c0_49], %88 {strides = array<i32>} : memref<8x8x512xf32, #tpu.memory_space<vmem>>, vector<1x1x512xf32>,
    %c3_i32_50 = arith.constant 3 : i32
    %89 = arith.addi %0, %c3_i32_50 : i32
    %90 = arith.index_cast %89 : i32 to index
    %c1_51 = arith.constant 1 : index
    %91 = memref.load %arg1[%90, %c1_51] : memref<16x8xi32, #tpu.memory_space<smem>>
    %92 = arith.index_cast %91 : i32 to index
    %c0_52 = arith.constant 0 : index
    %93 = vector.load %arg2[%92, %c0_52] : memref<32x512xf32, #tpu.memory_space<vmem>>, vector<1x512xf32>
    %c1_53 = arith.constant 1 : index
    %c3_54 = arith.constant 3 : index
    %c0_55 = arith.constant 0 : index
    %94 = vector.load %arg7[%c1_53, %c3_54, %c0_55] : memref<8x8x512xf32, #tpu.memory_space<vmem>>, vector<1x1x512xf32>
    %95 = vector.shape_cast %94 : vector<1x1x512xf32> to vector<1x512xf32>
    %96 = vector.shape_cast %93 : vector<1x512xf32> to vector<1x1x512xf32>
    tpu.vector_store %arg7[%c1_53, %c3_54, %c0_55], %96 {strides = array<i32>} : memref<8x8x512xf32, #tpu.memory_space<vmem>>, vector<1x1x512xf32>,
    %c4_i32_56 = arith.constant 4 : i32
    %97 = arith.addi %0, %c4_i32_56 : i32
    %98 = arith.index_cast %97 : i32 to index
    %c1_57 = arith.constant 1 : index
    %99 = memref.load %arg1[%98, %c1_57] : memref<16x8xi32, #tpu.memory_space<smem>>
    %100 = arith.index_cast %99 : i32 to index
    %c0_58 = arith.constant 0 : index
    %101 = vector.load %arg2[%100, %c0_58] : memref<32x512xf32, #tpu.memory_space<vmem>>, vector<1x512xf32>
    %c1_59 = arith.constant 1 : index
    %c4_60 = arith.constant 4 : index
    %c0_61 = arith.constant 0 : index
    %102 = vector.load %arg7[%c1_59, %c4_60, %c0_61] : memref<8x8x512xf32, #tpu.memory_space<vmem>>, vector<1x1x512xf32>
    %103 = vector.shape_cast %102 : vector<1x1x512xf32> to vector<1x512xf32>
    %104 = vector.shape_cast %101 : vector<1x512xf32> to vector<1x1x512xf32>
    tpu.vector_store %arg7[%c1_59, %c4_60, %c0_61], %104 {strides = array<i32>} : memref<8x8x512xf32, #tpu.memory_space<vmem>>, vector<1x1x512xf32>,
    %c5_i32_62 = arith.constant 5 : i32
    %105 = arith.addi %0, %c5_i32_62 : i32
    %106 = arith.index_cast %105 : i32 to index
    %c1_63 = arith.constant 1 : index
    %107 = memref.load %arg1[%106, %c1_63] : memref<16x8xi32, #tpu.memory_space<smem>>
    %108 = arith.index_cast %107 : i32 to index
    %c0_64 = arith.constant 0 : index
    %109 = vector.load %arg2[%108, %c0_64] : memref<32x512xf32, #tpu.memory_space<vmem>>, vector<1x512xf32>
    %c1_65 = arith.constant 1 : index
    %c5_66 = arith.constant 5 : index
    %c0_67 = arith.constant 0 : index
    %110 = vector.load %arg7[%c1_65, %c5_66, %c0_67] : memref<8x8x512xf32, #tpu.memory_space<vmem>>, vector<1x1x512xf32>
    %111 = vector.shape_cast %110 : vector<1x1x512xf32> to vector<1x512xf32>
    %112 = vector.shape_cast %109 : vector<1x512xf32> to vector<1x1x512xf32>
    tpu.vector_store %arg7[%c1_65, %c5_66, %c0_67], %112 {strides = array<i32>} : memref<8x8x512xf32, #tpu.memory_space<vmem>>, vector<1x1x512xf32>,
    %c6_i32_68 = arith.constant 6 : i32
    %113 = arith.addi %0, %c6_i32_68 : i32
    %114 = arith.index_cast %113 : i32 to index
    %c1_69 = arith.constant 1 : index
    %115 = memref.load %arg1[%114, %c1_69] : memref<16x8xi32, #tpu.memory_space<smem>>
    %116 = arith.index_cast %115 : i32 to index
    %c0_70 = arith.constant 0 : index
    %117 = vector.load %arg2[%116, %c0_70] : memref<32x512xf32, #tpu.memory_space<vmem>>, vector<1x512xf32>
    %c1_71 = arith.constant 1 : index
    %c6_72 = arith.constant 6 : index
    %c0_73 = arith.constant 0 : index
    %118 = vector.load %arg7[%c1_71, %c6_72, %c0_73] : memref<8x8x512xf32, #tpu.memory_space<vmem>>, vector<1x1x512xf32>
    %119 = vector.shape_cast %118 : vector<1x1x512xf32> to vector<1x512xf32>
    %120 = vector.shape_cast %117 : vector<1x512xf32> to vector<1x1x512xf32>
    tpu.vector_store %arg7[%c1_71, %c6_72, %c0_73], %120 {strides = array<i32>} : memref<8x8x512xf32, #tpu.memory_space<vmem>>, vector<1x1x512xf32>,
    %c7_i32_74 = arith.constant 7 : i32
    %121 = arith.addi %0, %c7_i32_74 : i32
    %122 = arith.index_cast %121 : i32 to index
    %c1_75 = arith.constant 1 : index
    %123 = memref.load %arg1[%122, %c1_75] : memref<16x8xi32, #tpu.memory_space<smem>>
    %124 = arith.index_cast %123 : i32 to index
    %c0_76 = arith.constant 0 : index
    %125 = vector.load %arg2[%124, %c0_76] : memref<32x512xf32, #tpu.memory_space<vmem>>, vector<1x512xf32>
    %c1_77 = arith.constant 1 : index
    %c7_78 = arith.constant 7 : index
    %c0_79 = arith.constant 0 : index
    %126 = vector.load %arg7[%c1_77, %c7_78, %c0_79] : memref<8x8x512xf32, #tpu.memory_space<vmem>>, vector<1x1x512xf32>
    %127 = vector.shape_cast %126 : vector<1x1x512xf32> to vector<1x512xf32>
    %128 = vector.shape_cast %125 : vector<1x512xf32> to vector<1x1x512xf32>
    tpu.vector_store %arg7[%c1_77, %c7_78, %c0_79], %128 {strides = array<i32>} : memref<8x8x512xf32, #tpu.memory_space<vmem>>, vector<1x1x512xf32>,
    %c0_i32_80 = arith.constant 0 : i32
    %129 = arith.addi %0, %c0_i32_80 : i32
    %130 = arith.index_cast %129 : i32 to index
    %c2_81 = arith.constant 2 : index
    %131 = memref.load %arg1[%130, %c2_81] : memref<16x8xi32, #tpu.memory_space<smem>>
    %132 = arith.index_cast %131 : i32 to index
    %c0_82 = arith.constant 0 : index
    %133 = vector.load %arg2[%132, %c0_82] : memref<32x512xf32, #tpu.memory_space<vmem>>, vector<1x512xf32>
    %c2_83 = arith.constant 2 : index
    %c0_84 = arith.constant 0 : index
    %c0_85 = arith.constant 0 : index
    %134 = vector.load %arg7[%c2_83, %c0_84, %c0_85] : memref<8x8x512xf32, #tpu.memory_space<vmem>>, vector<1x1x512xf32>
    %135 = vector.shape_cast %134 : vector<1x1x512xf32> to vector<1x512xf32>
    %136 = vector.shape_cast %133 : vector<1x512xf32> to vector<1x1x512xf32>
    tpu.vector_store %arg7[%c2_83, %c0_84, %c0_85], %136 {strides = array<i32>} : memref<8x8x512xf32, #tpu.memory_space<vmem>>, vector<1x1x512xf32>,
    %c1_i32_86 = arith.constant 1 : i32
    %137 = arith.addi %0, %c1_i32_86 : i32
    %138 = arith.index_cast %137 : i32 to index
    %c2_87 = arith.constant 2 : index
    %139 = memref.load %arg1[%138, %c2_87] : memref<16x8xi32, #tpu.memory_space<smem>>
    %140 = arith.index_cast %139 : i32 to index
    %c0_88 = arith.constant 0 : index
    %141 = vector.load %arg2[%140, %c0_88] : memref<32x512xf32, #tpu.memory_space<vmem>>, vector<1x512xf32>
    %c2_89 = arith.constant 2 : index
    %c1_90 = arith.constant 1 : index
    %c0_91 = arith.constant 0 : index
    %142 = vector.load %arg7[%c2_89, %c1_90, %c0_91] : memref<8x8x512xf32, #tpu.memory_space<vmem>>, vector<1x1x512xf32>
    %143 = vector.shape_cast %142 : vector<1x1x512xf32> to vector<1x512xf32>
    %144 = vector.shape_cast %141 : vector<1x512xf32> to vector<1x1x512xf32>
    tpu.vector_store %arg7[%c2_89, %c1_90, %c0_91], %144 {strides = array<i32>} : memref<8x8x512xf32, #tpu.memory_space<vmem>>, vector<1x1x512xf32>,
    %c2_i32_92 = arith.constant 2 : i32
    %145 = arith.addi %0, %c2_i32_92 : i32
    %146 = arith.index_cast %145 : i32 to index
    %c2_93 = arith.constant 2 : index
    %147 = memref.load %arg1[%146, %c2_93] : memref<16x8xi32, #tpu.memory_space<smem>>
    %148 = arith.index_cast %147 : i32 to index
    %c0_94 = arith.constant 0 : index
    %149 = vector.load %arg2[%148, %c0_94] : memref<32x512xf32, #tpu.memory_space<vmem>>, vector<1x512xf32>
    %c2_95 = arith.constant 2 : index
    %c2_96 = arith.constant 2 : index
    %c0_97 = arith.constant 0 : index
    %150 = vector.load %arg7[%c2_95, %c2_96, %c0_97] : memref<8x8x512xf32, #tpu.memory_space<vmem>>, vector<1x1x512xf32>
    %151 = vector.shape_cast %150 : vector<1x1x512xf32> to vector<1x512xf32>
    %152 = vector.shape_cast %149 : vector<1x512xf32> to vector<1x1x512xf32>
    tpu.vector_store %arg7[%c2_95, %c2_96, %c0_97], %152 {strides = array<i32>} : memref<8x8x512xf32, #tpu.memory_space<vmem>>, vector<1x1x512xf32>,
    %c3_i32_98 = arith.constant 3 : i32
    %153 = arith.addi %0, %c3_i32_98 : i32
    %154 = arith.index_cast %153 : i32 to index
    %c2_99 = arith.constant 2 : index
    %155 = memref.load %arg1[%154, %c2_99] : memref<16x8xi32, #tpu.memory_space<smem>>
    %156 = arith.index_cast %155 : i32 to index
    %c0_100 = arith.constant 0 : index
    %157 = vector.load %arg2[%156, %c0_100] : memref<32x512xf32, #tpu.memory_space<vmem>>, vector<1x512xf32>
    %c2_101 = arith.constant 2 : index
    %c3_102 = arith.constant 3 : index
    %c0_103 = arith.constant 0 : index
    %158 = vector.load %arg7[%c2_101, %c3_102, %c0_103] : memref<8x8x512xf32, #tpu.memory_space<vmem>>, vector<1x1x512xf32>
    %159 = vector.shape_cast %158 : vector<1x1x512xf32> to vector<1x512xf32>
    %160 = vector.shape_cast %157 : vector<1x512xf32> to vector<1x1x512xf32>
    tpu.vector_store %arg7[%c2_101, %c3_102, %c0_103], %160 {strides = array<i32>} : memref<8x8x512xf32, #tpu.memory_space<vmem>>, vector<1x1x512xf32>,
    %c4_i32_104 = arith.constant 4 : i32
    %161 = arith.addi %0, %c4_i32_104 : i32
    %162 = arith.index_cast %161 : i32 to index
    %c2_105 = arith.constant 2 : index
    %163 = memref.load %arg1[%162, %c2_105] : memref<16x8xi32, #tpu.memory_space<smem>>
    %164 = arith.index_cast %163 : i32 to index
    %c0_106 = arith.constant 0 : index
    %165 = vector.load %arg2[%164, %c0_106] : memref<32x512xf32, #tpu.memory_space<vmem>>, vector<1x512xf32>
    %c2_107 = arith.constant 2 : index
    %c4_108 = arith.constant 4 : index
    %c0_109 = arith.constant 0 : index
    %166 = vector.load %arg7[%c2_107, %c4_108, %c0_109] : memref<8x8x512xf32, #tpu.memory_space<vmem>>, vector<1x1x512xf32>
    %167 = vector.shape_cast %166 : vector<1x1x512xf32> to vector<1x512xf32>
    %168 = vector.shape_cast %165 : vector<1x512xf32> to vector<1x1x512xf32>
    tpu.vector_store %arg7[%c2_107, %c4_108, %c0_109], %168 {strides = array<i32>} : memref<8x8x512xf32, #tpu.memory_space<vmem>>, vector<1x1x512xf32>,
    %c5_i32_110 = arith.constant 5 : i32
    %169 = arith.addi %0, %c5_i32_110 : i32
    %170 = arith.index_cast %169 : i32 to index
    %c2_111 = arith.constant 2 : index
    %171 = memref.load %arg1[%170, %c2_111] : memref<16x8xi32, #tpu.memory_space<smem>>
    %172 = arith.index_cast %171 : i32 to index
    %c0_112 = arith.constant 0 : index
    %173 = vector.load %arg2[%172, %c0_112] : memref<32x512xf32, #tpu.memory_space<vmem>>, vector<1x512xf32>
    %c2_113 = arith.constant 2 : index
    %c5_114 = arith.constant 5 : index
    %c0_115 = arith.constant 0 : index
    %174 = vector.load %arg7[%c2_113, %c5_114, %c0_115] : memref<8x8x512xf32, #tpu.memory_space<vmem>>, vector<1x1x512xf32>
    %175 = vector.shape_cast %174 : vector<1x1x512xf32> to vector<1x512xf32>
    %176 = vector.shape_cast %173 : vector<1x512xf32> to vector<1x1x512xf32>
    tpu.vector_store %arg7[%c2_113, %c5_114, %c0_115], %176 {strides = array<i32>} : memref<8x8x512xf32, #tpu.memory_space<vmem>>, vector<1x1x512xf32>,
    %c6_i32_116 = arith.constant 6 : i32
    %177 = arith.addi %0, %c6_i32_116 : i32
    %178 = arith.index_cast %177 : i32 to index
    %c2_117 = arith.constant 2 : index
    %179 = memref.load %arg1[%178, %c2_117] : memref<16x8xi32, #tpu.memory_space<smem>>
    %180 = arith.index_cast %179 : i32 to index
    %c0_118 = arith.constant 0 : index
    %181 = vector.load %arg2[%180, %c0_118] : memref<32x512xf32, #tpu.memory_space<vmem>>, vector<1x512xf32>
    %c2_119 = arith.constant 2 : index
    %c6_120 = arith.constant 6 : index
    %c0_121 = arith.constant 0 : index
    %182 = vector.load %arg7[%c2_119, %c6_120, %c0_121] : memref<8x8x512xf32, #tpu.memory_space<vmem>>, vector<1x1x512xf32>
    %183 = vector.shape_cast %182 : vector<1x1x512xf32> to vector<1x512xf32>
    %184 = vector.shape_cast %181 : vector<1x512xf32> to vector<1x1x512xf32>
    tpu.vector_store %arg7[%c2_119, %c6_120, %c0_121], %184 {strides = array<i32>} : memref<8x8x512xf32, #tpu.memory_space<vmem>>, vector<1x1x512xf32>,
    %c7_i32_122 = arith.constant 7 : i32
    %185 = arith.addi %0, %c7_i32_122 : i32
    %186 = arith.index_cast %185 : i32 to index
    %c2_123 = arith.constant 2 : index
    %187 = memref.load %arg1[%186, %c2_123] : memref<16x8xi32, #tpu.memory_space<smem>>
    %188 = arith.index_cast %187 : i32 to index
    %c0_124 = arith.constant 0 : index
    %189 = vector.load %arg2[%188, %c0_124] : memref<32x512xf32, #tpu.memory_space<vmem>>, vector<1x512xf32>
    %c2_125 = arith.constant 2 : index
    %c7_126 = arith.constant 7 : index
    %c0_127 = arith.constant 0 : index
    %190 = vector.load %arg7[%c2_125, %c7_126, %c0_127] : memref<8x8x512xf32, #tpu.memory_space<vmem>>, vector<1x1x512xf32>
    %191 = vector.shape_cast %190 : vector<1x1x512xf32> to vector<1x512xf32>
    %192 = vector.shape_cast %189 : vector<1x512xf32> to vector<1x1x512xf32>
    tpu.vector_store %arg7[%c2_125, %c7_126, %c0_127], %192 {strides = array<i32>} : memref<8x8x512xf32, #tpu.memory_space<vmem>>, vector<1x1x512xf32>,
    %c0_i32_128 = arith.constant 0 : i32
    %193 = arith.addi %0, %c0_i32_128 : i32
    %194 = arith.index_cast %193 : i32 to index
    %c3_129 = arith.constant 3 : index
    %195 = memref.load %arg1[%194, %c3_129] : memref<16x8xi32, #tpu.memory_space<smem>>
    %196 = arith.index_cast %195 : i32 to index
    %c0_130 = arith.constant 0 : index
    %197 = vector.load %arg2[%196, %c0_130] : memref<32x512xf32, #tpu.memory_space<vmem>>, vector<1x512xf32>
    %c3_131 = arith.constant 3 : index
    %c0_132 = arith.constant 0 : index
    %c0_133 = arith.constant 0 : index
    %198 = vector.load %arg7[%c3_131, %c0_132, %c0_133] : memref<8x8x512xf32, #tpu.memory_space<vmem>>, vector<1x1x512xf32>
    %199 = vector.shape_cast %198 : vector<1x1x512xf32> to vector<1x512xf32>
    %200 = vector.shape_cast %197 : vector<1x512xf32> to vector<1x1x512xf32>
    tpu.vector_store %arg7[%c3_131, %c0_132, %c0_133], %200 {strides = array<i32>} : memref<8x8x512xf32, #tpu.memory_space<vmem>>, vector<1x1x512xf32>,
    %c1_i32_134 = arith.constant 1 : i32
    %201 = arith.addi %0, %c1_i32_134 : i32
    %202 = arith.index_cast %201 : i32 to index
    %c3_135 = arith.constant 3 : index
    %203 = memref.load %arg1[%202, %c3_135] : memref<16x8xi32, #tpu.memory_space<smem>>
    %204 = arith.index_cast %203 : i32 to index
    %c0_136 = arith.constant 0 : index
    %205 = vector.load %arg2[%204, %c0_136] : memref<32x512xf32, #tpu.memory_space<vmem>>, vector<1x512xf32>
    %c3_137 = arith.constant 3 : index
    %c1_138 = arith.constant 1 : index
    %c0_139 = arith.constant 0 : index
    %206 = vector.load %arg7[%c3_137, %c1_138, %c0_139] : memref<8x8x512xf32, #tpu.memory_space<vmem>>, vector<1x1x512xf32>
    %207 = vector.shape_cast %206 : vector<1x1x512xf32> to vector<1x512xf32>
    %208 = vector.shape_cast %205 : vector<1x512xf32> to vector<1x1x512xf32>
    tpu.vector_store %arg7[%c3_137, %c1_138, %c0_139], %208 {strides = array<i32>} : memref<8x8x512xf32, #tpu.memory_space<vmem>>, vector<1x1x512xf32>,
    %c2_i32_140 = arith.constant 2 : i32
    %209 = arith.addi %0, %c2_i32_140 : i32
    %210 = arith.index_cast %209 : i32 to index
    %c3_141 = arith.constant 3 : index
    %211 = memref.load %arg1[%210, %c3_141] : memref<16x8xi32, #tpu.memory_space<smem>>
    %212 = arith.index_cast %211 : i32 to index
    %c0_142 = arith.constant 0 : index
    %213 = vector.load %arg2[%212, %c0_142] : memref<32x512xf32, #tpu.memory_space<vmem>>, vector<1x512xf32>
    %c3_143 = arith.constant 3 : index
    %c2_144 = arith.constant 2 : index
    %c0_145 = arith.constant 0 : index
    %214 = vector.load %arg7[%c3_143, %c2_144, %c0_145] : memref<8x8x512xf32, #tpu.memory_space<vmem>>, vector<1x1x512xf32>
    %215 = vector.shape_cast %214 : vector<1x1x512xf32> to vector<1x512xf32>
    %216 = vector.shape_cast %213 : vector<1x512xf32> to vector<1x1x512xf32>
    tpu.vector_store %arg7[%c3_143, %c2_144, %c0_145], %216 {strides = array<i32>} : memref<8x8x512xf32, #tpu.memory_space<vmem>>, vector<1x1x512xf32>,
    %c3_i32_146 = arith.constant 3 : i32
    %217 = arith.addi %0, %c3_i32_146 : i32
    %218 = arith.index_cast %217 : i32 to index
    %c3_147 = arith.constant 3 : index
    %219 = memref.load %arg1[%218, %c3_147] : memref<16x8xi32, #tpu.memory_space<smem>>
    %220 = arith.index_cast %219 : i32 to index
    %c0_148 = arith.constant 0 : index
    %221 = vector.load %arg2[%220, %c0_148] : memref<32x512xf32, #tpu.memory_space<vmem>>, vector<1x512xf32>
    %c3_149 = arith.constant 3 : index
    %c3_150 = arith.constant 3 : index
    %c0_151 = arith.constant 0 : index
    %222 = vector.load %arg7[%c3_149, %c3_150, %c0_151] : memref<8x8x512xf32, #tpu.memory_space<vmem>>, vector<1x1x512xf32>
    %223 = vector.shape_cast %222 : vector<1x1x512xf32> to vector<1x512xf32>
    %224 = vector.shape_cast %221 : vector<1x512xf32> to vector<1x1x512xf32>
    tpu.vector_store %arg7[%c3_149, %c3_150, %c0_151], %224 {strides = array<i32>} : memref<8x8x512xf32, #tpu.memory_space<vmem>>, vector<1x1x512xf32>,
    %c4_i32_152 = arith.constant 4 : i32
    %225 = arith.addi %0, %c4_i32_152 : i32
    %226 = arith.index_cast %225 : i32 to index
    %c3_153 = arith.constant 3 : index
    %227 = memref.load %arg1[%226, %c3_153] : memref<16x8xi32, #tpu.memory_space<smem>>
    %228 = arith.index_cast %227 : i32 to index
    %c0_154 = arith.constant 0 : index
    %229 = vector.load %arg2[%228, %c0_154] : memref<32x512xf32, #tpu.memory_space<vmem>>, vector<1x512xf32>
    %c3_155 = arith.constant 3 : index
    %c4_156 = arith.constant 4 : index
    %c0_157 = arith.constant 0 : index
    %230 = vector.load %arg7[%c3_155, %c4_156, %c0_157] : memref<8x8x512xf32, #tpu.memory_space<vmem>>, vector<1x1x512xf32>
    %231 = vector.shape_cast %230 : vector<1x1x512xf32> to vector<1x512xf32>
    %232 = vector.shape_cast %229 : vector<1x512xf32> to vector<1x1x512xf32>
    tpu.vector_store %arg7[%c3_155, %c4_156, %c0_157], %232 {strides = array<i32>} : memref<8x8x512xf32, #tpu.memory_space<vmem>>, vector<1x1x512xf32>,
    %c5_i32_158 = arith.constant 5 : i32
    %233 = arith.addi %0, %c5_i32_158 : i32
    %234 = arith.index_cast %233 : i32 to index
    %c3_159 = arith.constant 3 : index
    %235 = memref.load %arg1[%234, %c3_159] : memref<16x8xi32, #tpu.memory_space<smem>>
    %236 = arith.index_cast %235 : i32 to index
    %c0_160 = arith.constant 0 : index
    %237 = vector.load %arg2[%236, %c0_160] : memref<32x512xf32, #tpu.memory_space<vmem>>, vector<1x512xf32>
    %c3_161 = arith.constant 3 : index
    %c5_162 = arith.constant 5 : index
    %c0_163 = arith.constant 0 : index
    %238 = vector.load %arg7[%c3_161, %c5_162, %c0_163] : memref<8x8x512xf32, #tpu.memory_space<vmem>>, vector<1x1x512xf32>
    %239 = vector.shape_cast %238 : vector<1x1x512xf32> to vector<1x512xf32>
    %240 = vector.shape_cast %237 : vector<1x512xf32> to vector<1x1x512xf32>
    tpu.vector_store %arg7[%c3_161, %c5_162, %c0_163], %240 {strides = array<i32>} : memref<8x8x512xf32, #tpu.memory_space<vmem>>, vector<1x1x512xf32>,
    %c6_i32_164 = arith.constant 6 : i32
    %241 = arith.addi %0, %c6_i32_164 : i32
    %242 = arith.index_cast %241 : i32 to index
    %c3_165 = arith.constant 3 : index
    %243 = memref.load %arg1[%242, %c3_165] : memref<16x8xi32, #tpu.memory_space<smem>>
    %244 = arith.index_cast %243 : i32 to index
    %c0_166 = arith.constant 0 : index
    %245 = vector.load %arg2[%244, %c0_166] : memref<32x512xf32, #tpu.memory_space<vmem>>, vector<1x512xf32>
    %c3_167 = arith.constant 3 : index
    %c6_168 = arith.constant 6 : index
    %c0_169 = arith.constant 0 : index
    %246 = vector.load %arg7[%c3_167, %c6_168, %c0_169] : memref<8x8x512xf32, #tpu.memory_space<vmem>>, vector<1x1x512xf32>
    %247 = vector.shape_cast %246 : vector<1x1x512xf32> to vector<1x512xf32>
    %248 = vector.shape_cast %245 : vector<1x512xf32> to vector<1x1x512xf32>
    tpu.vector_store %arg7[%c3_167, %c6_168, %c0_169], %248 {strides = array<i32>} : memref<8x8x512xf32, #tpu.memory_space<vmem>>, vector<1x1x512xf32>,
    %c7_i32_170 = arith.constant 7 : i32
    %249 = arith.addi %0, %c7_i32_170 : i32
    %250 = arith.index_cast %249 : i32 to index
    %c3_171 = arith.constant 3 : index
    %251 = memref.load %arg1[%250, %c3_171] : memref<16x8xi32, #tpu.memory_space<smem>>
    %252 = arith.index_cast %251 : i32 to index
    %c0_172 = arith.constant 0 : index
    %253 = vector.load %arg2[%252, %c0_172] : memref<32x512xf32, #tpu.memory_space<vmem>>, vector<1x512xf32>
    %c3_173 = arith.constant 3 : index
    %c7_174 = arith.constant 7 : index
    %c0_175 = arith.constant 0 : index
    %254 = vector.load %arg7[%c3_173, %c7_174, %c0_175] : memref<8x8x512xf32, #tpu.memory_space<vmem>>, vector<1x1x512xf32>
    %255 = vector.shape_cast %254 : vector<1x1x512xf32> to vector<1x512xf32>
    %256 = vector.shape_cast %253 : vector<1x512xf32> to vector<1x1x512xf32>
    tpu.vector_store %arg7[%c3_173, %c7_174, %c0_175], %256 {strides = array<i32>} : memref<8x8x512xf32, #tpu.memory_space<vmem>>, vector<1x1x512xf32>,
    %c0_i32_176 = arith.constant 0 : i32
    %257 = arith.addi %0, %c0_i32_176 : i32
    %258 = arith.index_cast %257 : i32 to index
    %c4_177 = arith.constant 4 : index
    %259 = memref.load %arg1[%258, %c4_177] : memref<16x8xi32, #tpu.memory_space<smem>>
    %260 = arith.index_cast %259 : i32 to index
    %c0_178 = arith.constant 0 : index
    %261 = vector.load %arg2[%260, %c0_178] : memref<32x512xf32, #tpu.memory_space<vmem>>, vector<1x512xf32>
    %c4_179 = arith.constant 4 : index
    %c0_180 = arith.constant 0 : index
    %c0_181 = arith.constant 0 : index
    %262 = vector.load %arg7[%c4_179, %c0_180, %c0_181] : memref<8x8x512xf32, #tpu.memory_space<vmem>>, vector<1x1x512xf32>
    %263 = vector.shape_cast %262 : vector<1x1x512xf32> to vector<1x512xf32>
    %264 = vector.shape_cast %261 : vector<1x512xf32> to vector<1x1x512xf32>
    tpu.vector_store %arg7[%c4_179, %c0_180, %c0_181], %264 {strides = array<i32>} : memref<8x8x512xf32, #tpu.memory_space<vmem>>, vector<1x1x512xf32>,
    %c1_i32_182 = arith.constant 1 : i32
    %265 = arith.addi %0, %c1_i32_182 : i32
    %266 = arith.index_cast %265 : i32 to index
    %c4_183 = arith.constant 4 : index
    %267 = memref.load %arg1[%266, %c4_183] : memref<16x8xi32, #tpu.memory_space<smem>>
    %268 = arith.index_cast %267 : i32 to index
    %c0_184 = arith.constant 0 : index
    %269 = vector.load %arg2[%268, %c0_184] : memref<32x512xf32, #tpu.memory_space<vmem>>, vector<1x512xf32>
    %c4_185 = arith.constant 4 : index
    %c1_186 = arith.constant 1 : index
    %c0_187 = arith.constant 0 : index
    %270 = vector.load %arg7[%c4_185, %c1_186, %c0_187] : memref<8x8x512xf32, #tpu.memory_space<vmem>>, vector<1x1x512xf32>
    %271 = vector.shape_cast %270 : vector<1x1x512xf32> to vector<1x512xf32>
    %272 = vector.shape_cast %269 : vector<1x512xf32> to vector<1x1x512xf32>
    tpu.vector_store %arg7[%c4_185, %c1_186, %c0_187], %272 {strides = array<i32>} : memref<8x8x512xf32, #tpu.memory_space<vmem>>, vector<1x1x512xf32>,
    %c2_i32_188 = arith.constant 2 : i32
    %273 = arith.addi %0, %c2_i32_188 : i32
    %274 = arith.index_cast %273 : i32 to index
    %c4_189 = arith.constant 4 : index
    %275 = memref.load %arg1[%274, %c4_189] : memref<16x8xi32, #tpu.memory_space<smem>>
    %276 = arith.index_cast %275 : i32 to index
    %c0_190 = arith.constant 0 : index
    %277 = vector.load %arg2[%276, %c0_190] : memref<32x512xf32, #tpu.memory_space<vmem>>, vector<1x512xf32>
    %c4_191 = arith.constant 4 : index
    %c2_192 = arith.constant 2 : index
    %c0_193 = arith.constant 0 : index
    %278 = vector.load %arg7[%c4_191, %c2_192, %c0_193] : memref<8x8x512xf32, #tpu.memory_space<vmem>>, vector<1x1x512xf32>
    %279 = vector.shape_cast %278 : vector<1x1x512xf32> to vector<1x512xf32>
    %280 = vector.shape_cast %277 : vector<1x512xf32> to vector<1x1x512xf32>
    tpu.vector_store %arg7[%c4_191, %c2_192, %c0_193], %280 {strides = array<i32>} : memref<8x8x512xf32, #tpu.memory_space<vmem>>, vector<1x1x512xf32>,
    %c3_i32_194 = arith.constant 3 : i32
    %281 = arith.addi %0, %c3_i32_194 : i32
    %282 = arith.index_cast %281 : i32 to index
    %c4_195 = arith.constant 4 : index
    %283 = memref.load %arg1[%282, %c4_195] : memref<16x8xi32, #tpu.memory_space<smem>>
    %284 = arith.index_cast %283 : i32 to index
    %c0_196 = arith.constant 0 : index
    %285 = vector.load %arg2[%284, %c0_196] : memref<32x512xf32, #tpu.memory_space<vmem>>, vector<1x512xf32>
    %c4_197 = arith.constant 4 : index
    %c3_198 = arith.constant 3 : index
    %c0_199 = arith.constant 0 : index
    %286 = vector.load %arg7[%c4_197, %c3_198, %c0_199] : memref<8x8x512xf32, #tpu.memory_space<vmem>>, vector<1x1x512xf32>
    %287 = vector.shape_cast %286 : vector<1x1x512xf32> to vector<1x512xf32>
    %288 = vector.shape_cast %285 : vector<1x512xf32> to vector<1x1x512xf32>
    tpu.vector_store %arg7[%c4_197, %c3_198, %c0_199], %288 {strides = array<i32>} : memref<8x8x512xf32, #tpu.memory_space<vmem>>, vector<1x1x512xf32>,
    %c4_i32_200 = arith.constant 4 : i32
    %289 = arith.addi %0, %c4_i32_200 : i32
    %290 = arith.index_cast %289 : i32 to index
    %c4_201 = arith.constant 4 : index
    %291 = memref.load %arg1[%290, %c4_201] : memref<16x8xi32, #tpu.memory_space<smem>>
    %292 = arith.index_cast %291 : i32 to index
    %c0_202 = arith.constant 0 : index
    %293 = vector.load %arg2[%292, %c0_202] : memref<32x512xf32, #tpu.memory_space<vmem>>, vector<1x512xf32>
    %c4_203 = arith.constant 4 : index
    %c4_204 = arith.constant 4 : index
    %c0_205 = arith.constant 0 : index
    %294 = vector.load %arg7[%c4_203, %c4_204, %c0_205] : memref<8x8x512xf32, #tpu.memory_space<vmem>>, vector<1x1x512xf32>
    %295 = vector.shape_cast %294 : vector<1x1x512xf32> to vector<1x512xf32>
    %296 = vector.shape_cast %293 : vector<1x512xf32> to vector<1x1x512xf32>
    tpu.vector_store %arg7[%c4_203, %c4_204, %c0_205], %296 {strides = array<i32>} : memref<8x8x512xf32, #tpu.memory_space<vmem>>, vector<1x1x512xf32>,
    %c5_i32_206 = arith.constant 5 : i32
    %297 = arith.addi %0, %c5_i32_206 : i32
    %298 = arith.index_cast %297 : i32 to index
    %c4_207 = arith.constant 4 : index
    %299 = memref.load %arg1[%298, %c4_207] : memref<16x8xi32, #tpu.memory_space<smem>>
    %300 = arith.index_cast %299 : i32 to index
    %c0_208 = arith.constant 0 : index
    %301 = vector.load %arg2[%300, %c0_208] : memref<32x512xf32, #tpu.memory_space<vmem>>, vector<1x512xf32>
    %c4_209 = arith.constant 4 : index
    %c5_210 = arith.constant 5 : index
    %c0_211 = arith.constant 0 : index
    %302 = vector.load %arg7[%c4_209, %c5_210, %c0_211] : memref<8x8x512xf32, #tpu.memory_space<vmem>>, vector<1x1x512xf32>
    %303 = vector.shape_cast %302 : vector<1x1x512xf32> to vector<1x512xf32>
    %304 = vector.shape_cast %301 : vector<1x512xf32> to vector<1x1x512xf32>
    tpu.vector_store %arg7[%c4_209, %c5_210, %c0_211], %304 {strides = array<i32>} : memref<8x8x512xf32, #tpu.memory_space<vmem>>, vector<1x1x512xf32>,
    %c6_i32_212 = arith.constant 6 : i32
    %305 = arith.addi %0, %c6_i32_212 : i32
    %306 = arith.index_cast %305 : i32 to index
    %c4_213 = arith.constant 4 : index
    %307 = memref.load %arg1[%306, %c4_213] : memref<16x8xi32, #tpu.memory_space<smem>>
    %308 = arith.index_cast %307 : i32 to index
    %c0_214 = arith.constant 0 : index
    %309 = vector.load %arg2[%308, %c0_214] : memref<32x512xf32, #tpu.memory_space<vmem>>, vector<1x512xf32>
    %c4_215 = arith.constant 4 : index
    %c6_216 = arith.constant 6 : index
    %c0_217 = arith.constant 0 : index
    %310 = vector.load %arg7[%c4_215, %c6_216, %c0_217] : memref<8x8x512xf32, #tpu.memory_space<vmem>>, vector<1x1x512xf32>
    %311 = vector.shape_cast %310 : vector<1x1x512xf32> to vector<1x512xf32>
    %312 = vector.shape_cast %309 : vector<1x512xf32> to vector<1x1x512xf32>
    tpu.vector_store %arg7[%c4_215, %c6_216, %c0_217], %312 {strides = array<i32>} : memref<8x8x512xf32, #tpu.memory_space<vmem>>, vector<1x1x512xf32>,
    %c7_i32_218 = arith.constant 7 : i32
    %313 = arith.addi %0, %c7_i32_218 : i32
    %314 = arith.index_cast %313 : i32 to index
    %c4_219 = arith.constant 4 : index
    %315 = memref.load %arg1[%314, %c4_219] : memref<16x8xi32, #tpu.memory_space<smem>>
    %316 = arith.index_cast %315 : i32 to index
    %c0_220 = arith.constant 0 : index
    %317 = vector.load %arg2[%316, %c0_220] : memref<32x512xf32, #tpu.memory_space<vmem>>, vector<1x512xf32>
    %c4_221 = arith.constant 4 : index
    %c7_222 = arith.constant 7 : index
    %c0_223 = arith.constant 0 : index
    %318 = vector.load %arg7[%c4_221, %c7_222, %c0_223] : memref<8x8x512xf32, #tpu.memory_space<vmem>>, vector<1x1x512xf32>
    %319 = vector.shape_cast %318 : vector<1x1x512xf32> to vector<1x512xf32>
    %320 = vector.shape_cast %317 : vector<1x512xf32> to vector<1x1x512xf32>
    tpu.vector_store %arg7[%c4_221, %c7_222, %c0_223], %320 {strides = array<i32>} : memref<8x8x512xf32, #tpu.memory_space<vmem>>, vector<1x1x512xf32>,
    %c0_i32_224 = arith.constant 0 : i32
    %321 = arith.addi %0, %c0_i32_224 : i32
    %322 = arith.index_cast %321 : i32 to index
    %c5_225 = arith.constant 5 : index
    %323 = memref.load %arg1[%322, %c5_225] : memref<16x8xi32, #tpu.memory_space<smem>>
    %324 = arith.index_cast %323 : i32 to index
    %c0_226 = arith.constant 0 : index
    %325 = vector.load %arg2[%324, %c0_226] : memref<32x512xf32, #tpu.memory_space<vmem>>, vector<1x512xf32>
    %c5_227 = arith.constant 5 : index
    %c0_228 = arith.constant 0 : index
    %c0_229 = arith.constant 0 : index
    %326 = vector.load %arg7[%c5_227, %c0_228, %c0_229] : memref<8x8x512xf32, #tpu.memory_space<vmem>>, vector<1x1x512xf32>
    %327 = vector.shape_cast %326 : vector<1x1x512xf32> to vector<1x512xf32>
    %328 = vector.shape_cast %325 : vector<1x512xf32> to vector<1x1x512xf32>
    tpu.vector_store %arg7[%c5_227, %c0_228, %c0_229], %328 {strides = array<i32>} : memref<8x8x512xf32, #tpu.memory_space<vmem>>, vector<1x1x512xf32>,
    %c1_i32_230 = arith.constant 1 : i32
    %329 = arith.addi %0, %c1_i32_230 : i32
    %330 = arith.index_cast %329 : i32 to index
    %c5_231 = arith.constant 5 : index
    %331 = memref.load %arg1[%330, %c5_231] : memref<16x8xi32, #tpu.memory_space<smem>>
    %332 = arith.index_cast %331 : i32 to index
    %c0_232 = arith.constant 0 : index
    %333 = vector.load %arg2[%332, %c0_232] : memref<32x512xf32, #tpu.memory_space<vmem>>, vector<1x512xf32>
    %c5_233 = arith.constant 5 : index
    %c1_234 = arith.constant 1 : index
    %c0_235 = arith.constant 0 : index
    %334 = vector.load %arg7[%c5_233, %c1_234, %c0_235] : memref<8x8x512xf32, #tpu.memory_space<vmem>>, vector<1x1x512xf32>
    %335 = vector.shape_cast %334 : vector<1x1x512xf32> to vector<1x512xf32>
    %336 = vector.shape_cast %333 : vector<1x512xf32> to vector<1x1x512xf32>
    tpu.vector_store %arg7[%c5_233, %c1_234, %c0_235], %336 {strides = array<i32>} : memref<8x8x512xf32, #tpu.memory_space<vmem>>, vector<1x1x512xf32>,
    %c2_i32_236 = arith.constant 2 : i32
    %337 = arith.addi %0, %c2_i32_236 : i32
    %338 = arith.index_cast %337 : i32 to index
    %c5_237 = arith.constant 5 : index
    %339 = memref.load %arg1[%338, %c5_237] : memref<16x8xi32, #tpu.memory_space<smem>>
    %340 = arith.index_cast %339 : i32 to index
    %c0_238 = arith.constant 0 : index
    %341 = vector.load %arg2[%340, %c0_238] : memref<32x512xf32, #tpu.memory_space<vmem>>, vector<1x512xf32>
    %c5_239 = arith.constant 5 : index
    %c2_240 = arith.constant 2 : index
    %c0_241 = arith.constant 0 : index
    %342 = vector.load %arg7[%c5_239, %c2_240, %c0_241] : memref<8x8x512xf32, #tpu.memory_space<vmem>>, vector<1x1x512xf32>
    %343 = vector.shape_cast %342 : vector<1x1x512xf32> to vector<1x512xf32>
    %344 = vector.shape_cast %341 : vector<1x512xf32> to vector<1x1x512xf32>
    tpu.vector_store %arg7[%c5_239, %c2_240, %c0_241], %344 {strides = array<i32>} : memref<8x8x512xf32, #tpu.memory_space<vmem>>, vector<1x1x512xf32>,
    %c3_i32_242 = arith.constant 3 : i32
    %345 = arith.addi %0, %c3_i32_242 : i32
    %346 = arith.index_cast %345 : i32 to index
    %c5_243 = arith.constant 5 : index
    %347 = memref.load %arg1[%346, %c5_243] : memref<16x8xi32, #tpu.memory_space<smem>>
    %348 = arith.index_cast %347 : i32 to index
    %c0_244 = arith.constant 0 : index
    %349 = vector.load %arg2[%348, %c0_244] : memref<32x512xf32, #tpu.memory_space<vmem>>, vector<1x512xf32>
    %c5_245 = arith.constant 5 : index
    %c3_246 = arith.constant 3 : index
    %c0_247 = arith.constant 0 : index
    %350 = vector.load %arg7[%c5_245, %c3_246, %c0_247] : memref<8x8x512xf32, #tpu.memory_space<vmem>>, vector<1x1x512xf32>
    %351 = vector.shape_cast %350 : vector<1x1x512xf32> to vector<1x512xf32>
    %352 = vector.shape_cast %349 : vector<1x512xf32> to vector<1x1x512xf32>
    tpu.vector_store %arg7[%c5_245, %c3_246, %c0_247], %352 {strides = array<i32>} : memref<8x8x512xf32, #tpu.memory_space<vmem>>, vector<1x1x512xf32>,
    %c4_i32_248 = arith.constant 4 : i32
    %353 = arith.addi %0, %c4_i32_248 : i32
    %354 = arith.index_cast %353 : i32 to index
    %c5_249 = arith.constant 5 : index
    %355 = memref.load %arg1[%354, %c5_249] : memref<16x8xi32, #tpu.memory_space<smem>>
    %356 = arith.index_cast %355 : i32 to index
    %c0_250 = arith.constant 0 : index
    %357 = vector.load %arg2[%356, %c0_250] : memref<32x512xf32, #tpu.memory_space<vmem>>, vector<1x512xf32>
    %c5_251 = arith.constant 5 : index
    %c4_252 = arith.constant 4 : index
    %c0_253 = arith.constant 0 : index
    %358 = vector.load %arg7[%c5_251, %c4_252, %c0_253] : memref<8x8x512xf32, #tpu.memory_space<vmem>>, vector<1x1x512xf32>
    %359 = vector.shape_cast %358 : vector<1x1x512xf32> to vector<1x512xf32>
    %360 = vector.shape_cast %357 : vector<1x512xf32> to vector<1x1x512xf32>
    tpu.vector_store %arg7[%c5_251, %c4_252, %c0_253], %360 {strides = array<i32>} : memref<8x8x512xf32, #tpu.memory_space<vmem>>, vector<1x1x512xf32>,
    %c5_i32_254 = arith.constant 5 : i32
    %361 = arith.addi %0, %c5_i32_254 : i32
    %362 = arith.index_cast %361 : i32 to index
    %c5_255 = arith.constant 5 : index
    %363 = memref.load %arg1[%362, %c5_255] : memref<16x8xi32, #tpu.memory_space<smem>>
    %364 = arith.index_cast %363 : i32 to index
    %c0_256 = arith.constant 0 : index
    %365 = vector.load %arg2[%364, %c0_256] : memref<32x512xf32, #tpu.memory_space<vmem>>, vector<1x512xf32>
    %c5_257 = arith.constant 5 : index
    %c5_258 = arith.constant 5 : index
    %c0_259 = arith.constant 0 : index
    %366 = vector.load %arg7[%c5_257, %c5_258, %c0_259] : memref<8x8x512xf32, #tpu.memory_space<vmem>>, vector<1x1x512xf32>
    %367 = vector.shape_cast %366 : vector<1x1x512xf32> to vector<1x512xf32>
    %368 = vector.shape_cast %365 : vector<1x512xf32> to vector<1x1x512xf32>
    tpu.vector_store %arg7[%c5_257, %c5_258, %c0_259], %368 {strides = array<i32>} : memref<8x8x512xf32, #tpu.memory_space<vmem>>, vector<1x1x512xf32>,
    %c6_i32_260 = arith.constant 6 : i32
    %369 = arith.addi %0, %c6_i32_260 : i32
    %370 = arith.index_cast %369 : i32 to index
    %c5_261 = arith.constant 5 : index
    %371 = memref.load %arg1[%370, %c5_261] : memref<16x8xi32, #tpu.memory_space<smem>>
    %372 = arith.index_cast %371 : i32 to index
    %c0_262 = arith.constant 0 : index
    %373 = vector.load %arg2[%372, %c0_262] : memref<32x512xf32, #tpu.memory_space<vmem>>, vector<1x512xf32>
    %c5_263 = arith.constant 5 : index
    %c6_264 = arith.constant 6 : index
    %c0_265 = arith.constant 0 : index
    %374 = vector.load %arg7[%c5_263, %c6_264, %c0_265] : memref<8x8x512xf32, #tpu.memory_space<vmem>>, vector<1x1x512xf32>
    %375 = vector.shape_cast %374 : vector<1x1x512xf32> to vector<1x512xf32>
    %376 = vector.shape_cast %373 : vector<1x512xf32> to vector<1x1x512xf32>
    tpu.vector_store %arg7[%c5_263, %c6_264, %c0_265], %376 {strides = array<i32>} : memref<8x8x512xf32, #tpu.memory_space<vmem>>, vector<1x1x512xf32>,
    %c7_i32_266 = arith.constant 7 : i32
    %377 = arith.addi %0, %c7_i32_266 : i32
    %378 = arith.index_cast %377 : i32 to index
    %c5_267 = arith.constant 5 : index
    %379 = memref.load %arg1[%378, %c5_267] : memref<16x8xi32, #tpu.memory_space<smem>>
    %380 = arith.index_cast %379 : i32 to index
    %c0_268 = arith.constant 0 : index
    %381 = vector.load %arg2[%380, %c0_268] : memref<32x512xf32, #tpu.memory_space<vmem>>, vector<1x512xf32>
    %c5_269 = arith.constant 5 : index
    %c7_270 = arith.constant 7 : index
    %c0_271 = arith.constant 0 : index
    %382 = vector.load %arg7[%c5_269, %c7_270, %c0_271] : memref<8x8x512xf32, #tpu.memory_space<vmem>>, vector<1x1x512xf32>
    %383 = vector.shape_cast %382 : vector<1x1x512xf32> to vector<1x512xf32>
    %384 = vector.shape_cast %381 : vector<1x512xf32> to vector<1x1x512xf32>
    tpu.vector_store %arg7[%c5_269, %c7_270, %c0_271], %384 {strides = array<i32>} : memref<8x8x512xf32, #tpu.memory_space<vmem>>, vector<1x1x512xf32>,
    %c0_i32_272 = arith.constant 0 : i32
    %385 = arith.addi %0, %c0_i32_272 : i32
    %386 = arith.index_cast %385 : i32 to index
    %c6_273 = arith.constant 6 : index
    %387 = memref.load %arg1[%386, %c6_273] : memref<16x8xi32, #tpu.memory_space<smem>>
    %388 = arith.index_cast %387 : i32 to index
    %c0_274 = arith.constant 0 : index
    %389 = vector.load %arg2[%388, %c0_274] : memref<32x512xf32, #tpu.memory_space<vmem>>, vector<1x512xf32>
    %c6_275 = arith.constant 6 : index
    %c0_276 = arith.constant 0 : index
    %c0_277 = arith.constant 0 : index
    %390 = vector.load %arg7[%c6_275, %c0_276, %c0_277] : memref<8x8x512xf32, #tpu.memory_space<vmem>>, vector<1x1x512xf32>
    %391 = vector.shape_cast %390 : vector<1x1x512xf32> to vector<1x512xf32>
    %392 = vector.shape_cast %389 : vector<1x512xf32> to vector<1x1x512xf32>
    tpu.vector_store %arg7[%c6_275, %c0_276, %c0_277], %392 {strides = array<i32>} : memref<8x8x512xf32, #tpu.memory_space<vmem>>, vector<1x1x512xf32>,
    %c1_i32_278 = arith.constant 1 : i32
    %393 = arith.addi %0, %c1_i32_278 : i32
    %394 = arith.index_cast %393 : i32 to index
    %c6_279 = arith.constant 6 : index
    %395 = memref.load %arg1[%394, %c6_279] : memref<16x8xi32, #tpu.memory_space<smem>>
    %396 = arith.index_cast %395 : i32 to index
    %c0_280 = arith.constant 0 : index
    %397 = vector.load %arg2[%396, %c0_280] : memref<32x512xf32, #tpu.memory_space<vmem>>, vector<1x512xf32>
    %c6_281 = arith.constant 6 : index
    %c1_282 = arith.constant 1 : index
    %c0_283 = arith.constant 0 : index
    %398 = vector.load %arg7[%c6_281, %c1_282, %c0_283] : memref<8x8x512xf32, #tpu.memory_space<vmem>>, vector<1x1x512xf32>
    %399 = vector.shape_cast %398 : vector<1x1x512xf32> to vector<1x512xf32>
    %400 = vector.shape_cast %397 : vector<1x512xf32> to vector<1x1x512xf32>
    tpu.vector_store %arg7[%c6_281, %c1_282, %c0_283], %400 {strides = array<i32>} : memref<8x8x512xf32, #tpu.memory_space<vmem>>, vector<1x1x512xf32>,
    %c2_i32_284 = arith.constant 2 : i32
    %401 = arith.addi %0, %c2_i32_284 : i32
    %402 = arith.index_cast %401 : i32 to index
    %c6_285 = arith.constant 6 : index
    %403 = memref.load %arg1[%402, %c6_285] : memref<16x8xi32, #tpu.memory_space<smem>>
    %404 = arith.index_cast %403 : i32 to index
    %c0_286 = arith.constant 0 : index
    %405 = vector.load %arg2[%404, %c0_286] : memref<32x512xf32, #tpu.memory_space<vmem>>, vector<1x512xf32>
    %c6_287 = arith.constant 6 : index
    %c2_288 = arith.constant 2 : index
    %c0_289 = arith.constant 0 : index
    %406 = vector.load %arg7[%c6_287, %c2_288, %c0_289] : memref<8x8x512xf32, #tpu.memory_space<vmem>>, vector<1x1x512xf32>
    %407 = vector.shape_cast %406 : vector<1x1x512xf32> to vector<1x512xf32>
    %408 = vector.shape_cast %405 : vector<1x512xf32> to vector<1x1x512xf32>
    tpu.vector_store %arg7[%c6_287, %c2_288, %c0_289], %408 {strides = array<i32>} : memref<8x8x512xf32, #tpu.memory_space<vmem>>, vector<1x1x512xf32>,
    %c3_i32_290 = arith.constant 3 : i32
    %409 = arith.addi %0, %c3_i32_290 : i32
    %410 = arith.index_cast %409 : i32 to index
    %c6_291 = arith.constant 6 : index
    %411 = memref.load %arg1[%410, %c6_291] : memref<16x8xi32, #tpu.memory_space<smem>>
    %412 = arith.index_cast %411 : i32 to index
    %c0_292 = arith.constant 0 : index
    %413 = vector.load %arg2[%412, %c0_292] : memref<32x512xf32, #tpu.memory_space<vmem>>, vector<1x512xf32>
    %c6_293 = arith.constant 6 : index
    %c3_294 = arith.constant 3 : index
    %c0_295 = arith.constant 0 : index
    %414 = vector.load %arg7[%c6_293, %c3_294, %c0_295] : memref<8x8x512xf32, #tpu.memory_space<vmem>>, vector<1x1x512xf32>
    %415 = vector.shape_cast %414 : vector<1x1x512xf32> to vector<1x512xf32>
    %416 = vector.shape_cast %413 : vector<1x512xf32> to vector<1x1x512xf32>
    tpu.vector_store %arg7[%c6_293, %c3_294, %c0_295], %416 {strides = array<i32>} : memref<8x8x512xf32, #tpu.memory_space<vmem>>, vector<1x1x512xf32>,
    %c4_i32_296 = arith.constant 4 : i32
    %417 = arith.addi %0, %c4_i32_296 : i32
    %418 = arith.index_cast %417 : i32 to index
    %c6_297 = arith.constant 6 : index
    %419 = memref.load %arg1[%418, %c6_297] : memref<16x8xi32, #tpu.memory_space<smem>>
    %420 = arith.index_cast %419 : i32 to index
    %c0_298 = arith.constant 0 : index
    %421 = vector.load %arg2[%420, %c0_298] : memref<32x512xf32, #tpu.memory_space<vmem>>, vector<1x512xf32>
    %c6_299 = arith.constant 6 : index
    %c4_300 = arith.constant 4 : index
    %c0_301 = arith.constant 0 : index
    %422 = vector.load %arg7[%c6_299, %c4_300, %c0_301] : memref<8x8x512xf32, #tpu.memory_space<vmem>>, vector<1x1x512xf32>
    %423 = vector.shape_cast %422 : vector<1x1x512xf32> to vector<1x512xf32>
    %424 = vector.shape_cast %421 : vector<1x512xf32> to vector<1x1x512xf32>
    tpu.vector_store %arg7[%c6_299, %c4_300, %c0_301], %424 {strides = array<i32>} : memref<8x8x512xf32, #tpu.memory_space<vmem>>, vector<1x1x512xf32>,
    %c5_i32_302 = arith.constant 5 : i32
    %425 = arith.addi %0, %c5_i32_302 : i32
    %426 = arith.index_cast %425 : i32 to index
    %c6_303 = arith.constant 6 : index
    %427 = memref.load %arg1[%426, %c6_303] : memref<16x8xi32, #tpu.memory_space<smem>>
    %428 = arith.index_cast %427 : i32 to index
    %c0_304 = arith.constant 0 : index
    %429 = vector.load %arg2[%428, %c0_304] : memref<32x512xf32, #tpu.memory_space<vmem>>, vector<1x512xf32>
    %c6_305 = arith.constant 6 : index
    %c5_306 = arith.constant 5 : index
    %c0_307 = arith.constant 0 : index
    %430 = vector.load %arg7[%c6_305, %c5_306, %c0_307] : memref<8x8x512xf32, #tpu.memory_space<vmem>>, vector<1x1x512xf32>
    %431 = vector.shape_cast %430 : vector<1x1x512xf32> to vector<1x512xf32>
    %432 = vector.shape_cast %429 : vector<1x512xf32> to vector<1x1x512xf32>
    tpu.vector_store %arg7[%c6_305, %c5_306, %c0_307], %432 {strides = array<i32>} : memref<8x8x512xf32, #tpu.memory_space<vmem>>, vector<1x1x512xf32>,
    %c6_i32_308 = arith.constant 6 : i32
    %433 = arith.addi %0, %c6_i32_308 : i32
    %434 = arith.index_cast %433 : i32 to index
    %c6_309 = arith.constant 6 : index
    %435 = memref.load %arg1[%434, %c6_309] : memref<16x8xi32, #tpu.memory_space<smem>>
    %436 = arith.index_cast %435 : i32 to index
    %c0_310 = arith.constant 0 : index
    %437 = vector.load %arg2[%436, %c0_310] : memref<32x512xf32, #tpu.memory_space<vmem>>, vector<1x512xf32>
    %c6_311 = arith.constant 6 : index
    %c6_312 = arith.constant 6 : index
    %c0_313 = arith.constant 0 : index
    %438 = vector.load %arg7[%c6_311, %c6_312, %c0_313] : memref<8x8x512xf32, #tpu.memory_space<vmem>>, vector<1x1x512xf32>
    %439 = vector.shape_cast %438 : vector<1x1x512xf32> to vector<1x512xf32>
    %440 = vector.shape_cast %437 : vector<1x512xf32> to vector<1x1x512xf32>
    tpu.vector_store %arg7[%c6_311, %c6_312, %c0_313], %440 {strides = array<i32>} : memref<8x8x512xf32, #tpu.memory_space<vmem>>, vector<1x1x512xf32>,
    %c7_i32_314 = arith.constant 7 : i32
    %441 = arith.addi %0, %c7_i32_314 : i32
    %442 = arith.index_cast %441 : i32 to index
    %c6_315 = arith.constant 6 : index
    %443 = memref.load %arg1[%442, %c6_315] : memref<16x8xi32, #tpu.memory_space<smem>>
    %444 = arith.index_cast %443 : i32 to index
    %c0_316 = arith.constant 0 : index
    %445 = vector.load %arg2[%444, %c0_316] : memref<32x512xf32, #tpu.memory_space<vmem>>, vector<1x512xf32>
    %c6_317 = arith.constant 6 : index
    %c7_318 = arith.constant 7 : index
    %c0_319 = arith.constant 0 : index
    %446 = vector.load %arg7[%c6_317, %c7_318, %c0_319] : memref<8x8x512xf32, #tpu.memory_space<vmem>>, vector<1x1x512xf32>
    %447 = vector.shape_cast %446 : vector<1x1x512xf32> to vector<1x512xf32>
    %448 = vector.shape_cast %445 : vector<1x512xf32> to vector<1x1x512xf32>
    tpu.vector_store %arg7[%c6_317, %c7_318, %c0_319], %448 {strides = array<i32>} : memref<8x8x512xf32, #tpu.memory_space<vmem>>, vector<1x1x512xf32>,
    %c0_i32_320 = arith.constant 0 : i32
    %449 = arith.addi %0, %c0_i32_320 : i32
    %450 = arith.index_cast %449 : i32 to index
    %c7_321 = arith.constant 7 : index
    %451 = memref.load %arg1[%450, %c7_321] : memref<16x8xi32, #tpu.memory_space<smem>>
    %452 = arith.index_cast %451 : i32 to index
    %c0_322 = arith.constant 0 : index
    %453 = vector.load %arg2[%452, %c0_322] : memref<32x512xf32, #tpu.memory_space<vmem>>, vector<1x512xf32>
    %c7_323 = arith.constant 7 : index
    %c0_324 = arith.constant 0 : index
    %c0_325 = arith.constant 0 : index
    %454 = vector.load %arg7[%c7_323, %c0_324, %c0_325] : memref<8x8x512xf32, #tpu.memory_space<vmem>>, vector<1x1x512xf32>
    %455 = vector.shape_cast %454 : vector<1x1x512xf32> to vector<1x512xf32>
    %456 = vector.shape_cast %453 : vector<1x512xf32> to vector<1x1x512xf32>
    tpu.vector_store %arg7[%c7_323, %c0_324, %c0_325], %456 {strides = array<i32>} : memref<8x8x512xf32, #tpu.memory_space<vmem>>, vector<1x1x512xf32>,
    %c1_i32_326 = arith.constant 1 : i32
    %457 = arith.addi %0, %c1_i32_326 : i32
    %458 = arith.index_cast %457 : i32 to index
    %c7_327 = arith.constant 7 : index
    %459 = memref.load %arg1[%458, %c7_327] : memref<16x8xi32, #tpu.memory_space<smem>>
    %460 = arith.index_cast %459 : i32 to index
    %c0_328 = arith.constant 0 : index
    %461 = vector.load %arg2[%460, %c0_328] : memref<32x512xf32, #tpu.memory_space<vmem>>, vector<1x512xf32>
    %c7_329 = arith.constant 7 : index
    %c1_330 = arith.constant 1 : index
    %c0_331 = arith.constant 0 : index
    %462 = vector.load %arg7[%c7_329, %c1_330, %c0_331] : memref<8x8x512xf32, #tpu.memory_space<vmem>>, vector<1x1x512xf32>
    %463 = vector.shape_cast %462 : vector<1x1x512xf32> to vector<1x512xf32>
    %464 = vector.shape_cast %461 : vector<1x512xf32> to vector<1x1x512xf32>
    tpu.vector_store %arg7[%c7_329, %c1_330, %c0_331], %464 {strides = array<i32>} : memref<8x8x512xf32, #tpu.memory_space<vmem>>, vector<1x1x512xf32>,
    %c2_i32_332 = arith.constant 2 : i32
    %465 = arith.addi %0, %c2_i32_332 : i32
    %466 = arith.index_cast %465 : i32 to index
    %c7_333 = arith.constant 7 : index
    %467 = memref.load %arg1[%466, %c7_333] : memref<16x8xi32, #tpu.memory_space<smem>>
    %468 = arith.index_cast %467 : i32 to index
    %c0_334 = arith.constant 0 : index
    %469 = vector.load %arg2[%468, %c0_334] : memref<32x512xf32, #tpu.memory_space<vmem>>, vector<1x512xf32>
    %c7_335 = arith.constant 7 : index
    %c2_336 = arith.constant 2 : index
    %c0_337 = arith.constant 0 : index
    %470 = vector.load %arg7[%c7_335, %c2_336, %c0_337] : memref<8x8x512xf32, #tpu.memory_space<vmem>>, vector<1x1x512xf32>
    %471 = vector.shape_cast %470 : vector<1x1x512xf32> to vector<1x512xf32>
    %472 = vector.shape_cast %469 : vector<1x512xf32> to vector<1x1x512xf32>
    tpu.vector_store %arg7[%c7_335, %c2_336, %c0_337], %472 {strides = array<i32>} : memref<8x8x512xf32, #tpu.memory_space<vmem>>, vector<1x1x512xf32>,
    %c3_i32_338 = arith.constant 3 : i32
    %473 = arith.addi %0, %c3_i32_338 : i32
    %474 = arith.index_cast %473 : i32 to index
    %c7_339 = arith.constant 7 : index
    %475 = memref.load %arg1[%474, %c7_339] : memref<16x8xi32, #tpu.memory_space<smem>>
    %476 = arith.index_cast %475 : i32 to index
    %c0_340 = arith.constant 0 : index
    %477 = vector.load %arg2[%476, %c0_340] : memref<32x512xf32, #tpu.memory_space<vmem>>, vector<1x512xf32>
    %c7_341 = arith.constant 7 : index
    %c3_342 = arith.constant 3 : index
    %c0_343 = arith.constant 0 : index
    %478 = vector.load %arg7[%c7_341, %c3_342, %c0_343] : memref<8x8x512xf32, #tpu.memory_space<vmem>>, vector<1x1x512xf32>
    %479 = vector.shape_cast %478 : vector<1x1x512xf32> to vector<1x512xf32>
    %480 = vector.shape_cast %477 : vector<1x512xf32> to vector<1x1x512xf32>
    tpu.vector_store %arg7[%c7_341, %c3_342, %c0_343], %480 {strides = array<i32>} : memref<8x8x512xf32, #tpu.memory_space<vmem>>, vector<1x1x512xf32>,
    %c4_i32_344 = arith.constant 4 : i32
    %481 = arith.addi %0, %c4_i32_344 : i32
    %482 = arith.index_cast %481 : i32 to index
    %c7_345 = arith.constant 7 : index
    %483 = memref.load %arg1[%482, %c7_345] : memref<16x8xi32, #tpu.memory_space<smem>>
    %484 = arith.index_cast %483 : i32 to index
    %c0_346 = arith.constant 0 : index
    %485 = vector.load %arg2[%484, %c0_346] : memref<32x512xf32, #tpu.memory_space<vmem>>, vector<1x512xf32>
    %c7_347 = arith.constant 7 : index
    %c4_348 = arith.constant 4 : index
    %c0_349 = arith.constant 0 : index
    %486 = vector.load %arg7[%c7_347, %c4_348, %c0_349] : memref<8x8x512xf32, #tpu.memory_space<vmem>>, vector<1x1x512xf32>
    %487 = vector.shape_cast %486 : vector<1x1x512xf32> to vector<1x512xf32>
    %488 = vector.shape_cast %485 : vector<1x512xf32> to vector<1x1x512xf32>
    tpu.vector_store %arg7[%c7_347, %c4_348, %c0_349], %488 {strides = array<i32>} : memref<8x8x512xf32, #tpu.memory_space<vmem>>, vector<1x1x512xf32>,
    %c5_i32_350 = arith.constant 5 : i32
    %489 = arith.addi %0, %c5_i32_350 : i32
    %490 = arith.index_cast %489 : i32 to index
    %c7_351 = arith.constant 7 : index
    %491 = memref.load %arg1[%490, %c7_351] : memref<16x8xi32, #tpu.memory_space<smem>>
    %492 = arith.index_cast %491 : i32 to index
    %c0_352 = arith.constant 0 : index
    %493 = vector.load %arg2[%492, %c0_352] : memref<32x512xf32, #tpu.memory_space<vmem>>, vector<1x512xf32>
    %c7_353 = arith.constant 7 : index
    %c5_354 = arith.constant 5 : index
    %c0_355 = arith.constant 0 : index
    %494 = vector.load %arg7[%c7_353, %c5_354, %c0_355] : memref<8x8x512xf32, #tpu.memory_space<vmem>>, vector<1x1x512xf32>
    %495 = vector.shape_cast %494 : vector<1x1x512xf32> to vector<1x512xf32>
    %496 = vector.shape_cast %493 : vector<1x512xf32> to vector<1x1x512xf32>
    tpu.vector_store %arg7[%c7_353, %c5_354, %c0_355], %496 {strides = array<i32>} : memref<8x8x512xf32, #tpu.memory_space<vmem>>, vector<1x1x512xf32>,
    %c6_i32_356 = arith.constant 6 : i32
    %497 = arith.addi %0, %c6_i32_356 : i32
    %498 = arith.index_cast %497 : i32 to index
    %c7_357 = arith.constant 7 : index
    %499 = memref.load %arg1[%498, %c7_357] : memref<16x8xi32, #tpu.memory_space<smem>>
    %500 = arith.index_cast %499 : i32 to index
    %c0_358 = arith.constant 0 : index
    %501 = vector.load %arg2[%500, %c0_358] : memref<32x512xf32, #tpu.memory_space<vmem>>, vector<1x512xf32>
    %c7_359 = arith.constant 7 : index
    %c6_360 = arith.constant 6 : index
    %c0_361 = arith.constant 0 : index
    %502 = vector.load %arg7[%c7_359, %c6_360, %c0_361] : memref<8x8x512xf32, #tpu.memory_space<vmem>>, vector<1x1x512xf32>
    %503 = vector.shape_cast %502 : vector<1x1x512xf32> to vector<1x512xf32>
    %504 = vector.shape_cast %501 : vector<1x512xf32> to vector<1x1x512xf32>
    tpu.vector_store %arg7[%c7_359, %c6_360, %c0_361], %504 {strides = array<i32>} : memref<8x8x512xf32, #tpu.memory_space<vmem>>, vector<1x1x512xf32>,
    %c7_i32_362 = arith.constant 7 : i32
    %505 = arith.addi %0, %c7_i32_362 : i32
    %506 = arith.index_cast %505 : i32 to index
    %c7_363 = arith.constant 7 : index
    %507 = memref.load %arg1[%506, %c7_363] : memref<16x8xi32, #tpu.memory_space<smem>>
    %508 = arith.index_cast %507 : i32 to index
    %c0_364 = arith.constant 0 : index
    %509 = vector.load %arg2[%508, %c0_364] : memref<32x512xf32, #tpu.memory_space<vmem>>, vector<1x512xf32>
    %c7_365 = arith.constant 7 : index
    %c7_366 = arith.constant 7 : index
    %c0_367 = arith.constant 0 : index
    %510 = vector.load %arg7[%c7_365, %c7_366, %c0_367] : memref<8x8x512xf32, #tpu.memory_space<vmem>>, vector<1x1x512xf32>
    %511 = vector.shape_cast %510 : vector<1x1x512xf32> to vector<1x512xf32>
    %512 = vector.shape_cast %509 : vector<1x512xf32> to vector<1x1x512xf32>
    tpu.vector_store %arg7[%c7_365, %c7_366, %c0_367], %512 {strides = array<i32>} : memref<8x8x512xf32, #tpu.memory_space<vmem>>, vector<1x1x512xf32>,
    %cst = arith.constant 0.000000e+00 : f32
    %513 = vector.broadcast %cst : f32 to vector<8x128xf32>
    %cst_368 = arith.constant 0.000000e+00 : f32
    %514 = vector.broadcast %cst_368 : f32 to vector<8x128xf32>
    %c0_369 = arith.constant 0 : index
    %c0_370 = arith.constant 0 : index
    %c0_371 = arith.constant 0 : index
    %515 = vector.load %arg7[%c0_369, %c0_370, %c0_371] : memref<8x8x512xf32, #tpu.memory_space<vmem>>, vector<1x8x512xf32>
    %516 = vector.shape_cast %515 : vector<1x8x512xf32> to vector<8x512xf32>
    %c0_372 = arith.constant 0 : index
    %c0_373 = arith.constant 0 : index
    %517 = vector.load %arg3[%c0_372, %c0_373] : memref<128x512xf32, #tpu.memory_space<vmem>>, vector<128x512xf32>
    %cst_374 = arith.constant dense<0.000000e+00> : vector<8x512xf32>
    %518 = tpu.matmul %513, %517, %cst_374 {dimension_numbers = #tpu.dot_dimension_numbers<[1], [0], [0], [1], [0, 0, 1, 1], [], []>} : vector<8x128xf32>, vector<128x512xf32>, vector<8x512xf32> -> vector<8x512xf32>
    %519 = arith.addf %516, %518 : vector<8x512xf32>
    %520 = vector.extract_strided_slice %519 {offsets = [0, 0], sizes = [8, 384], strides = [1, 1]} : vector<8x512xf32> to vector<8x384xf32>
    %521 = arith.negf %520 : vector<8x384xf32>
    %522 = math.exp %521 : vector<8x384xf32>
    %cst_375 = arith.constant 1.000000e+00 : f32
    %523 = vector.broadcast %cst_375 : f32 to vector<8x384xf32>
    %524 = arith.addf %523, %522 : vector<8x384xf32>
    %525 = arith.divf %523, %524 : vector<8x384xf32>
    %526 = vector.extract_strided_slice %519 {offsets = [0, 384], sizes = [8, 128], strides = [1, 1]} : vector<8x512xf32> to vector<8x128xf32>
    %527 = math.tanh %526 : vector<8x128xf32>
    %528 = vector.extract_strided_slice %525 {offsets = [0, 0], sizes = [8, 128], strides = [1, 1]} : vector<8x384xf32> to vector<8x128xf32>
    %529 = vector.extract_strided_slice %525 {offsets = [0, 128], sizes = [8, 128], strides = [1, 1]} : vector<8x384xf32> to vector<8x128xf32>
    %530 = vector.extract_strided_slice %525 {offsets = [0, 256], sizes = [8, 128], strides = [1, 1]} : vector<8x384xf32> to vector<8x128xf32>
    %531 = arith.mulf %529, %514 : vector<8x128xf32>
    %532 = arith.mulf %528, %527 : vector<8x128xf32>
    %533 = arith.addf %531, %532 : vector<8x128xf32>
    %534 = math.tanh %533 : vector<8x128xf32>
    %535 = arith.mulf %530, %534 : vector<8x128xf32>
    %c1_376 = arith.constant 1 : index
    %c0_377 = arith.constant 0 : index
    %c0_378 = arith.constant 0 : index
    %536 = vector.load %arg7[%c1_376, %c0_377, %c0_378] : memref<8x8x512xf32, #tpu.memory_space<vmem>>, vector<1x8x512xf32>
    %537 = vector.shape_cast %536 : vector<1x8x512xf32> to vector<8x512xf32>
    %c0_379 = arith.constant 0 : index
    %c0_380 = arith.constant 0 : index
    %538 = vector.load %arg3[%c0_379, %c0_380] : memref<128x512xf32, #tpu.memory_space<vmem>>, vector<128x512xf32>
    %cst_381 = arith.constant dense<0.000000e+00> : vector<8x512xf32>
    %539 = tpu.matmul %535, %538, %cst_381 {dimension_numbers = #tpu.dot_dimension_numbers<[1], [0], [0], [1], [0, 0, 1, 1], [], []>} : vector<8x128xf32>, vector<128x512xf32>, vector<8x512xf32> -> vector<8x512xf32>
    %540 = arith.addf %537, %539 : vector<8x512xf32>
    %541 = vector.extract_strided_slice %540 {offsets = [0, 0], sizes = [8, 384], strides = [1, 1]} : vector<8x512xf32> to vector<8x384xf32>
    %542 = arith.negf %541 : vector<8x384xf32>
    %543 = math.exp %542 : vector<8x384xf32>
    %cst_382 = arith.constant 1.000000e+00 : f32
    %544 = vector.broadcast %cst_382 : f32 to vector<8x384xf32>
    %545 = arith.addf %544, %543 : vector<8x384xf32>
    %546 = arith.divf %544, %545 : vector<8x384xf32>
    %547 = vector.extract_strided_slice %540 {offsets = [0, 384], sizes = [8, 128], strides = [1, 1]} : vector<8x512xf32> to vector<8x128xf32>
    %548 = math.tanh %547 : vector<8x128xf32>
    %549 = vector.extract_strided_slice %546 {offsets = [0, 0], sizes = [8, 128], strides = [1, 1]} : vector<8x384xf32> to vector<8x128xf32>
    %550 = vector.extract_strided_slice %546 {offsets = [0, 128], sizes = [8, 128], strides = [1, 1]} : vector<8x384xf32> to vector<8x128xf32>
    %551 = vector.extract_strided_slice %546 {offsets = [0, 256], sizes = [8, 128], strides = [1, 1]} : vector<8x384xf32> to vector<8x128xf32>
    %552 = arith.mulf %550, %533 : vector<8x128xf32>
    %553 = arith.mulf %549, %548 : vector<8x128xf32>
    %554 = arith.addf %552, %553 : vector<8x128xf32>
    %555 = math.tanh %554 : vector<8x128xf32>
    %556 = arith.mulf %551, %555 : vector<8x128xf32>
    %c2_383 = arith.constant 2 : index
    %c0_384 = arith.constant 0 : index
    %c0_385 = arith.constant 0 : index
    %557 = vector.load %arg7[%c2_383, %c0_384, %c0_385] : memref<8x8x512xf32, #tpu.memory_space<vmem>>, vector<1x8x512xf32>
    %558 = vector.shape_cast %557 : vector<1x8x512xf32> to vector<8x512xf32>
    %c0_386 = arith.constant 0 : index
    %c0_387 = arith.constant 0 : index
    %559 = vector.load %arg3[%c0_386, %c0_387] : memref<128x512xf32, #tpu.memory_space<vmem>>, vector<128x512xf32>
    %cst_388 = arith.constant dense<0.000000e+00> : vector<8x512xf32>
    %560 = tpu.matmul %556, %559, %cst_388 {dimension_numbers = #tpu.dot_dimension_numbers<[1], [0], [0], [1], [0, 0, 1, 1], [], []>} : vector<8x128xf32>, vector<128x512xf32>, vector<8x512xf32> -> vector<8x512xf32>
    %561 = arith.addf %558, %560 : vector<8x512xf32>
    %562 = vector.extract_strided_slice %561 {offsets = [0, 0], sizes = [8, 384], strides = [1, 1]} : vector<8x512xf32> to vector<8x384xf32>
    %563 = arith.negf %562 : vector<8x384xf32>
    %564 = math.exp %563 : vector<8x384xf32>
    %cst_389 = arith.constant 1.000000e+00 : f32
    %565 = vector.broadcast %cst_389 : f32 to vector<8x384xf32>
    %566 = arith.addf %565, %564 : vector<8x384xf32>
    %567 = arith.divf %565, %566 : vector<8x384xf32>
    %568 = vector.extract_strided_slice %561 {offsets = [0, 384], sizes = [8, 128], strides = [1, 1]} : vector<8x512xf32> to vector<8x128xf32>
    %569 = math.tanh %568 : vector<8x128xf32>
    %570 = vector.extract_strided_slice %567 {offsets = [0, 0], sizes = [8, 128], strides = [1, 1]} : vector<8x384xf32> to vector<8x128xf32>
    %571 = vector.extract_strided_slice %567 {offsets = [0, 128], sizes = [8, 128], strides = [1, 1]} : vector<8x384xf32> to vector<8x128xf32>
    %572 = vector.extract_strided_slice %567 {offsets = [0, 256], sizes = [8, 128], strides = [1, 1]} : vector<8x384xf32> to vector<8x128xf32>
    %573 = arith.mulf %571, %554 : vector<8x128xf32>
    %574 = arith.mulf %570, %569 : vector<8x128xf32>
    %575 = arith.addf %573, %574 : vector<8x128xf32>
    %576 = math.tanh %575 : vector<8x128xf32>
    %577 = arith.mulf %572, %576 : vector<8x128xf32>
    %c3_390 = arith.constant 3 : index
    %c0_391 = arith.constant 0 : index
    %c0_392 = arith.constant 0 : index
    %578 = vector.load %arg7[%c3_390, %c0_391, %c0_392] : memref<8x8x512xf32, #tpu.memory_space<vmem>>, vector<1x8x512xf32>
    %579 = vector.shape_cast %578 : vector<1x8x512xf32> to vector<8x512xf32>
    %c0_393 = arith.constant 0 : index
    %c0_394 = arith.constant 0 : index
    %580 = vector.load %arg3[%c0_393, %c0_394] : memref<128x512xf32, #tpu.memory_space<vmem>>, vector<128x512xf32>
    %cst_395 = arith.constant dense<0.000000e+00> : vector<8x512xf32>
    %581 = tpu.matmul %577, %580, %cst_395 {dimension_numbers = #tpu.dot_dimension_numbers<[1], [0], [0], [1], [0, 0, 1, 1], [], []>} : vector<8x128xf32>, vector<128x512xf32>, vector<8x512xf32> -> vector<8x512xf32>
    %582 = arith.addf %579, %581 : vector<8x512xf32>
    %583 = vector.extract_strided_slice %582 {offsets = [0, 0], sizes = [8, 384], strides = [1, 1]} : vector<8x512xf32> to vector<8x384xf32>
    %584 = arith.negf %583 : vector<8x384xf32>
    %585 = math.exp %584 : vector<8x384xf32>
    %cst_396 = arith.constant 1.000000e+00 : f32
    %586 = vector.broadcast %cst_396 : f32 to vector<8x384xf32>
    %587 = arith.addf %586, %585 : vector<8x384xf32>
    %588 = arith.divf %586, %587 : vector<8x384xf32>
    %589 = vector.extract_strided_slice %582 {offsets = [0, 384], sizes = [8, 128], strides = [1, 1]} : vector<8x512xf32> to vector<8x128xf32>
    %590 = math.tanh %589 : vector<8x128xf32>
    %591 = vector.extract_strided_slice %588 {offsets = [0, 0], sizes = [8, 128], strides = [1, 1]} : vector<8x384xf32> to vector<8x128xf32>
    %592 = vector.extract_strided_slice %588 {offsets = [0, 128], sizes = [8, 128], strides = [1, 1]} : vector<8x384xf32> to vector<8x128xf32>
    %593 = vector.extract_strided_slice %588 {offsets = [0, 256], sizes = [8, 128], strides = [1, 1]} : vector<8x384xf32> to vector<8x128xf32>
    %594 = arith.mulf %592, %575 : vector<8x128xf32>
    %595 = arith.mulf %591, %590 : vector<8x128xf32>
    %596 = arith.addf %594, %595 : vector<8x128xf32>
    %597 = math.tanh %596 : vector<8x128xf32>
    %598 = arith.mulf %593, %597 : vector<8x128xf32>
    %c4_397 = arith.constant 4 : index
    %c0_398 = arith.constant 0 : index
    %c0_399 = arith.constant 0 : index
    %599 = vector.load %arg7[%c4_397, %c0_398, %c0_399] : memref<8x8x512xf32, #tpu.memory_space<vmem>>, vector<1x8x512xf32>
    %600 = vector.shape_cast %599 : vector<1x8x512xf32> to vector<8x512xf32>
    %c0_400 = arith.constant 0 : index
    %c0_401 = arith.constant 0 : index
    %601 = vector.load %arg3[%c0_400, %c0_401] : memref<128x512xf32, #tpu.memory_space<vmem>>, vector<128x512xf32>
    %cst_402 = arith.constant dense<0.000000e+00> : vector<8x512xf32>
    %602 = tpu.matmul %598, %601, %cst_402 {dimension_numbers = #tpu.dot_dimension_numbers<[1], [0], [0], [1], [0, 0, 1, 1], [], []>} : vector<8x128xf32>, vector<128x512xf32>, vector<8x512xf32> -> vector<8x512xf32>
    %603 = arith.addf %600, %602 : vector<8x512xf32>
    %604 = vector.extract_strided_slice %603 {offsets = [0, 0], sizes = [8, 384], strides = [1, 1]} : vector<8x512xf32> to vector<8x384xf32>
    %605 = arith.negf %604 : vector<8x384xf32>
    %606 = math.exp %605 : vector<8x384xf32>
    %cst_403 = arith.constant 1.000000e+00 : f32
    %607 = vector.broadcast %cst_403 : f32 to vector<8x384xf32>
    %608 = arith.addf %607, %606 : vector<8x384xf32>
    %609 = arith.divf %607, %608 : vector<8x384xf32>
    %610 = vector.extract_strided_slice %603 {offsets = [0, 384], sizes = [8, 128], strides = [1, 1]} : vector<8x512xf32> to vector<8x128xf32>
    %611 = math.tanh %610 : vector<8x128xf32>
    %612 = vector.extract_strided_slice %609 {offsets = [0, 0], sizes = [8, 128], strides = [1, 1]} : vector<8x384xf32> to vector<8x128xf32>
    %613 = vector.extract_strided_slice %609 {offsets = [0, 128], sizes = [8, 128], strides = [1, 1]} : vector<8x384xf32> to vector<8x128xf32>
    %614 = vector.extract_strided_slice %609 {offsets = [0, 256], sizes = [8, 128], strides = [1, 1]} : vector<8x384xf32> to vector<8x128xf32>
    %615 = arith.mulf %613, %596 : vector<8x128xf32>
    %616 = arith.mulf %612, %611 : vector<8x128xf32>
    %617 = arith.addf %615, %616 : vector<8x128xf32>
    %618 = math.tanh %617 : vector<8x128xf32>
    %619 = arith.mulf %614, %618 : vector<8x128xf32>
    %c5_404 = arith.constant 5 : index
    %c0_405 = arith.constant 0 : index
    %c0_406 = arith.constant 0 : index
    %620 = vector.load %arg7[%c5_404, %c0_405, %c0_406] : memref<8x8x512xf32, #tpu.memory_space<vmem>>, vector<1x8x512xf32>
    %621 = vector.shape_cast %620 : vector<1x8x512xf32> to vector<8x512xf32>
    %c0_407 = arith.constant 0 : index
    %c0_408 = arith.constant 0 : index
    %622 = vector.load %arg3[%c0_407, %c0_408] : memref<128x512xf32, #tpu.memory_space<vmem>>, vector<128x512xf32>
    %cst_409 = arith.constant dense<0.000000e+00> : vector<8x512xf32>
    %623 = tpu.matmul %619, %622, %cst_409 {dimension_numbers = #tpu.dot_dimension_numbers<[1], [0], [0], [1], [0, 0, 1, 1], [], []>} : vector<8x128xf32>, vector<128x512xf32>, vector<8x512xf32> -> vector<8x512xf32>
    %624 = arith.addf %621, %623 : vector<8x512xf32>
    %625 = vector.extract_strided_slice %624 {offsets = [0, 0], sizes = [8, 384], strides = [1, 1]} : vector<8x512xf32> to vector<8x384xf32>
    %626 = arith.negf %625 : vector<8x384xf32>
    %627 = math.exp %626 : vector<8x384xf32>
    %cst_410 = arith.constant 1.000000e+00 : f32
    %628 = vector.broadcast %cst_410 : f32 to vector<8x384xf32>
    %629 = arith.addf %628, %627 : vector<8x384xf32>
    %630 = arith.divf %628, %629 : vector<8x384xf32>
    %631 = vector.extract_strided_slice %624 {offsets = [0, 384], sizes = [8, 128], strides = [1, 1]} : vector<8x512xf32> to vector<8x128xf32>
    %632 = math.tanh %631 : vector<8x128xf32>
    %633 = vector.extract_strided_slice %630 {offsets = [0, 0], sizes = [8, 128], strides = [1, 1]} : vector<8x384xf32> to vector<8x128xf32>
    %634 = vector.extract_strided_slice %630 {offsets = [0, 128], sizes = [8, 128], strides = [1, 1]} : vector<8x384xf32> to vector<8x128xf32>
    %635 = vector.extract_strided_slice %630 {offsets = [0, 256], sizes = [8, 128], strides = [1, 1]} : vector<8x384xf32> to vector<8x128xf32>
    %636 = arith.mulf %634, %617 : vector<8x128xf32>
    %637 = arith.mulf %633, %632 : vector<8x128xf32>
    %638 = arith.addf %636, %637 : vector<8x128xf32>
    %639 = math.tanh %638 : vector<8x128xf32>
    %640 = arith.mulf %635, %639 : vector<8x128xf32>
    %c6_411 = arith.constant 6 : index
    %c0_412 = arith.constant 0 : index
    %c0_413 = arith.constant 0 : index
    %641 = vector.load %arg7[%c6_411, %c0_412, %c0_413] : memref<8x8x512xf32, #tpu.memory_space<vmem>>, vector<1x8x512xf32>
    %642 = vector.shape_cast %641 : vector<1x8x512xf32> to vector<8x512xf32>
    %c0_414 = arith.constant 0 : index
    %c0_415 = arith.constant 0 : index
    %643 = vector.load %arg3[%c0_414, %c0_415] : memref<128x512xf32, #tpu.memory_space<vmem>>, vector<128x512xf32>
    %cst_416 = arith.constant dense<0.000000e+00> : vector<8x512xf32>
    %644 = tpu.matmul %640, %643, %cst_416 {dimension_numbers = #tpu.dot_dimension_numbers<[1], [0], [0], [1], [0, 0, 1, 1], [], []>} : vector<8x128xf32>, vector<128x512xf32>, vector<8x512xf32> -> vector<8x512xf32>
    %645 = arith.addf %642, %644 : vector<8x512xf32>
    %646 = vector.extract_strided_slice %645 {offsets = [0, 0], sizes = [8, 384], strides = [1, 1]} : vector<8x512xf32> to vector<8x384xf32>
    %647 = arith.negf %646 : vector<8x384xf32>
    %648 = math.exp %647 : vector<8x384xf32>
    %cst_417 = arith.constant 1.000000e+00 : f32
    %649 = vector.broadcast %cst_417 : f32 to vector<8x384xf32>
    %650 = arith.addf %649, %648 : vector<8x384xf32>
    %651 = arith.divf %649, %650 : vector<8x384xf32>
    %652 = vector.extract_strided_slice %645 {offsets = [0, 384], sizes = [8, 128], strides = [1, 1]} : vector<8x512xf32> to vector<8x128xf32>
    %653 = math.tanh %652 : vector<8x128xf32>
    %654 = vector.extract_strided_slice %651 {offsets = [0, 0], sizes = [8, 128], strides = [1, 1]} : vector<8x384xf32> to vector<8x128xf32>
    %655 = vector.extract_strided_slice %651 {offsets = [0, 128], sizes = [8, 128], strides = [1, 1]} : vector<8x384xf32> to vector<8x128xf32>
    %656 = vector.extract_strided_slice %651 {offsets = [0, 256], sizes = [8, 128], strides = [1, 1]} : vector<8x384xf32> to vector<8x128xf32>
    %657 = arith.mulf %655, %638 : vector<8x128xf32>
    %658 = arith.mulf %654, %653 : vector<8x128xf32>
    %659 = arith.addf %657, %658 : vector<8x128xf32>
    %660 = math.tanh %659 : vector<8x128xf32>
    %661 = arith.mulf %656, %660 : vector<8x128xf32>
    %c7_418 = arith.constant 7 : index
    %c0_419 = arith.constant 0 : index
    %c0_420 = arith.constant 0 : index
    %662 = vector.load %arg7[%c7_418, %c0_419, %c0_420] : memref<8x8x512xf32, #tpu.memory_space<vmem>>, vector<1x8x512xf32>
    %663 = vector.shape_cast %662 : vector<1x8x512xf32> to vector<8x512xf32>
    %c0_421 = arith.constant 0 : index
    %c0_422 = arith.constant 0 : index
    %664 = vector.load %arg3[%c0_421, %c0_422] : memref<128x512xf32, #tpu.memory_space<vmem>>, vector<128x512xf32>
    %cst_423 = arith.constant dense<0.000000e+00> : vector<8x512xf32>
    %665 = tpu.matmul %661, %664, %cst_423 {dimension_numbers = #tpu.dot_dimension_numbers<[1], [0], [0], [1], [0, 0, 1, 1], [], []>} : vector<8x128xf32>, vector<128x512xf32>, vector<8x512xf32> -> vector<8x512xf32>
    %666 = arith.addf %663, %665 : vector<8x512xf32>
    %667 = vector.extract_strided_slice %666 {offsets = [0, 0], sizes = [8, 384], strides = [1, 1]} : vector<8x512xf32> to vector<8x384xf32>
    %668 = arith.negf %667 : vector<8x384xf32>
    %669 = math.exp %668 : vector<8x384xf32>
    %cst_424 = arith.constant 1.000000e+00 : f32
    %670 = vector.broadcast %cst_424 : f32 to vector<8x384xf32>
    %671 = arith.addf %670, %669 : vector<8x384xf32>
    %672 = arith.divf %670, %671 : vector<8x384xf32>
    %673 = vector.extract_strided_slice %666 {offsets = [0, 384], sizes = [8, 128], strides = [1, 1]} : vector<8x512xf32> to vector<8x128xf32>
    %674 = math.tanh %673 : vector<8x128xf32>
    %675 = vector.extract_strided_slice %672 {offsets = [0, 0], sizes = [8, 128], strides = [1, 1]} : vector<8x384xf32> to vector<8x128xf32>
    %676 = vector.extract_strided_slice %672 {offsets = [0, 128], sizes = [8, 128], strides = [1, 1]} : vector<8x384xf32> to vector<8x128xf32>
    %677 = vector.extract_strided_slice %672 {offsets = [0, 256], sizes = [8, 128], strides = [1, 1]} : vector<8x384xf32> to vector<8x128xf32>
    %678 = arith.mulf %676, %659 : vector<8x128xf32>
    %679 = arith.mulf %675, %674 : vector<8x128xf32>
    %680 = arith.addf %678, %679 : vector<8x128xf32>
    %681 = math.tanh %680 : vector<8x128xf32>
    %682 = arith.mulf %677, %681 : vector<8x128xf32>
    %c0_425 = arith.constant 0 : index
    %c0_426 = arith.constant 0 : index
    %683 = vector.load %arg4[%c0_425, %c0_426] : memref<128x128xf32, #tpu.memory_space<vmem>>, vector<128x128xf32>
    %cst_427 = arith.constant dense<0.000000e+00> : vector<8x128xf32>
    %684 = tpu.matmul %682, %683, %cst_427 {dimension_numbers = #tpu.dot_dimension_numbers<[1], [0], [0], [1], [0, 0, 1, 1], [], []>} : vector<8x128xf32>, vector<128x128xf32>, vector<8x128xf32> -> vector<8x128xf32>
    %c0_428 = arith.constant 0 : index
    %c0_429 = arith.constant 0 : index
    %685 = vector.load %arg5[%c0_428, %c0_429] : memref<1x128xf32, #tpu.memory_space<vmem>>, vector<1x128xf32>
    %686 = vector.broadcast %685 : vector<1x128xf32> to vector<8x128xf32>
    %687 = arith.addf %684, %686 : vector<8x128xf32>
    %688 = arith.negf %687 : vector<8x128xf32>
    %689 = math.exp %688 : vector<8x128xf32>
    %cst_430 = arith.constant 1.000000e+00 : f32
    %690 = vector.broadcast %cst_430 : f32 to vector<8x128xf32>
    %691 = arith.addf %690, %689 : vector<8x128xf32>
    %692 = arith.divf %690, %691 : vector<8x128xf32>
    %c0_431 = arith.constant 0 : index
    %c0_432 = arith.constant 0 : index
    %693 = vector.load %arg6[%c0_431, %c0_432] : memref<8x128xf32, #tpu.memory_space<vmem>>, vector<8x128xf32>
    tpu.vector_store %arg6[%c0_431, %c0_432], %692 {strides = array<i32>} : memref<8x128xf32, #tpu.memory_space<vmem>>, vector<8x128xf32>,
    return
  }
  func.func @transform_0(%arg0: i32, %arg1: memref<16x8xi32, #tpu.memory_space<smem>>) -> (i32, i32) {
    %c0_i32 = arith.constant 0 : i32
    %c0_i32_0 = arith.constant 0 : i32
    %c0_i32_1 = arith.constant 0 : i32
    return %c0_i32, %c0_i32_0 : i32, i32
  }
  func.func @transform_1(%arg0: i32, %arg1: memref<16x8xi32, #tpu.memory_space<smem>>) -> (i32, i32) {
    %c0_i32 = arith.constant 0 : i32
    %c0_i32_0 = arith.constant 0 : i32
    %c0_i32_1 = arith.constant 0 : i32
    return %c0_i32, %c0_i32_0 : i32, i32
  }
  func.func @transform_2(%arg0: i32, %arg1: memref<16x8xi32, #tpu.memory_space<smem>>) -> (i32, i32) {
    %c0_i32 = arith.constant 0 : i32
    %c0_i32_0 = arith.constant 0 : i32
    %c0_i32_1 = arith.constant 0 : i32
    return %c0_i32, %c0_i32_0 : i32, i32
  }
  func.func @transform_3(%arg0: i32, %arg1: memref<16x8xi32, #tpu.memory_space<smem>>) -> (i32, i32) {
    %c0_i32 = arith.constant 0 : i32
    %c0_i32_0 = arith.constant 0 : i32
    %c0_i32_1 = arith.constant 0 : i32
    return %c0_i32, %c0_i32_0 : i32, i32
  }
  func.func @transform_4(%arg0: i32, %arg1: memref<16x8xi32, #tpu.memory_space<smem>>) -> (i32, i32) {
    %c0_i32 = arith.constant 0 : i32
    %c0_i32_0 = arith.constant 0 : i32
    return %arg0, %c0_i32 : i32, i32
  }
}

</mosaic_0001>

<llo_original>
// kernel: tpu_custom_call.1
$region0: #{tpu_custom_call.1}
  #allocation0 [shape = 'u32[]', space=smem, size = 0x4, offset = 0x4, fixed_abs, tag = 'smem constant byte address 0x4 - core index']
  #allocation1 [shape = 'u32[72,128]{1,0:T(1,128)}', space=vmem, size = 0x9000, scoped, tag = 'internal scratch']
  #allocation2 [shape = 'f32[8,8,512]{2,1,0:T(8,128)}', space=vmem, size = 0x20000, scoped, tag = 'scratch operand']
  #allocation3 [shape = 's32[1]{0}', space=sflag, size = 0x4, scoped, tag = 'scoped memory for tpu_custom_call.1']
  #allocation4 [shape = 'u8[8192]{0}', space=smem, size = 0x2000, scoped, tag = 'prefetched SMEM operand 0']
  %s0 = inlined_call_operand.vmem [shape: s32[16,8], index: 0, kind: input, shape index: {}]
  %s1 = inlined_call_operand.hbm [shape: f32[32,512], index: 1, kind: input, shape index: {}]
  %s2 = inlined_call_operand.hbm [shape: f32[128,512], index: 2, kind: input, shape index: {}]
  %s3 = inlined_call_operand.hbm [shape: f32[128,128], index: 3, kind: input, shape index: {}]
  %s4 = inlined_call_operand.vmem [shape: f32[1,128], index: 4, kind: input, shape index: {}]
  %s5 = inlined_call_operand.hbm [shape: f32[16,128], index: 5, kind: output, shape index: {}]
  %s6 = sld [smem:[#allocation0]]
  $region61: #{tpu_custom_call.1} parent=0
    _
  %s8 = ssub.s32 1, %s6
  %s9 = scalar_select 0, %s8, %s6
  %s11 = sshll.u32 %s0, 4
  %s12 = int_to_ptr.vmem [resolvable:$true] %s11
  %14 = dma.vmem_to_smem %s12, 256, [#allocation4], [#allocation3]
  %16 = dma.done [#allocation3], 256
  %17 = sfence
  $region1: #{tpu_custom_call.1} parent=0
    #allocation5 [shape = 'u8[65536]{0}', space=vmem, size = 0x10000, scoped, tag = 'input window, operand 1, single buffered']
    #allocation6 [shape = 's32[2]{0}', space=sflag, size = 0x8, scoped, tag = 'scoped memory for tpu_custom_call.1']
    #allocation7 [shape = 's32[2]{0}', space=sflag, size = 0x8, scoped, tag = 'scoped memory for tpu_custom_call.1']
    #allocation8 [shape = 'u8[262144]{0}', space=vmem, size = 0x40000, scoped, tag = 'input window, operand 2, single buffered']
    #allocation9 [shape = 's32[1]{0}', space=sflag, size = 0x4, scoped, tag = 'scoped memory for tpu_custom_call.1']
    #allocation10 [shape = 'u8[65536]{0}', space=vmem, size = 0x10000, scoped, tag = 'input window, operand 3, single buffered']
    #allocation11 [shape = 'u8[8192]{0}', space=vmem, size = 0x2000, scoped, tag = 'output window, operand 0']
    %18 = vsyncpa [#allocation6], 0
    %19 = vsyncpa [#allocation9], 0
    %20 = vsyncpa [#allocation7], 0
    %s21 = scalar_lea.sflag [#allocation7], 1
    %22 = vsyncpa %s21, 0
    loop: start=0, step=1, limit=4
    $region2: #{tpu_custom_call.1} parent=1 // loop_pre_header
      _
    $region3: #{tpu_custom_call.1} parent=1 // loop_header
      %s24 = sphi 0, %s28
      %p25 = scmp.ge.s32.totalorder %s24, 4
      %s32 = sphi 0, %s32
      %s34 = sphi 0, %s32
      %s35 = sphi 0, %s34
      %s49 = sphi 0, %s35
      %s53 = sphi 0, %s53
      %s55 = sphi 0, %s53
      %s56 = sphi 0, %s55
      %s70 = sphi 0, %s56
      %s74 = sphi 0, %s74
      %s76 = sphi 0, %s74
      %s77 = sphi 0, %s76
      %s91 = sphi 0, %s77
      %s95 = sphi 0, %s95
      %s97 = sphi 0, %s95
      %s98 = sphi 0, %s97
      %s112 = sphi 0, %s98
      %s118 = sphi 0, %s120
      %s121 = sphi 0, %s118
      %s122 = sphi 0, %s121
      %s138 = sphi 0, %s122
    $region4: #{tpu_custom_call.1} parent=1 // loop_header_branch
      %27 = sbr.rel (%p25) target = $region8
    $region5: #{tpu_custom_call.1} parent=1 // loop_body
      %s29 = ssub.s32 %s24, 1
      %s30 = ssub.s32 %s24, 2
      %s31 = sadd.s32 %s24, 1
      %s33 = sadd.s32 %s32, 1
      %p36 = scmp.eq.s32.totalorder %s24, 1
      %p37 = scmp.ne.s32.totalorder %s32, %s34
      %p38 = scmp.eq.s32.totalorder %s24, 0
      %p39 = por %p37, %p38
      %p40 = scmp.ne.s32.totalorder %s32, %s34
      %p41 = scmp.eq.s32.totalorder %s29, 1
      %p42 = por %p40, %p41
      %p43 = scmp.ne.s32.totalorder %s34, %s35
      %p44 = scmp.eq.s32.totalorder %s29, 0
      %p45 = por %p43, %p44
      %p46 = scmp.ne.s32.totalorder %s34, %s35
      %p47 = scmp.eq.s32.totalorder %s30, 1
      %p48 = por %p46, %p47
      %p50 = scmp.ne.s32.totalorder %s35, %s49
      %p51 = scmp.eq.s32.totalorder %s30, 0
      %p52 = por %p50, %p51
      %s54 = sadd.s32 %s53, 1
      %p57 = scmp.eq.s32.totalorder %s24, 1
      %p58 = scmp.ne.s32.totalorder %s53, %s55
      %p59 = scmp.eq.s32.totalorder %s24, 0
      %p60 = por %p58, %p59
      %p61 = scmp.ne.s32.totalorder %s53, %s55
      %p62 = scmp.eq.s32.totalorder %s29, 1
      %p63 = por %p61, %p62
      %p64 = scmp.ne.s32.totalorder %s55, %s56
      %p65 = scmp.eq.s32.totalorder %s29, 0
      %p66 = por %p64, %p65
      %p67 = scmp.ne.s32.totalorder %s55, %s56
      %p68 = scmp.eq.s32.totalorder %s30, 1
      %p69 = por %p67, %p68
      %p71 = scmp.ne.s32.totalorder %s56, %s70
      %p72 = scmp.eq.s32.totalorder %s30, 0
      %p73 = por %p71, %p72
      %s75 = sadd.s32 %s74, 1
      %p78 = scmp.eq.s32.totalorder %s24, 1
      %p79 = scmp.ne.s32.totalorder %s74, %s76
      %p80 = scmp.eq.s32.totalorder %s24, 0
      %p81 = por %p79, %p80
      %p82 = scmp.ne.s32.totalorder %s74, %s76
      %p83 = scmp.eq.s32.totalorder %s29, 1
      %p84 = por %p82, %p83
      %p85 = scmp.ne.s32.totalorder %s76, %s77
      %p86 = scmp.eq.s32.totalorder %s29, 0
      %p87 = por %p85, %p86
      %p88 = scmp.ne.s32.totalorder %s76, %s77
      %p89 = scmp.eq.s32.totalorder %s30, 1
      %p90 = por %p88, %p89
      %p92 = scmp.ne.s32.totalorder %s77, %s91
      %p93 = scmp.eq.s32.totalorder %s30, 0
      %p94 = por %p92, %p93
      %s96 = sadd.s32 %s95, 1
      %p99 = scmp.eq.s32.totalorder %s24, 1
      %p100 = scmp.ne.s32.totalorder %s95, %s97
      %p101 = scmp.eq.s32.totalorder %s24, 0
      %p102 = por %p100, %p101
      %p103 = scmp.ne.s32.totalorder %s95, %s97
      %p104 = scmp.eq.s32.totalorder %s29, 1
      %p105 = por %p103, %p104
      %p106 = scmp.ne.s32.totalorder %s97, %s98
      %p107 = scmp.eq.s32.totalorder %s29, 0
      %p108 = por %p106, %p107
      %p109 = scmp.ne.s32.totalorder %s97, %s98
      %p110 = scmp.eq.s32.totalorder %s30, 1
      %p111 = por %p109, %p110
      %p113 = scmp.ne.s32.totalorder %s98, %s112
      %p114 = scmp.eq.s32.totalorder %s30, 0
      %p115 = por %p113, %p114
      %s116 = ssub.s32 %s24, %s31
      %p117 = scmp.eq.s32.totalorder %s116, 0
      %s119 = sadd.s32 %s118, 1
      %s120 = scalar_select %p117, %s118, %s119
      %p123 = pneg %p117
      %p124 = scmp.eq.s32.totalorder %s24, 1
      %p125 = por %p123, %p124
      %p126 = scmp.ne.s32.totalorder %s118, %s121
      %p127 = scmp.eq.s32.totalorder %s24, 0
      %p128 = por %p126, %p127
      %p129 = scmp.ne.s32.totalorder %s118, %s121
      %p130 = scmp.eq.s32.totalorder %s29, 1
      %p131 = por %p129, %p130
      %p132 = scmp.ne.s32.totalorder %s121, %s122
      %p133 = scmp.eq.s32.totalorder %s29, 0
      %p134 = por %p132, %p133
      %p135 = scmp.ne.s32.totalorder %s121, %s122
      %p136 = scmp.eq.s32.totalorder %s30, 1
      %p137 = por %p135, %p136
      %p139 = scmp.ne.s32.totalorder %s122, %s138
      %p140 = scmp.eq.s32.totalorder %s30, 0
      %p141 = por %p139, %p140
      %p142 = scmp.le.s32.totalorder 1, %s24
      %p143 = scmp.lt.s32.totalorder %s24, 3
      %p144 = pnand %p142, %p143
      %p145 = pneg %p144
      // Predicated region
      $region9: #{tpu_custom_call.1} parent=5 // pred_check
        _
      $region10: #{tpu_custom_call.1} parent=5 // pred_check_branch
        %147 = sbr.rel (%p144) target = $region12
      $region11: #{tpu_custom_call.1} parent=5 // pred_region
        %s148 = ssub.s32 %s24, 1
        // Predicated region
        $region13: #{tpu_custom_call.1} parent=11 // pred_check
          %p149 = pneg %p45
        $region14: #{tpu_custom_call.1} parent=11 // pred_check_branch
          %151 = sbr.rel (%p149) target = $region16
        $region15: #{tpu_custom_call.1} parent=11 // pred_region
          %153 = vsyncadd [#allocation6], 0
          %s154 = sshll.u32 %s1, 4
          %s155 = int_to_ptr.hbm [resolvable:$true] %s154
          %s156 = sshll.u32 [#allocation5], 4
          %s157 = int_to_ptr.vmem [resolvable:$true] %s156
          %162 = dma.hbm_to_vmem [thread:$0]  %s155, 2048, %s157, [#allocation6], 512, 512, 32
        $region16: #{tpu_custom_call.1} parent=11 // pred_fallthru
          _
        // Predicated region
        $region17: #{tpu_custom_call.1} parent=11 // pred_check
          %p163 = pneg %p66
        $region18: #{tpu_custom_call.1} parent=11 // pred_check_branch
          %165 = sbr.rel (%p163) target = $region20
        $region19: #{tpu_custom_call.1} parent=11 // pred_region
          %167 = vsyncadd [#allocation9], 0
          %s168 = sshll.u32 %s2, 4
          %s169 = int_to_ptr.hbm [resolvable:$true] %s168
          %s170 = sshll.u32 [#allocation8], 4
          %s171 = int_to_ptr.vmem [resolvable:$true] %s170
          %176 = dma.hbm_to_vmem [thread:$0]  %s169, 8192, %s171, [#allocation9], 512, 512, 32
        $region20: #{tpu_custom_call.1} parent=11 // pred_fallthru
          _
        // Predicated region
        $region21: #{tpu_custom_call.1} parent=11 // pred_check
          %p177 = pneg %p87
        $region22: #{tpu_custom_call.1} parent=11 // pred_check_branch
          %179 = sbr.rel (%p177) target = $region24
        $region23: #{tpu_custom_call.1} parent=11 // pred_region
          %181 = vsyncadd [#allocation9], 0
          %s182 = sshll.u32 %s3, 4
          %s183 = int_to_ptr.hbm [resolvable:$true] %s182
          %s184 = sshll.u32 [#allocation10], 4
          %s185 = int_to_ptr.vmem [resolvable:$true] %s184
          %190 = dma.hbm_to_vmem [thread:$0]  %s183, 2048, %s185, [#allocation9], 128, 128, 8
        $region24: #{tpu_custom_call.1} parent=11 // pred_fallthru
          _
        // Predicated region
        $region25: #{tpu_custom_call.1} parent=11 // pred_check
          %p191 = pneg %p108
        $region26: #{tpu_custom_call.1} parent=11 // pred_check_branch
          %193 = sbr.rel (%p191) target = $region28
        $region27: #{tpu_custom_call.1} parent=11 // pred_region
          _
        $region28: #{tpu_custom_call.1} parent=11 // pred_fallthru
          _
      $region12: #{tpu_custom_call.1} parent=5 // pred_fallthru
        _
      %p194 = scmp.lt.s32.totalorder %s24, 2
      // Predicated region
      $region29: #{tpu_custom_call.1} parent=5 // pred_check
        %p195 = pneg %p194
      $region30: #{tpu_custom_call.1} parent=5 // pred_check_branch
        %197 = sbr.rel (%p195) target = $region32
      $region31: #{tpu_custom_call.1} parent=5 // pred_region
        _
      $region32: #{tpu_custom_call.1} parent=5 // pred_fallthru
        _
      %p198 = scmp.le.s32.totalorder 1, %s24
      %p199 = scmp.lt.s32.totalorder %s24, 3
      %p200 = pnand %p198, %p199
      %p201 = pneg %p200
      // Predicated region
      $region33: #{tpu_custom_call.1} parent=5 // pred_check
        _
      $region34: #{tpu_custom_call.1} parent=5 // pred_check_branch
        %203 = sbr.rel (%p200) target = $region36
      $region35: #{tpu_custom_call.1} parent=5 // pred_region
        %s204 = ssub.s32 %s24, 1
        // Predicated region
        $region37: #{tpu_custom_call.1} parent=35 // pred_check
          %p205 = pneg %p45
        $region38: #{tpu_custom_call.1} parent=35 // pred_check_branch
          %207 = sbr.rel (%p205) target = $region40
        $region39: #{tpu_custom_call.1} parent=35 // pred_region
          %209 = dma.done [#allocation6], 2048
        $region40: #{tpu_custom_call.1} parent=35 // pred_fallthru
          _
        // Predicated region
        $region41: #{tpu_custom_call.1} parent=35 // pred_check
          %p210 = pneg %p66
        $region42: #{tpu_custom_call.1} parent=35 // pred_check_branch
          %212 = sbr.rel (%p210) target = $region44
        $region43: #{tpu_custom_call.1} parent=35 // pred_region
          %214 = dma.done [#allocation9], 8192
        $region44: #{tpu_custom_call.1} parent=35 // pred_fallthru
          _
        // Predicated region
        $region45: #{tpu_custom_call.1} parent=35 // pred_check
          %p215 = pneg %p87
        $region46: #{tpu_custom_call.1} parent=35 // pred_check_branch
          %217 = sbr.rel (%p215) target = $region48
        $region47: #{tpu_custom_call.1} parent=35 // pred_region
          %219 = dma.done [#allocation9], 2048
        $region48: #{tpu_custom_call.1} parent=35 // pred_fallthru
          _
        %p220 = pneg %p45
        %p221 = pneg %p42
        %p222 = pneg %p66
        %p223 = pneg %p63
        %p224 = pneg %p87
        %p225 = pneg %p84
        %p226 = pneg %p108
        %p227 = pneg %p105
        %p228 = pneg %p134
        %p229 = pneg %p131
        %s230 = sand.u32 %s121, 1
        %s231 = scalar_lea.sflag [#allocation7], %s230
        %s232 = sand.u32 %s121, 1
        %s233 = smul.addr %s232, 8
        %s234 = scalar_lea.vmem [#allocation11], %s233
        %s235 = smul.u32 %s29, 8
        %s236 = smul.u32 %s235, 128
        %s237 = sld [smem:[#allocation4 + %s236]]
        %s238 = sshra.s32 %s237, 3
        %s239 = sand.u32 %s237, 7
        %s240 = sshra.s32 %s237, 3
        %s241 = sand.u32 %s237, 7
        %s242 = smul.u32 %s238, 4
        %s243 = smul.u32 %s242, 8
        %s244 = sadd.s32 %s243, %s241
        %s245 = scalar_lea.vmem [#allocation5], %s244
        %v246 = vld [vmem:[%s245] ss:$8 sm:$0xf]
        %v247 = vlaneseq
        %vm248 = vcmp.ge.s32.totalorder %v247, 0
        %vm249 = vcmp.lt.s32.totalorder %v247, 512
        %vm250 = vmand %vm248, %vm249
        %251 = vst.msk [vmem:[#allocation2] ss:$8 sm:$0xf] %vm250, %v246
        %252 = vst.msk [vmem:[#allocation2] ss:$8 sm:$0x0] %vm250, %v246
        %s253 = sadd.s32 %s235, 1
        %s254 = smul.u32 %s253, 128
        %s255 = sld [smem:[#allocation4 + %s254]]
        %s256 = sshra.s32 %s255, 3
        %s257 = sand.u32 %s255, 7
        %s258 = sshra.s32 %s255, 3
        %s259 = sand.u32 %s255, 7
        %s260 = smul.u32 %s256, 4
        %s261 = smul.u32 %s260, 8
        %s262 = sadd.s32 %s261, %s259
        %s263 = scalar_lea.vmem [#allocation5], %s262
        %v264 = vld [vmem:[%s263] ss:$8 sm:$0xf]
        %s265 = scalar_lea.vmem [#allocation2], 1
        %266 = vst.msk [vmem:[%s265] ss:$8 sm:$0xf] %vm250, %v264
        %267 = vst.msk [vmem:[%s265] ss:$8 sm:$0x0] %vm250, %v264
        %s268 = sadd.s32 %s235, 2
        %s269 = smul.u32 %s268, 128
        %s270 = sld [smem:[#allocation4 + %s269]]
        %s271 = sshra.s32 %s270, 3
        %s272 = sand.u32 %s270, 7
        %s273 = sshra.s32 %s270, 3
        %s274 = sand.u32 %s270, 7
        %s275 = smul.u32 %s271, 4
        %s276 = smul.u32 %s275, 8
        %s277 = sadd.s32 %s276, %s274
        %s278 = scalar_lea.vmem [#allocation5], %s277
        %v279 = vld [vmem:[%s278] ss:$8 sm:$0xf]
        %s280 = scalar_lea.vmem [#allocation2], 2
        %281 = vst.msk [vmem:[%s280] ss:$8 sm:$0xf] %vm250, %v279
        %282 = vst.msk [vmem:[%s280] ss:$8 sm:$0x0] %vm250, %v279
        %s283 = sadd.s32 %s235, 3
        %s284 = smul.u32 %s283, 128
        %s285 = sld [smem:[#allocation4 + %s284]]
        %s286 = sshra.s32 %s285, 3
        %s287 = sand.u32 %s285, 7
        %s288 = sshra.s32 %s285, 3
        %s289 = sand.u32 %s285, 7
        %s290 = smul.u32 %s286, 4
        %s291 = smul.u32 %s290, 8
        %s292 = sadd.s32 %s291, %s289
        %s293 = scalar_lea.vmem [#allocation5], %s292
        %v294 = vld [vmem:[%s293] ss:$8 sm:$0xf]
        %s295 = scalar_lea.vmem [#allocation2], 3
        %296 = vst.msk [vmem:[%s295] ss:$8 sm:$0xf] %vm250, %v294
        %297 = vst.msk [vmem:[%s295] ss:$8 sm:$0x0] %vm250, %v294
        %s298 = sadd.s32 %s235, 4
        %s299 = smul.u32 %s298, 128
        %s300 = sld [smem:[#allocation4 + %s299]]
        %s301 = sshra.s32 %s300, 3
        %s302 = sand.u32 %s300, 7
        %s303 = sshra.s32 %s300, 3
        %s304 = sand.u32 %s300, 7
        %s305 = smul.u32 %s301, 4
        %s306 = smul.u32 %s305, 8
        %s307 = sadd.s32 %s306, %s304
        %s308 = scalar_lea.vmem [#allocation5], %s307
        %v309 = vld [vmem:[%s308] ss:$8 sm:$0xf]
        %s310 = scalar_lea.vmem [#allocation2], 4
        %311 = vst.msk [vmem:[%s310] ss:$8 sm:$0xf] %vm250, %v309
        %312 = vst.msk [vmem:[%s310] ss:$8 sm:$0x0] %vm250, %v309
        %s313 = sadd.s32 %s235, 5
        %s314 = smul.u32 %s313, 128
        %s315 = sld [smem:[#allocation4 + %s314]]
        %s316 = sshra.s32 %s315, 3
        %s317 = sand.u32 %s315, 7
        %s318 = sshra.s32 %s315, 3
        %s319 = sand.u32 %s315, 7
        %s320 = smul.u32 %s316, 4
        %s321 = smul.u32 %s320, 8
        %s322 = sadd.s32 %s321, %s319
        %s323 = scalar_lea.vmem [#allocation5], %s322
        %v324 = vld [vmem:[%s323] ss:$8 sm:$0xf]
        %s325 = scalar_lea.vmem [#allocation2], 5
        %326 = vst.msk [vmem:[%s325] ss:$8 sm:$0xf] %vm250, %v324
        %327 = vst.msk [vmem:[%s325] ss:$8 sm:$0x0] %vm250, %v324
        %s328 = sadd.s32 %s235, 6
        %s329 = smul.u32 %s328, 128
        %s330 = sld [smem:[#allocation4 + %s329]]
        %s331 = sshra.s32 %s330, 3
        %s332 = sand.u32 %s330, 7
        %s333 = sshra.s32 %s330, 3
        %s334 = sand.u32 %s330, 7
        %s335 = smul.u32 %s331, 4
        %s336 = smul.u32 %s335, 8
        %s337 = sadd.s32 %s336, %s334
        %s338 = scalar_lea.vmem [#allocation5], %s337
        %v339 = vld [vmem:[%s338] ss:$8 sm:$0xf]
        %s340 = scalar_lea.vmem [#allocation2], 6
        %341 = vst.msk [vmem:[%s340] ss:$8 sm:$0xf] %vm250, %v339
        %342 = vst.msk [vmem:[%s340] ss:$8 sm:$0x0] %vm250, %v339
        %s343 = sadd.s32 %s235, 7
        %s344 = smul.u32 %s343, 128
        %s345 = sld [smem:[#allocation4 + %s344]]
        %s346 = sshra.s32 %s345, 3
        %s347 = sand.u32 %s345, 7
        %s348 = sshra.s32 %s345, 3
        %s349 = sand.u32 %s345, 7
        %s350 = smul.u32 %s346, 4
        %s351 = smul.u32 %s350, 8
        %s352 = sadd.s32 %s351, %s349
        %s353 = scalar_lea.vmem [#allocation5], %s352
        %v354 = vld [vmem:[%s353] ss:$8 sm:$0xf]
        %s355 = scalar_lea.vmem [#allocation2], 7
        %356 = vst.msk [vmem:[%s355] ss:$8 sm:$0xf] %vm250, %v354
        %357 = vst.msk [vmem:[%s355] ss:$8 sm:$0x0] %vm250, %v354
        %s358 = sadd.s32 %s236, 1
        %s359 = sld [smem:[#allocation4 + %s358]]
        %s360 = sshra.s32 %s359, 3
        %s361 = sand.u32 %s359, 7
        %s362 = sshra.s32 %s359, 3
        %s363 = sand.u32 %s359, 7
        %s364 = smul.u32 %s360, 4
        %s365 = smul.u32 %s364, 8
        %s366 = sadd.s32 %s365, %s363
        %s367 = scalar_lea.vmem [#allocation5], %s366
        %v368 = vld [vmem:[%s367] ss:$8 sm:$0xf]
        %s369 = scalar_lea.vmem [#allocation2], 32
        %370 = vst.msk [vmem:[%s369] ss:$8 sm:$0xf] %vm250, %v368
        %371 = vst.msk [vmem:[%s369] ss:$8 sm:$0x0] %vm250, %v368
        %s372 = sadd.s32 %s254, 1
        %s373 = sld [smem:[#allocation4 + %s372]]
        %s374 = sshra.s32 %s373, 3
        %s375 = sand.u32 %s373, 7
        %s376 = sshra.s32 %s373, 3
        %s377 = sand.u32 %s373, 7
        %s378 = smul.u32 %s374, 4
        %s379 = smul.u32 %s378, 8
        %s380 = sadd.s32 %s379, %s377
        %s381 = scalar_lea.vmem [#allocation5], %s380
        %v382 = vld [vmem:[%s381] ss:$8 sm:$0xf]
        %s383 = scalar_lea.vmem %s369, 1 [#allocation2]
        %384 = vst.msk [vmem:[%s383] ss:$8 sm:$0xf] %vm250, %v382
        %385 = vst.msk [vmem:[%s383] ss:$8 sm:$0x0] %vm250, %v382
        %s386 = sadd.s32 %s269, 1
        %s387 = sld [smem:[#allocation4 + %s386]]
        %s388 = sshra.s32 %s387, 3
        %s389 = sand.u32 %s387, 7
        %s390 = sshra.s32 %s387, 3
        %s391 = sand.u32 %s387, 7
        %s392 = smul.u32 %s388, 4
        %s393 = smul.u32 %s392, 8
        %s394 = sadd.s32 %s393, %s391
        %s395 = scalar_lea.vmem [#allocation5], %s394
        %v396 = vld [vmem:[%s395] ss:$8 sm:$0xf]
        %s397 = scalar_lea.vmem %s369, 2 [#allocation2]
        %398 = vst.msk [vmem:[%s397] ss:$8 sm:$0xf] %vm250, %v396
        %399 = vst.msk [vmem:[%s397] ss:$8 sm:$0x0] %vm250, %v396
        %s400 = sadd.s32 %s284, 1
        %s401 = sld [smem:[#allocation4 + %s400]]
        %s402 = sshra.s32 %s401, 3
        %s403 = sand.u32 %s401, 7
        %s404 = sshra.s32 %s401, 3
        %s405 = sand.u32 %s401, 7
        %s406 = smul.u32 %s402, 4
        %s407 = smul.u32 %s406, 8
        %s408 = sadd.s32 %s407, %s405
        %s409 = scalar_lea.vmem [#allocation5], %s408
        %v410 = vld [vmem:[%s409] ss:$8 sm:$0xf]
        %s411 = scalar_lea.vmem %s369, 3 [#allocation2]
        %412 = vst.msk [vmem:[%s411] ss:$8 sm:$0xf] %vm250, %v410
        %413 = vst.msk [vmem:[%s411] ss:$8 sm:$0x0] %vm250, %v410
        %s414 = sadd.s32 %s299, 1
        %s415 = sld [smem:[#allocation4 + %s414]]
        %s416 = sshra.s32 %s415, 3
        %s417 = sand.u32 %s415, 7
        %s418 = sshra.s32 %s415, 3
        %s419 = sand.u32 %s415, 7
        %s420 = smul.u32 %s416, 4
        %s421 = smul.u32 %s420, 8
        %s422 = sadd.s32 %s421, %s419
        %s423 = scalar_lea.vmem [#allocation5], %s422
        %v424 = vld [vmem:[%s423] ss:$8 sm:$0xf]
        %s425 = scalar_lea.vmem %s369, 4 [#allocation2]
        %426 = vst.msk [vmem:[%s425] ss:$8 sm:$0xf] %vm250, %v424
        %427 = vst.msk [vmem:[%s425] ss:$8 sm:$0x0] %vm250, %v424
        %s428 = sadd.s32 %s314, 1
        %s429 = sld [smem:[#allocation4 + %s428]]
        %s430 = sshra.s32 %s429, 3
        %s431 = sand.u32 %s429, 7
        %s432 = sshra.s32 %s429, 3
        %s433 = sand.u32 %s429, 7
        %s434 = smul.u32 %s430, 4
        %s435 = smul.u32 %s434, 8
        %s436 = sadd.s32 %s435, %s433
        %s437 = scalar_lea.vmem [#allocation5], %s436
        %v438 = vld [vmem:[%s437] ss:$8 sm:$0xf]
        %s439 = scalar_lea.vmem %s369, 5 [#allocation2]
        %440 = vst.msk [vmem:[%s439] ss:$8 sm:$0xf] %vm250, %v438
        %441 = vst.msk [vmem:[%s439] ss:$8 sm:$0x0] %vm250, %v438
        %s442 = sadd.s32 %s329, 1
        %s443 = sld [smem:[#allocation4 + %s442]]
        %s444 = sshra.s32 %s443, 3
        %s445 = sand.u32 %s443, 7
        %s446 = sshra.s32 %s443, 3
        %s447 = sand.u32 %s443, 7
        %s448 = smul.u32 %s444, 4
        %s449 = smul.u32 %s448, 8
        %s450 = sadd.s32 %s449, %s447
        %s451 = scalar_lea.vmem [#allocation5], %s450
        %v452 = vld [vmem:[%s451] ss:$8 sm:$0xf]
        %s453 = scalar_lea.vmem %s369, 6 [#allocation2]
        %454 = vst.msk [vmem:[%s453] ss:$8 sm:$0xf] %vm250, %v452
        %455 = vst.msk [vmem:[%s453] ss:$8 sm:$0x0] %vm250, %v452
        %s456 = sadd.s32 %s344, 1
        %s457 = sld [smem:[#allocation4 + %s456]]
        %s458 = sshra.s32 %s457, 3
        %s459 = sand.u32 %s457, 7
        %s460 = sshra.s32 %s457, 3
        %s461 = sand.u32 %s457, 7
        %s462 = smul.u32 %s458, 4
        %s463 = smul.u32 %s462, 8
        %s464 = sadd.s32 %s463, %s461
        %s465 = scalar_lea.vmem [#allocation5], %s464
        %v466 = vld [vmem:[%s465] ss:$8 sm:$0xf]
        %s467 = scalar_lea.vmem %s369, 7 [#allocation2]
        %468 = vst.msk [vmem:[%s467] ss:$8 sm:$0xf] %vm250, %v466
        %469 = vst.msk [vmem:[%s467] ss:$8 sm:$0x0] %vm250, %v466
        %s470 = sadd.s32 %s236, 2
        %s471 = sld [smem:[#allocation4 + %s470]]
        %s472 = sshra.s32 %s471, 3
        %s473 = sand.u32 %s471, 7
        %s474 = sshra.s32 %s471, 3
        %s475 = sand.u32 %s471, 7
        %s476 = smul.u32 %s472, 4
        %s477 = smul.u32 %s476, 8
        %s478 = sadd.s32 %s477, %s475
        %s479 = scalar_lea.vmem [#allocation5], %s478
        %v480 = vld [vmem:[%s479] ss:$8 sm:$0xf]
        %s481 = scalar_lea.vmem [#allocation2], 64
        %482 = vst.msk [vmem:[%s481] ss:$8 sm:$0xf] %vm250, %v480
        %483 = vst.msk [vmem:[%s481] ss:$8 sm:$0x0] %vm250, %v480
        %s484 = sadd.s32 %s254, 2
        %s485 = sld [smem:[#allocation4 + %s484]]
        %s486 = sshra.s32 %s485, 3
        %s487 = sand.u32 %s485, 7
        %s488 = sshra.s32 %s485, 3
        %s489 = sand.u32 %s485, 7
        %s490 = smul.u32 %s486, 4
        %s491 = smul.u32 %s490, 8
        %s492 = sadd.s32 %s491, %s489
        %s493 = scalar_lea.vmem [#allocation5], %s492
        %v494 = vld [vmem:[%s493] ss:$8 sm:$0xf]
        %s495 = scalar_lea.vmem %s481, 1 [#allocation2]
        %496 = vst.msk [vmem:[%s495] ss:$8 sm:$0xf] %vm250, %v494
        %497 = vst.msk [vmem:[%s495] ss:$8 sm:$0x0] %vm250, %v494
        %s498 = sadd.s32 %s269, 2
        %s499 = sld [smem:[#allocation4 + %s498]]
        %s500 = sshra.s32 %s499, 3
        %s501 = sand.u32 %s499, 7
        %s502 = sshra.s32 %s499, 3
        %s503 = sand.u32 %s499, 7
        %s504 = smul.u32 %s500, 4
        %s505 = smul.u32 %s504, 8
        %s506 = sadd.s32 %s505, %s503
        %s507 = scalar_lea.vmem [#allocation5], %s506
        %v508 = vld [vmem:[%s507] ss:$8 sm:$0xf]
        %s509 = scalar_lea.vmem %s481, 2 [#allocation2]
        %510 = vst.msk [vmem:[%s509] ss:$8 sm:$0xf] %vm250, %v508
        %511 = vst.msk [vmem:[%s509] ss:$8 sm:$0x0] %vm250, %v508
        %s512 = sadd.s32 %s284, 2
        %s513 = sld [smem:[#allocation4 + %s512]]
        %s514 = sshra.s32 %s513, 3
        %s515 = sand.u32 %s513, 7
        %s516 = sshra.s32 %s513, 3
        %s517 = sand.u32 %s513, 7
        %s518 = smul.u32 %s514, 4
        %s519 = smul.u32 %s518, 8
        %s520 = sadd.s32 %s519, %s517
        %s521 = scalar_lea.vmem [#allocation5], %s520
        %v522 = vld [vmem:[%s521] ss:$8 sm:$0xf]
        %s523 = scalar_lea.vmem %s481, 3 [#allocation2]
        %524 = vst.msk [vmem:[%s523] ss:$8 sm:$0xf] %vm250, %v522
        %525 = vst.msk [vmem:[%s523] ss:$8 sm:$0x0] %vm250, %v522
        %s526 = sadd.s32 %s299, 2
        %s527 = sld [smem:[#allocation4 + %s526]]
        %s528 = sshra.s32 %s527, 3
        %s529 = sand.u32 %s527, 7
        %s530 = sshra.s32 %s527, 3
        %s531 = sand.u32 %s527, 7
        %s532 = smul.u32 %s528, 4
        %s533 = smul.u32 %s532, 8
        %s534 = sadd.s32 %s533, %s531
        %s535 = scalar_lea.vmem [#allocation5], %s534
        %v536 = vld [vmem:[%s535] ss:$8 sm:$0xf]
        %s537 = scalar_lea.vmem %s481, 4 [#allocation2]
        %538 = vst.msk [vmem:[%s537] ss:$8 sm:$0xf] %vm250, %v536
        %539 = vst.msk [vmem:[%s537] ss:$8 sm:$0x0] %vm250, %v536
        %s540 = sadd.s32 %s314, 2
        %s541 = sld [smem:[#allocation4 + %s540]]
        %s542 = sshra.s32 %s541, 3
        %s543 = sand.u32 %s541, 7
        %s544 = sshra.s32 %s541, 3
        %s545 = sand.u32 %s541, 7
        %s546 = smul.u32 %s542, 4
        %s547 = smul.u32 %s546, 8
        %s548 = sadd.s32 %s547, %s545
        %s549 = scalar_lea.vmem [#allocation5], %s548
        %v550 = vld [vmem:[%s549] ss:$8 sm:$0xf]
        %s551 = scalar_lea.vmem %s481, 5 [#allocation2]
        %552 = vst.msk [vmem:[%s551] ss:$8 sm:$0xf] %vm250, %v550
        %553 = vst.msk [vmem:[%s551] ss:$8 sm:$0x0] %vm250, %v550
        %s554 = sadd.s32 %s329, 2
        %s555 = sld [smem:[#allocation4 + %s554]]
        %s556 = sshra.s32 %s555, 3
        %s557 = sand.u32 %s555, 7
        %s558 = sshra.s32 %s555, 3
        %s559 = sand.u32 %s555, 7
        %s560 = smul.u32 %s556, 4
        %s561 = smul.u32 %s560, 8
        %s562 = sadd.s32 %s561, %s559
        %s563 = scalar_lea.vmem [#allocation5], %s562
        %v564 = vld [vmem:[%s563] ss:$8 sm:$0xf]
        %s565 = scalar_lea.vmem %s481, 6 [#allocation2]
        %566 = vst.msk [vmem:[%s565] ss:$8 sm:$0xf] %vm250, %v564
        %567 = vst.msk [vmem:[%s565] ss:$8 sm:$0x0] %vm250, %v564
        %s568 = sadd.s32 %s344, 2
        %s569 = sld [smem:[#allocation4 + %s568]]
        %s570 = sshra.s32 %s569, 3
        %s571 = sand.u32 %s569, 7
        %s572 = sshra.s32 %s569, 3
        %s573 = sand.u32 %s569, 7
        %s574 = smul.u32 %s570, 4
        %s575 = smul.u32 %s574, 8
        %s576 = sadd.s32 %s575, %s573
        %s577 = scalar_lea.vmem [#allocation5], %s576
        %v578 = vld [vmem:[%s577] ss:$8 sm:$0xf]
        %s579 = scalar_lea.vmem %s481, 7 [#allocation2]
        %580 = vst.msk [vmem:[%s579] ss:$8 sm:$0xf] %vm250, %v578
        %581 = vst.msk [vmem:[%s579] ss:$8 sm:$0x0] %vm250, %v578
        %s582 = sadd.s32 %s236, 3
        %s583 = sld [smem:[#allocation4 + %s582]]
        %s584 = sshra.s32 %s583, 3
        %s585 = sand.u32 %s583, 7
        %s586 = sshra.s32 %s583, 3
        %s587 = sand.u32 %s583, 7
        %s588 = smul.u32 %s584, 4
        %s589 = smul.u32 %s588, 8
        %s590 = sadd.s32 %s589, %s587
        %s591 = scalar_lea.vmem [#allocation5], %s590
        %v592 = vld [vmem:[%s591] ss:$8 sm:$0xf]
        %s593 = scalar_lea.vmem [#allocation2], 96
        %594 = vst.msk [vmem:[%s593] ss:$8 sm:$0xf] %vm250, %v592
        %595 = vst.msk [vmem:[%s593] ss:$8 sm:$0x0] %vm250, %v592
        %s596 = sadd.s32 %s254, 3
        %s597 = sld [smem:[#allocation4 + %s596]]
        %s598 = sshra.s32 %s597, 3
        %s599 = sand.u32 %s597, 7
        %s600 = sshra.s32 %s597, 3
        %s601 = sand.u32 %s597, 7
        %s602 = smul.u32 %s598, 4
        %s603 = smul.u32 %s602, 8
        %s604 = sadd.s32 %s603, %s601
        %s605 = scalar_lea.vmem [#allocation5], %s604
        %v606 = vld [vmem:[%s605] ss:$8 sm:$0xf]
        %s607 = scalar_lea.vmem %s593, 1 [#allocation2]
        %608 = vst.msk [vmem:[%s607] ss:$8 sm:$0xf] %vm250, %v606
        %609 = vst.msk [vmem:[%s607] ss:$8 sm:$0x0] %vm250, %v606
        %s610 = sadd.s32 %s269, 3
        %s611 = sld [smem:[#allocation4 + %s610]]
        %s612 = sshra.s32 %s611, 3
        %s613 = sand.u32 %s611, 7
        %s614 = sshra.s32 %s611, 3
        %s615 = sand.u32 %s611, 7
        %s616 = smul.u32 %s612, 4
        %s617 = smul.u32 %s616, 8
        %s618 = sadd.s32 %s617, %s615
        %s619 = scalar_lea.vmem [#allocation5], %s618
        %v620 = vld [vmem:[%s619] ss:$8 sm:$0xf]
        %s621 = scalar_lea.vmem %s593, 2 [#allocation2]
        %622 = vst.msk [vmem:[%s621] ss:$8 sm:$0xf] %vm250, %v620
        %623 = vst.msk [vmem:[%s621] ss:$8 sm:$0x0] %vm250, %v620
        %s624 = sadd.s32 %s284, 3
        %s625 = sld [smem:[#allocation4 + %s624]]
        %s626 = sshra.s32 %s625, 3
        %s627 = sand.u32 %s625, 7
        %s628 = sshra.s32 %s625, 3
        %s629 = sand.u32 %s625, 7
        %s630 = smul.u32 %s626, 4
        %s631 = smul.u32 %s630, 8
        %s632 = sadd.s32 %s631, %s629
        %s633 = scalar_lea.vmem [#allocation5], %s632
        %v634 = vld [vmem:[%s633] ss:$8 sm:$0xf]
        %s635 = scalar_lea.vmem %s593, 3 [#allocation2]
        %636 = vst.msk [vmem:[%s635] ss:$8 sm:$0xf] %vm250, %v634
        %637 = vst.msk [vmem:[%s635] ss:$8 sm:$0x0] %vm250, %v634
        %s638 = sadd.s32 %s299, 3
        %s639 = sld [smem:[#allocation4 + %s638]]
        %s640 = sshra.s32 %s639, 3
        %s641 = sand.u32 %s639, 7
        %s642 = sshra.s32 %s639, 3
        %s643 = sand.u32 %s639, 7
        %s644 = smul.u32 %s640, 4
        %s645 = smul.u32 %s644, 8
        %s646 = sadd.s32 %s645, %s643
        %s647 = scalar_lea.vmem [#allocation5], %s646
        %v648 = vld [vmem:[%s647] ss:$8 sm:$0xf]
        %s649 = scalar_lea.vmem %s593, 4 [#allocation2]
        %650 = vst.msk [vmem:[%s649] ss:$8 sm:$0xf] %vm250, %v648
        %651 = vst.msk [vmem:[%s649] ss:$8 sm:$0x0] %vm250, %v648
        %s652 = sadd.s32 %s314, 3
        %s653 = sld [smem:[#allocation4 + %s652]]
        %s654 = sshra.s32 %s653, 3
        %s655 = sand.u32 %s653, 7
        %s656 = sshra.s32 %s653, 3
        %s657 = sand.u32 %s653, 7
        %s658 = smul.u32 %s654, 4
        %s659 = smul.u32 %s658, 8
        %s660 = sadd.s32 %s659, %s657
        %s661 = scalar_lea.vmem [#allocation5], %s660
        %v662 = vld [vmem:[%s661] ss:$8 sm:$0xf]
        %s663 = scalar_lea.vmem %s593, 5 [#allocation2]
        %664 = vst.msk [vmem:[%s663] ss:$8 sm:$0xf] %vm250, %v662
        %665 = vst.msk [vmem:[%s663] ss:$8 sm:$0x0] %vm250, %v662
        %s666 = sadd.s32 %s329, 3
        %s667 = sld [smem:[#allocation4 + %s666]]
        %s668 = sshra.s32 %s667, 3
        %s669 = sand.u32 %s667, 7
        %s670 = sshra.s32 %s667, 3
        %s671 = sand.u32 %s667, 7
        %s672 = smul.u32 %s668, 4
        %s673 = smul.u32 %s672, 8
        %s674 = sadd.s32 %s673, %s671
        %s675 = scalar_lea.vmem [#allocation5], %s674
        %v676 = vld [vmem:[%s675] ss:$8 sm:$0xf]
        %s677 = scalar_lea.vmem %s593, 6 [#allocation2]
        %678 = vst.msk [vmem:[%s677] ss:$8 sm:$0xf] %vm250, %v676
        %679 = vst.msk [vmem:[%s677] ss:$8 sm:$0x0] %vm250, %v676
        %s680 = sadd.s32 %s344, 3
        %s681 = sld [smem:[#allocation4 + %s680]]
        %s682 = sshra.s32 %s681, 3
        %s683 = sand.u32 %s681, 7
        %s684 = sshra.s32 %s681, 3
        %s685 = sand.u32 %s681, 7
        %s686 = smul.u32 %s682, 4
        %s687 = smul.u32 %s686, 8
        %s688 = sadd.s32 %s687, %s685
        %s689 = scalar_lea.vmem [#allocation5], %s688
        %v690 = vld [vmem:[%s689] ss:$8 sm:$0xf]
        %s691 = scalar_lea.vmem %s593, 7 [#allocation2]
        %692 = vst.msk [vmem:[%s691] ss:$8 sm:$0xf] %vm250, %v690
        %693 = vst.msk [vmem:[%s691] ss:$8 sm:$0x0] %vm250, %v690
        %s694 = sadd.s32 %s236, 4
        %s695 = sld [smem:[#allocation4 + %s694]]
        %s696 = sshra.s32 %s695, 3
        %s697 = sand.u32 %s695, 7
        %s698 = sshra.s32 %s695, 3
        %s699 = sand.u32 %s695, 7
        %s700 = smul.u32 %s696, 4
        %s701 = smul.u32 %s700, 8
        %s702 = sadd.s32 %s701, %s699
        %s703 = scalar_lea.vmem [#allocation5], %s702
        %v704 = vld [vmem:[%s703] ss:$8 sm:$0xf]
        %s705 = scalar_lea.vmem [#allocation2], 128
        %706 = vst.msk [vmem:[%s705] ss:$8 sm:$0xf] %vm250, %v704
        %707 = vst.msk [vmem:[%s705] ss:$8 sm:$0x0] %vm250, %v704
        %s708 = sadd.s32 %s254, 4
        %s709 = sld [smem:[#allocation4 + %s708]]
        %s710 = sshra.s32 %s709, 3
        %s711 = sand.u32 %s709, 7
        %s712 = sshra.s32 %s709, 3
        %s713 = sand.u32 %s709, 7
        %s714 = smul.u32 %s710, 4
        %s715 = smul.u32 %s714, 8
        %s716 = sadd.s32 %s715, %s713
        %s717 = scalar_lea.vmem [#allocation5], %s716
        %v718 = vld [vmem:[%s717] ss:$8 sm:$0xf]
        %s719 = scalar_lea.vmem %s705, 1 [#allocation2]
        %720 = vst.msk [vmem:[%s719] ss:$8 sm:$0xf] %vm250, %v718
        %721 = vst.msk [vmem:[%s719] ss:$8 sm:$0x0] %vm250, %v718
        %s722 = sadd.s32 %s269, 4
        %s723 = sld [smem:[#allocation4 + %s722]]
        %s724 = sshra.s32 %s723, 3
        %s725 = sand.u32 %s723, 7
        %s726 = sshra.s32 %s723, 3
        %s727 = sand.u32 %s723, 7
        %s728 = smul.u32 %s724, 4
        %s729 = smul.u32 %s728, 8
        %s730 = sadd.s32 %s729, %s727
        %s731 = scalar_lea.vmem [#allocation5], %s730
        %v732 = vld [vmem:[%s731] ss:$8 sm:$0xf]
        %s733 = scalar_lea.vmem %s705, 2 [#allocation2]
        %734 = vst.msk [vmem:[%s733] ss:$8 sm:$0xf] %vm250, %v732
        %735 = vst.msk [vmem:[%s733] ss:$8 sm:$0x0] %vm250, %v732
        %s736 = sadd.s32 %s284, 4
        %s737 = sld [smem:[#allocation4 + %s736]]
        %s738 = sshra.s32 %s737, 3
        %s739 = sand.u32 %s737, 7
        %s740 = sshra.s32 %s737, 3
        %s741 = sand.u32 %s737, 7
        %s742 = smul.u32 %s738, 4
        %s743 = smul.u32 %s742, 8
        %s744 = sadd.s32 %s743, %s741
        %s745 = scalar_lea.vmem [#allocation5], %s744
        %v746 = vld [vmem:[%s745] ss:$8 sm:$0xf]
        %s747 = scalar_lea.vmem %s705, 3 [#allocation2]
        %748 = vst.msk [vmem:[%s747] ss:$8 sm:$0xf] %vm250, %v746
        %749 = vst.msk [vmem:[%s747] ss:$8 sm:$0x0] %vm250, %v746
        %s750 = sadd.s32 %s299, 4
        %s751 = sld [smem:[#allocation4 + %s750]]
        %s752 = sshra.s32 %s751, 3
        %s753 = sand.u32 %s751, 7
        %s754 = sshra.s32 %s751, 3
        %s755 = sand.u32 %s751, 7
        %s756 = smul.u32 %s752, 4
        %s757 = smul.u32 %s756, 8
        %s758 = sadd.s32 %s757, %s755
        %s759 = scalar_lea.vmem [#allocation5], %s758
        %v760 = vld [vmem:[%s759] ss:$8 sm:$0xf]
        %s761 = scalar_lea.vmem %s705, 4 [#allocation2]
        %762 = vst.msk [vmem:[%s761] ss:$8 sm:$0xf] %vm250, %v760
        %763 = vst.msk [vmem:[%s761] ss:$8 sm:$0x0] %vm250, %v760
        %s764 = sadd.s32 %s314, 4
        %s765 = sld [smem:[#allocation4 + %s764]]
        %s766 = sshra.s32 %s765, 3
        %s767 = sand.u32 %s765, 7
        %s768 = sshra.s32 %s765, 3
        %s769 = sand.u32 %s765, 7
        %s770 = smul.u32 %s766, 4
        %s771 = smul.u32 %s770, 8
        %s772 = sadd.s32 %s771, %s769
        %s773 = scalar_lea.vmem [#allocation5], %s772
        %v774 = vld [vmem:[%s773] ss:$8 sm:$0xf]
        %s775 = scalar_lea.vmem %s705, 5 [#allocation2]
        %776 = vst.msk [vmem:[%s775] ss:$8 sm:$0xf] %vm250, %v774
        %777 = vst.msk [vmem:[%s775] ss:$8 sm:$0x0] %vm250, %v774
        %s778 = sadd.s32 %s329, 4
        %s779 = sld [smem:[#allocation4 + %s778]]
        %s780 = sshra.s32 %s779, 3
        %s781 = sand.u32 %s779, 7
        %s782 = sshra.s32 %s779, 3
        %s783 = sand.u32 %s779, 7
        %s784 = smul.u32 %s780, 4
        %s785 = smul.u32 %s784, 8
        %s786 = sadd.s32 %s785, %s783
        %s787 = scalar_lea.vmem [#allocation5], %s786
        %v788 = vld [vmem:[%s787] ss:$8 sm:$0xf]
        %s789 = scalar_lea.vmem %s705, 6 [#allocation2]
        %790 = vst.msk [vmem:[%s789] ss:$8 sm:$0xf] %vm250, %v788
        %791 = vst.msk [vmem:[%s789] ss:$8 sm:$0x0] %vm250, %v788
        %s792 = sadd.s32 %s344, 4
        %s793 = sld [smem:[#allocation4 + %s792]]
        %s794 = sshra.s32 %s793, 3
        %s795 = sand.u32 %s793, 7
        %s796 = sshra.s32 %s793, 3
        %s797 = sand.u32 %s793, 7
        %s798 = smul.u32 %s794, 4
        %s799 = smul.u32 %s798, 8
        %s800 = sadd.s32 %s799, %s797
        %s801 = scalar_lea.vmem [#allocation5], %s800
        %v802 = vld [vmem:[%s801] ss:$8 sm:$0xf]
        %s803 = scalar_lea.vmem %s705, 7 [#allocation2]
        %804 = vst.msk [vmem:[%s803] ss:$8 sm:$0xf] %vm250, %v802
        %805 = vst.msk [vmem:[%s803] ss:$8 sm:$0x0] %vm250, %v802
        %s806 = sadd.s32 %s236, 5
        %s807 = sld [smem:[#allocation4 + %s806]]
        %s808 = sshra.s32 %s807, 3
        %s809 = sand.u32 %s807, 7
        %s810 = sshra.s32 %s807, 3
        %s811 = sand.u32 %s807, 7
        %s812 = smul.u32 %s808, 4
        %s813 = smul.u32 %s812, 8
        %s814 = sadd.s32 %s813, %s811
        %s815 = scalar_lea.vmem [#allocation5], %s814
        %v816 = vld [vmem:[%s815] ss:$8 sm:$0xf]
        %s817 = scalar_lea.vmem [#allocation2], 160
        %818 = vst.msk [vmem:[%s817] ss:$8 sm:$0xf] %vm250, %v816
        %819 = vst.msk [vmem:[%s817] ss:$8 sm:$0x0] %vm250, %v816
        %s820 = sadd.s32 %s254, 5
        %s821 = sld [smem:[#allocation4 + %s820]]
        %s822 = sshra.s32 %s821, 3
        %s823 = sand.u32 %s821, 7
        %s824 = sshra.s32 %s821, 3
        %s825 = sand.u32 %s821, 7
        %s826 = smul.u32 %s822, 4
        %s827 = smul.u32 %s826, 8
        %s828 = sadd.s32 %s827, %s825
        %s829 = scalar_lea.vmem [#allocation5], %s828
        %v830 = vld [vmem:[%s829] ss:$8 sm:$0xf]
        %s831 = scalar_lea.vmem %s817, 1 [#allocation2]
        %832 = vst.msk [vmem:[%s831] ss:$8 sm:$0xf] %vm250, %v830
        %833 = vst.msk [vmem:[%s831] ss:$8 sm:$0x0] %vm250, %v830
        %s834 = sadd.s32 %s269, 5
        %s835 = sld [smem:[#allocation4 + %s834]]
        %s836 = sshra.s32 %s835, 3
        %s837 = sand.u32 %s835, 7
        %s838 = sshra.s32 %s835, 3
        %s839 = sand.u32 %s835, 7
        %s840 = smul.u32 %s836, 4
        %s841 = smul.u32 %s840, 8
        %s842 = sadd.s32 %s841, %s839
        %s843 = scalar_lea.vmem [#allocation5], %s842
        %v844 = vld [vmem:[%s843] ss:$8 sm:$0xf]
        %s845 = scalar_lea.vmem %s817, 2 [#allocation2]
        %846 = vst.msk [vmem:[%s845] ss:$8 sm:$0xf] %vm250, %v844
        %847 = vst.msk [vmem:[%s845] ss:$8 sm:$0x0] %vm250, %v844
        %s848 = sadd.s32 %s284, 5
        %s849 = sld [smem:[#allocation4 + %s848]]
        %s850 = sshra.s32 %s849, 3
        %s851 = sand.u32 %s849, 7
        %s852 = sshra.s32 %s849, 3
        %s853 = sand.u32 %s849, 7
        %s854 = smul.u32 %s850, 4
        %s855 = smul.u32 %s854, 8
        %s856 = sadd.s32 %s855, %s853
        %s857 = scalar_lea.vmem [#allocation5], %s856
        %v858 = vld [vmem:[%s857] ss:$8 sm:$0xf]
        %s859 = scalar_lea.vmem %s817, 3 [#allocation2]
        %860 = vst.msk [vmem:[%s859] ss:$8 sm:$0xf] %vm250, %v858
        %861 = vst.msk [vmem:[%s859] ss:$8 sm:$0x0] %vm250, %v858
        %s862 = sadd.s32 %s299, 5
        %s863 = sld [smem:[#allocation4 + %s862]]
        %s864 = sshra.s32 %s863, 3
        %s865 = sand.u32 %s863, 7
        %s866 = sshra.s32 %s863, 3
        %s867 = sand.u32 %s863, 7
        %s868 = smul.u32 %s864, 4
        %s869 = smul.u32 %s868, 8
        %s870 = sadd.s32 %s869, %s867
        %s871 = scalar_lea.vmem [#allocation5], %s870
        %v872 = vld [vmem:[%s871] ss:$8 sm:$0xf]
        %s873 = scalar_lea.vmem %s817, 4 [#allocation2]
        %874 = vst.msk [vmem:[%s873] ss:$8 sm:$0xf] %vm250, %v872
        %875 = vst.msk [vmem:[%s873] ss:$8 sm:$0x0] %vm250, %v872
        %s876 = sadd.s32 %s314, 5
        %s877 = sld [smem:[#allocation4 + %s876]]
        %s878 = sshra.s32 %s877, 3
        %s879 = sand.u32 %s877, 7
        %s880 = sshra.s32 %s877, 3
        %s881 = sand.u32 %s877, 7
        %s882 = smul.u32 %s878, 4
        %s883 = smul.u32 %s882, 8
        %s884 = sadd.s32 %s883, %s881
        %s885 = scalar_lea.vmem [#allocation5], %s884
        %v886 = vld [vmem:[%s885] ss:$8 sm:$0xf]
        %s887 = scalar_lea.vmem %s817, 5 [#allocation2]
        %888 = vst.msk [vmem:[%s887] ss:$8 sm:$0xf] %vm250, %v886
        %889 = vst.msk [vmem:[%s887] ss:$8 sm:$0x0] %vm250, %v886
        %s890 = sadd.s32 %s329, 5
        %s891 = sld [smem:[#allocation4 + %s890]]
        %s892 = sshra.s32 %s891, 3
        %s893 = sand.u32 %s891, 7
        %s894 = sshra.s32 %s891, 3
        %s895 = sand.u32 %s891, 7
        %s896 = smul.u32 %s892, 4
        %s897 = smul.u32 %s896, 8
        %s898 = sadd.s32 %s897, %s895
        %s899 = scalar_lea.vmem [#allocation5], %s898
        %v900 = vld [vmem:[%s899] ss:$8 sm:$0xf]
        %s901 = scalar_lea.vmem %s817, 6 [#allocation2]
        %902 = vst.msk [vmem:[%s901] ss:$8 sm:$0xf] %vm250, %v900
        %903 = vst.msk [vmem:[%s901] ss:$8 sm:$0x0] %vm250, %v900
        %s904 = sadd.s32 %s344, 5
        %s905 = sld [smem:[#allocation4 + %s904]]
        %s906 = sshra.s32 %s905, 3
        %s907 = sand.u32 %s905, 7
        %s908 = sshra.s32 %s905, 3
        %s909 = sand.u32 %s905, 7
        %s910 = smul.u32 %s906, 4
        %s911 = smul.u32 %s910, 8
        %s912 = sadd.s32 %s911, %s909
        %s913 = scalar_lea.vmem [#allocation5], %s912
        %v914 = vld [vmem:[%s913] ss:$8 sm:$0xf]
        %s915 = scalar_lea.vmem %s817, 7 [#allocation2]
        %916 = vst.msk [vmem:[%s915] ss:$8 sm:$0xf] %vm250, %v914
        %917 = vst.msk [vmem:[%s915] ss:$8 sm:$0x0] %vm250, %v914
        %s918 = sadd.s32 %s236, 6
        %s919 = sld [smem:[#allocation4 + %s918]]
        %s920 = sshra.s32 %s919, 3
        %s921 = sand.u32 %s919, 7
        %s922 = sshra.s32 %s919, 3
        %s923 = sand.u32 %s919, 7
        %s924 = smul.u32 %s920, 4
        %s925 = smul.u32 %s924, 8
        %s926 = sadd.s32 %s925, %s923
        %s927 = scalar_lea.vmem [#allocation5], %s926
        %v928 = vld [vmem:[%s927] ss:$8 sm:$0xf]
        %s929 = scalar_lea.vmem [#allocation2], 192
        %930 = vst.msk [vmem:[%s929] ss:$8 sm:$0xf] %vm250, %v928
        %931 = vst.msk [vmem:[%s929] ss:$8 sm:$0x0] %vm250, %v928
        %s932 = sadd.s32 %s254, 6
        %s933 = sld [smem:[#allocation4 + %s932]]
        %s934 = sshra.s32 %s933, 3
        %s935 = sand.u32 %s933, 7
        %s936 = sshra.s32 %s933, 3
        %s937 = sand.u32 %s933, 7
        %s938 = smul.u32 %s934, 4
        %s939 = smul.u32 %s938, 8
        %s940 = sadd.s32 %s939, %s937
        %s941 = scalar_lea.vmem [#allocation5], %s940
        %v942 = vld [vmem:[%s941] ss:$8 sm:$0xf]
        %s943 = scalar_lea.vmem %s929, 1 [#allocation2]
        %944 = vst.msk [vmem:[%s943] ss:$8 sm:$0xf] %vm250, %v942
        %945 = vst.msk [vmem:[%s943] ss:$8 sm:$0x0] %vm250, %v942
        %s946 = sadd.s32 %s269, 6
        %s947 = sld [smem:[#allocation4 + %s946]]
        %s948 = sshra.s32 %s947, 3
        %s949 = sand.u32 %s947, 7
        %s950 = sshra.s32 %s947, 3
        %s951 = sand.u32 %s947, 7
        %s952 = smul.u32 %s948, 4
        %s953 = smul.u32 %s952, 8
        %s954 = sadd.s32 %s953, %s951
        %s955 = scalar_lea.vmem [#allocation5], %s954
        %v956 = vld [vmem:[%s955] ss:$8 sm:$0xf]
        %s957 = scalar_lea.vmem %s929, 2 [#allocation2]
        %958 = vst.msk [vmem:[%s957] ss:$8 sm:$0xf] %vm250, %v956
        %959 = vst.msk [vmem:[%s957] ss:$8 sm:$0x0] %vm250, %v956
        %s960 = sadd.s32 %s284, 6
        %s961 = sld [smem:[#allocation4 + %s960]]
        %s962 = sshra.s32 %s961, 3
        %s963 = sand.u32 %s961, 7
        %s964 = sshra.s32 %s961, 3
        %s965 = sand.u32 %s961, 7
        %s966 = smul.u32 %s962, 4
        %s967 = smul.u32 %s966, 8
        %s968 = sadd.s32 %s967, %s965
        %s969 = scalar_lea.vmem [#allocation5], %s968
        %v970 = vld [vmem:[%s969] ss:$8 sm:$0xf]
        %s971 = scalar_lea.vmem %s929, 3 [#allocation2]
        %972 = vst.msk [vmem:[%s971] ss:$8 sm:$0xf] %vm250, %v970
        %973 = vst.msk [vmem:[%s971] ss:$8 sm:$0x0] %vm250, %v970
        %s974 = sadd.s32 %s299, 6
        %s975 = sld [smem:[#allocation4 + %s974]]
        %s976 = sshra.s32 %s975, 3
        %s977 = sand.u32 %s975, 7
        %s978 = sshra.s32 %s975, 3
        %s979 = sand.u32 %s975, 7
        %s980 = smul.u32 %s976, 4
        %s981 = smul.u32 %s980, 8
        %s982 = sadd.s32 %s981, %s979
        %s983 = scalar_lea.vmem [#allocation5], %s982
        %v984 = vld [vmem:[%s983] ss:$8 sm:$0xf]
        %s985 = scalar_lea.vmem %s929, 4 [#allocation2]
        %986 = vst.msk [vmem:[%s985] ss:$8 sm:$0xf] %vm250, %v984
        %987 = vst.msk [vmem:[%s985] ss:$8 sm:$0x0] %vm250, %v984
        %s988 = sadd.s32 %s314, 6
        %s989 = sld [smem:[#allocation4 + %s988]]
        %s990 = sshra.s32 %s989, 3
        %s991 = sand.u32 %s989, 7
        %s992 = sshra.s32 %s989, 3
        %s993 = sand.u32 %s989, 7
        %s994 = smul.u32 %s990, 4
        %s995 = smul.u32 %s994, 8
        %s996 = sadd.s32 %s995, %s993
        %s997 = scalar_lea.vmem [#allocation5], %s996
        %v998 = vld [vmem:[%s997] ss:$8 sm:$0xf]
        %s999 = scalar_lea.vmem %s929, 5 [#allocation2]
        %1000 = vst.msk [vmem:[%s999] ss:$8 sm:$0xf] %vm250, %v998
        %1001 = vst.msk [vmem:[%s999] ss:$8 sm:$0x0] %vm250, %v998
        %s1002 = sadd.s32 %s329, 6
        %s1003 = sld [smem:[#allocation4 + %s1002]]
        %s1004 = sshra.s32 %s1003, 3
        %s1005 = sand.u32 %s1003, 7
        %s1006 = sshra.s32 %s1003, 3
        %s1007 = sand.u32 %s1003, 7
        %s1008 = smul.u32 %s1004, 4
        %s1009 = smul.u32 %s1008, 8
        %s1010 = sadd.s32 %s1009, %s1007
        %s1011 = scalar_lea.vmem [#allocation5], %s1010
        %v1012 = vld [vmem:[%s1011] ss:$8 sm:$0xf]
        %s1013 = scalar_lea.vmem %s929, 6 [#allocation2]
        %1014 = vst.msk [vmem:[%s1013] ss:$8 sm:$0xf] %vm250, %v1012
        %1015 = vst.msk [vmem:[%s1013] ss:$8 sm:$0x0] %vm250, %v1012
        %s1016 = sadd.s32 %s344, 6
        %s1017 = sld [smem:[#allocation4 + %s1016]]
        %s1018 = sshra.s32 %s1017, 3
        %s1019 = sand.u32 %s1017, 7
        %s1020 = sshra.s32 %s1017, 3
        %s1021 = sand.u32 %s1017, 7
        %s1022 = smul.u32 %s1018, 4
        %s1023 = smul.u32 %s1022, 8
        %s1024 = sadd.s32 %s1023, %s1021
        %s1025 = scalar_lea.vmem [#allocation5], %s1024
        %v1026 = vld [vmem:[%s1025] ss:$8 sm:$0xf]
        %s1027 = scalar_lea.vmem %s929, 7 [#allocation2]
        %1028 = vst.msk [vmem:[%s1027] ss:$8 sm:$0xf] %vm250, %v1026
        %1029 = vst.msk [vmem:[%s1027] ss:$8 sm:$0x0] %vm250, %v1026
        %s1030 = sadd.s32 %s236, 7
        %s1031 = sld [smem:[#allocation4 + %s1030]]
        %s1032 = sshra.s32 %s1031, 3
        %s1033 = sand.u32 %s1031, 7
        %s1034 = sshra.s32 %s1031, 3
        %s1035 = sand.u32 %s1031, 7
        %s1036 = smul.u32 %s1032, 4
        %s1037 = smul.u32 %s1036, 8
        %s1038 = sadd.s32 %s1037, %s1035
        %s1039 = scalar_lea.vmem [#allocation5], %s1038
        %v1040 = vld [vmem:[%s1039] ss:$8 sm:$0xf]
        %s1041 = scalar_lea.vmem [#allocation2], 224
        %1042 = vst.msk [vmem:[%s1041] ss:$8 sm:$0xf] %vm250, %v1040
        %1043 = vst.msk [vmem:[%s1041] ss:$8 sm:$0x0] %vm250, %v1040
        %s1044 = sadd.s32 %s254, 7
        %s1045 = sld [smem:[#allocation4 + %s1044]]
        %s1046 = sshra.s32 %s1045, 3
        %s1047 = sand.u32 %s1045, 7
        %s1048 = sshra.s32 %s1045, 3
        %s1049 = sand.u32 %s1045, 7
        %s1050 = smul.u32 %s1046, 4
        %s1051 = smul.u32 %s1050, 8
        %s1052 = sadd.s32 %s1051, %s1049
        %s1053 = scalar_lea.vmem [#allocation5], %s1052
        %v1054 = vld [vmem:[%s1053] ss:$8 sm:$0xf]
        %s1055 = scalar_lea.vmem %s1041, 1 [#allocation2]
        %1056 = vst.msk [vmem:[%s1055] ss:$8 sm:$0xf] %vm250, %v1054
        %1057 = vst.msk [vmem:[%s1055] ss:$8 sm:$0x0] %vm250, %v1054
        %s1058 = sadd.s32 %s269, 7
        %s1059 = sld [smem:[#allocation4 + %s1058]]
        %s1060 = sshra.s32 %s1059, 3
        %s1061 = sand.u32 %s1059, 7
        %s1062 = sshra.s32 %s1059, 3
        %s1063 = sand.u32 %s1059, 7
        %s1064 = smul.u32 %s1060, 4
        %s1065 = smul.u32 %s1064, 8
        %s1066 = sadd.s32 %s1065, %s1063
        %s1067 = scalar_lea.vmem [#allocation5], %s1066
        %v1068 = vld [vmem:[%s1067] ss:$8 sm:$0xf]
        %s1069 = scalar_lea.vmem %s1041, 2 [#allocation2]
        %1070 = vst.msk [vmem:[%s1069] ss:$8 sm:$0xf] %vm250, %v1068
        %1071 = vst.msk [vmem:[%s1069] ss:$8 sm:$0x0] %vm250, %v1068
        %s1072 = sadd.s32 %s284, 7
        %s1073 = sld [smem:[#allocation4 + %s1072]]
        %s1074 = sshra.s32 %s1073, 3
        %s1075 = sand.u32 %s1073, 7
        %s1076 = sshra.s32 %s1073, 3
        %s1077 = sand.u32 %s1073, 7
        %s1078 = smul.u32 %s1074, 4
        %s1079 = smul.u32 %s1078, 8
        %s1080 = sadd.s32 %s1079, %s1077
        %s1081 = scalar_lea.vmem [#allocation5], %s1080
        %v1082 = vld [vmem:[%s1081] ss:$8 sm:$0xf]
        %s1083 = scalar_lea.vmem %s1041, 3 [#allocation2]
        %1084 = vst.msk [vmem:[%s1083] ss:$8 sm:$0xf] %vm250, %v1082
        %1085 = vst.msk [vmem:[%s1083] ss:$8 sm:$0x0] %vm250, %v1082
        %s1086 = sadd.s32 %s299, 7
        %s1087 = sld [smem:[#allocation4 + %s1086]]
        %s1088 = sshra.s32 %s1087, 3
        %s1089 = sand.u32 %s1087, 7
        %s1090 = sshra.s32 %s1087, 3
        %s1091 = sand.u32 %s1087, 7
        %s1092 = smul.u32 %s1088, 4
        %s1093 = smul.u32 %s1092, 8
        %s1094 = sadd.s32 %s1093, %s1091
        %s1095 = scalar_lea.vmem [#allocation5], %s1094
        %v1096 = vld [vmem:[%s1095] ss:$8 sm:$0xf]
        %s1097 = scalar_lea.vmem %s1041, 4 [#allocation2]
        %1098 = vst.msk [vmem:[%s1097] ss:$8 sm:$0xf] %vm250, %v1096
        %1099 = vst.msk [vmem:[%s1097] ss:$8 sm:$0x0] %vm250, %v1096
        %s1100 = sadd.s32 %s314, 7
        %s1101 = sld [smem:[#allocation4 + %s1100]]
        %s1102 = sshra.s32 %s1101, 3
        %s1103 = sand.u32 %s1101, 7
        %s1104 = sshra.s32 %s1101, 3
        %s1105 = sand.u32 %s1101, 7
        %s1106 = smul.u32 %s1102, 4
        %s1107 = smul.u32 %s1106, 8
        %s1108 = sadd.s32 %s1107, %s1105
        %s1109 = scalar_lea.vmem [#allocation5], %s1108
        %v1110 = vld [vmem:[%s1109] ss:$8 sm:$0xf]
        %s1111 = scalar_lea.vmem %s1041, 5 [#allocation2]
        %1112 = vst.msk [vmem:[%s1111] ss:$8 sm:$0xf] %vm250, %v1110
        %1113 = vst.msk [vmem:[%s1111] ss:$8 sm:$0x0] %vm250, %v1110
        %s1114 = sadd.s32 %s329, 7
        %s1115 = sld [smem:[#allocation4 + %s1114]]
        %s1116 = sshra.s32 %s1115, 3
        %s1117 = sand.u32 %s1115, 7
        %s1118 = sshra.s32 %s1115, 3
        %s1119 = sand.u32 %s1115, 7
        %s1120 = smul.u32 %s1116, 4
        %s1121 = smul.u32 %s1120, 8
        %s1122 = sadd.s32 %s1121, %s1119
        %s1123 = scalar_lea.vmem [#allocation5], %s1122
        %v1124 = vld [vmem:[%s1123] ss:$8 sm:$0xf]
        %s1125 = scalar_lea.vmem %s1041, 6 [#allocation2]
        %1126 = vst.msk [vmem:[%s1125] ss:$8 sm:$0xf] %vm250, %v1124
        %1127 = vst.msk [vmem:[%s1125] ss:$8 sm:$0x0] %vm250, %v1124
        %s1128 = sadd.s32 %s344, 7
        %s1129 = sld [smem:[#allocation4 + %s1128]]
        %s1130 = sshra.s32 %s1129, 3
        %s1131 = sand.u32 %s1129, 7
        %s1132 = sshra.s32 %s1129, 3
        %s1133 = sand.u32 %s1129, 7
        %s1134 = smul.u32 %s1130, 4
        %s1135 = smul.u32 %s1134, 8
        %s1136 = sadd.s32 %s1135, %s1133
        %s1137 = scalar_lea.vmem [#allocation5], %s1136
        %v1138 = vld [vmem:[%s1137] ss:$8 sm:$0xf]
        %s1139 = scalar_lea.vmem %s1041, 7 [#allocation2]
        %1140 = vst.msk [vmem:[%s1139] ss:$8 sm:$0xf] %vm250, %v1138
        %1141 = vst.msk [vmem:[%s1139] ss:$8 sm:$0x0] %vm250, %v1138
        %v1142 = vld [vmem:[#allocation2] sm:$0xff]
        %v1143 = vld [vmem:[#allocation2 + $0x8] sm:$0xff]
        %v1144 = vld [vmem:[#allocation2 + $0x10] sm:$0xff]
        %v1145 = vld [vmem:[#allocation2 + $0x18] sm:$0xff]
        %v1146 = vld [vmem:[#allocation8] sm:$0xff]
        %v1147 = vld [vmem:[#allocation8 + $0x8] sm:$0xff]
        %v1148 = vld [vmem:[#allocation8 + $0x10] sm:$0xff]
        %v1149 = vld [vmem:[#allocation8 + $0x18] sm:$0xff]
        %v1150 = vld [vmem:[#allocation8 + $0x20] sm:$0xff]
        %v1151 = vld [vmem:[#allocation8 + $0x28] sm:$0xff]
        %v1152 = vld [vmem:[#allocation8 + $0x30] sm:$0xff]
        %v1153 = vld [vmem:[#allocation8 + $0x38] sm:$0xff]
        %v1154 = vld [vmem:[#allocation8 + $0x40] sm:$0xff]
        %v1155 = vld [vmem:[#allocation8 + $0x48] sm:$0xff]
        %v1156 = vld [vmem:[#allocation8 + $0x50] sm:$0xff]
        %v1157 = vld [vmem:[#allocation8 + $0x58] sm:$0xff]
        %v1158 = vld [vmem:[#allocation8 + $0x60] sm:$0xff]
        %v1159 = vld [vmem:[#allocation8 + $0x68] sm:$0xff]
        %v1160 = vld [vmem:[#allocation8 + $0x70] sm:$0xff]
        %v1161 = vld [vmem:[#allocation8 + $0x78] sm:$0xff]
        %v1162 = vld [vmem:[#allocation8 + $0x80] sm:$0xff]
        %v1163 = vld [vmem:[#allocation8 + $0x88] sm:$0xff]
        %v1164 = vld [vmem:[#allocation8 + $0x90] sm:$0xff]
        %v1165 = vld [vmem:[#allocation8 + $0x98] sm:$0xff]
        %v1166 = vld [vmem:[#allocation8 + $0xa0] sm:$0xff]
        %v1167 = vld [vmem:[#allocation8 + $0xa8] sm:$0xff]
        %v1168 = vld [vmem:[#allocation8 + $0xb0] sm:$0xff]
        %v1169 = vld [vmem:[#allocation8 + $0xb8] sm:$0xff]
        %v1170 = vld [vmem:[#allocation8 + $0xc0] sm:$0xff]
        %v1171 = vld [vmem:[#allocation8 + $0xc8] sm:$0xff]
        %v1172 = vld [vmem:[#allocation8 + $0xd0] sm:$0xff]
        %v1173 = vld [vmem:[#allocation8 + $0xd8] sm:$0xff]
        %v1174 = vld [vmem:[#allocation8 + $0xe0] sm:$0xff]
        %v1175 = vld [vmem:[#allocation8 + $0xe8] sm:$0xff]
        %v1176 = vld [vmem:[#allocation8 + $0xf0] sm:$0xff]
        %v1177 = vld [vmem:[#allocation8 + $0xf8] sm:$0xff]
        %v1178 = vld [vmem:[#allocation8 + $0x100] sm:$0xff]
        %v1179 = vld [vmem:[#allocation8 + $0x108] sm:$0xff]
        %v1180 = vld [vmem:[#allocation8 + $0x110] sm:$0xff]
        %v1181 = vld [vmem:[#allocation8 + $0x118] sm:$0xff]
        %v1182 = vld [vmem:[#allocation8 + $0x120] sm:$0xff]
        %v1183 = vld [vmem:[#allocation8 + $0x128] sm:$0xff]
        %v1184 = vld [vmem:[#allocation8 + $0x130] sm:$0xff]
        %v1185 = vld [vmem:[#allocation8 + $0x138] sm:$0xff]
        %v1186 = vld [vmem:[#allocation8 + $0x140] sm:$0xff]
        %v1187 = vld [vmem:[#allocation8 + $0x148] sm:$0xff]
        %v1188 = vld [vmem:[#allocation8 + $0x150] sm:$0xff]
        %v1189 = vld [vmem:[#allocation8 + $0x158] sm:$0xff]
        %v1190 = vld [vmem:[#allocation8 + $0x160] sm:$0xff]
        %v1191 = vld [vmem:[#allocation8 + $0x168] sm:$0xff]
        %v1192 = vld [vmem:[#allocation8 + $0x170] sm:$0xff]
        %v1193 = vld [vmem:[#allocation8 + $0x178] sm:$0xff]
        %v1194 = vld [vmem:[#allocation8 + $0x180] sm:$0xff]
        %v1195 = vld [vmem:[#allocation8 + $0x188] sm:$0xff]
        %v1196 = vld [vmem:[#allocation8 + $0x190] sm:$0xff]
        %v1197 = vld [vmem:[#allocation8 + $0x198] sm:$0xff]
        %v1198 = vld [vmem:[#allocation8 + $0x1a0] sm:$0xff]
        %v1199 = vld [vmem:[#allocation8 + $0x1a8] sm:$0xff]
        %v1200 = vld [vmem:[#allocation8 + $0x1b0] sm:$0xff]
        %v1201 = vld [vmem:[#allocation8 + $0x1b8] sm:$0xff]
        %v1202 = vld [vmem:[#allocation8 + $0x1c0] sm:$0xff]
        %v1203 = vld [vmem:[#allocation8 + $0x1c8] sm:$0xff]
        %v1204 = vld [vmem:[#allocation8 + $0x1d0] sm:$0xff]
        %v1205 = vld [vmem:[#allocation8 + $0x1d8] sm:$0xff]
        %v1206 = vld [vmem:[#allocation8 + $0x1e0] sm:$0xff]
        %v1207 = vld [vmem:[#allocation8 + $0x1e8] sm:$0xff]
        %v1208 = vld [vmem:[#allocation8 + $0x1f0] sm:$0xff]
        %v1209 = vld [vmem:[#allocation8 + $0x1f8] sm:$0xff]
        %1210 = vmatpush.msra.mxu0 %v1206
        %1211 = vmatpush.msra.mxu0 %v1202
        %1212 = vmatpush.msra.mxu0 %v1198
        %1213 = vmatpush.msra.mxu0 %v1194
        %1214 = vmatpush.msra.mxu0 %v1190
        %1215 = vmatpush.msra.mxu0 %v1186
        %1216 = vmatpush.msra.mxu0 %v1182
        %1217 = vmatpush.msra.mxu0 %v1178
        %1218 = vmatpush.msra.mxu0 %v1174
        %1219 = vmatpush.msra.mxu0 %v1170
        %1220 = vmatpush.msra.mxu0 %v1166
        %1221 = vmatpush.msra.mxu0 %v1162
        %1222 = vmatpush.msra.mxu0 %v1158
        %1223 = vmatpush.msra.mxu0 %v1154
        %1224 = vmatpush.msra.mxu0 %v1150
        %1225 = vmatpush.msra.mxu0 %v1146
        %1226 = vmatmul.f32.gmra.mxu0 0.0
        %v1227 = vpop.f32.mrf.mxu0
        %v1228 = vadd.f32 0.0, %v1227
        %1229 = vdwg.mxu0
        %1230 = vmatpush.msra.mxu0 %v1207
        %1231 = vmatpush.msra.mxu0 %v1203
        %1232 = vmatpush.msra.mxu0 %v1199
        %1233 = vmatpush.msra.mxu0 %v1195
        %1234 = vmatpush.msra.mxu0 %v1191
        %1235 = vmatpush.msra.mxu0 %v1187
        %1236 = vmatpush.msra.mxu0 %v1183
        %1237 = vmatpush.msra.mxu0 %v1179
        %1238 = vmatpush.msra.mxu0 %v1175
        %1239 = vmatpush.msra.mxu0 %v1171
        %1240 = vmatpush.msra.mxu0 %v1167
        %1241 = vmatpush.msra.mxu0 %v1163
        %1242 = vmatpush.msra.mxu0 %v1159
        %1243 = vmatpush.msra.mxu0 %v1155
        %1244 = vmatpush.msra.mxu0 %v1151
        %1245 = vmatpush.msra.mxu0 %v1147
        %1246 = vmatmul.f32.gmra.mxu0 0.0
        %v1247 = vpop.f32.mrf.mxu0
        %v1248 = vadd.f32 0.0, %v1247
        %1249 = vdwg.mxu0
        %1250 = vmatpush.msra.mxu0 %v1208
        %1251 = vmatpush.msra.mxu0 %v1204
        %1252 = vmatpush.msra.mxu0 %v1200
        %1253 = vmatpush.msra.mxu0 %v1196
        %1254 = vmatpush.msra.mxu0 %v1192
        %1255 = vmatpush.msra.mxu0 %v1188
        %1256 = vmatpush.msra.mxu0 %v1184
        %1257 = vmatpush.msra.mxu0 %v1180
        %1258 = vmatpush.msra.mxu0 %v1176
        %1259 = vmatpush.msra.mxu0 %v1172
        %1260 = vmatpush.msra.mxu0 %v1168
        %1261 = vmatpush.msra.mxu0 %v1164
        %1262 = vmatpush.msra.mxu0 %v1160
        %1263 = vmatpush.msra.mxu0 %v1156
        %1264 = vmatpush.msra.mxu0 %v1152
        %1265 = vmatpush.msra.mxu0 %v1148
        %1266 = vmatmul.f32.gmra.mxu0 0.0
        %v1267 = vpop.f32.mrf.mxu0
        %v1268 = vadd.f32 0.0, %v1267
        %1269 = vdwg.mxu0
        %1270 = vmatpush.msra.mxu0 %v1209
        %1271 = vmatpush.msra.mxu0 %v1205
        %1272 = vmatpush.msra.mxu0 %v1201
        %1273 = vmatpush.msra.mxu0 %v1197
        %1274 = vmatpush.msra.mxu0 %v1193
        %1275 = vmatpush.msra.mxu0 %v1189
        %1276 = vmatpush.msra.mxu0 %v1185
        %1277 = vmatpush.msra.mxu0 %v1181
        %1278 = vmatpush.msra.mxu0 %v1177
        %1279 = vmatpush.msra.mxu0 %v1173
        %1280 = vmatpush.msra.mxu0 %v1169
        %1281 = vmatpush.msra.mxu0 %v1165
        %1282 = vmatpush.msra.mxu0 %v1161
        %1283 = vmatpush.msra.mxu0 %v1157
        %1284 = vmatpush.msra.mxu0 %v1153
        %1285 = vmatpush.msra.mxu0 %v1149
        %1286 = vmatmul.f32.gmra.mxu0 0.0
        %v1287 = vpop.f32.mrf.mxu0
        %v1288 = vadd.f32 0.0, %v1287
        %1289 = vdwg.mxu0
        %v1290 = vadd.f32 %v1142, %v1228
        %v1291 = vadd.f32 %v1143, %v1248
        %v1292 = vadd.f32 %v1144, %v1268
        %v1293 = vadd.f32 %v1145, %v1288
        %v1294 = vxor.u32 %v1290, 2147483648
        %v1295 = vxor.u32 %v1291, 2147483648
        %v1296 = vxor.u32 %v1292, 2147483648
        %v1297 = vmul.f32 %v1294, 1.442695
        %v1298 = vpow.pop %v1297
        %v1299 = vmul.f32 %v1295, 1.442695
        %v1300 = vpow.pop %v1299
        %v1301 = vmul.f32 %v1296, 1.442695
        %v1302 = vpow.pop %v1301
        %v1303 = vadd.f32 %v1298, 1.0
        %v1304 = vadd.f32 %v1300, 1.0
        %v1305 = vadd.f32 %v1302, 1.0
        %v1306 = vrcp.pop %v1303
        %v1307 = vmul.f32 %v1303, %v1306
        %v1308 = vsub.f32 1.0, %v1307
        %v1309 = vmul.f32 %v1306, %v1308
        %v1310 = vadd.f32 %v1306, %v1309
        %vm1311 = vweird.f32 %v1303
        %vm1312 = vweird.f32 %v1306
        %vm1313 = vmor %vm1311, %vm1312
        %v1314 = vsel %vm1313, %v1306, %v1310
        %v1315 = vand.u32 2147483647, %v1303
        %vm1316 = vcmp.eq.f32.partialorder %v1315, 8.507059e+37
        %v1317 = vand.u32 %v1303, 2147483648
        %v1318 = vor.u32 1.1754944e-38, %v1317
        %v1319 = vsel %vm1316, %v1318, %v1314
        %v1320 = vmul.f32 1.0, %v1319
        %v1321 = vrcp.pop %v1304
        %v1322 = vmul.f32 %v1304, %v1321
        %v1323 = vsub.f32 1.0, %v1322
        %v1324 = vmul.f32 %v1321, %v1323
        %v1325 = vadd.f32 %v1321, %v1324
        %vm1326 = vweird.f32 %v1304
        %vm1327 = vweird.f32 %v1321
        %vm1328 = vmor %vm1326, %vm1327
        %v1329 = vsel %vm1328, %v1321, %v1325
        %v1330 = vand.u32 2147483647, %v1304
        %vm1331 = vcmp.eq.f32.partialorder %v1330, 8.507059e+37
        %v1332 = vand.u32 %v1304, 2147483648
        %v1333 = vor.u32 1.1754944e-38, %v1332
        %v1334 = vsel %vm1331, %v1333, %v1329
        %v1335 = vmul.f32 1.0, %v1334
        %v1336 = vrcp.pop %v1305
        %v1337 = vmul.f32 %v1305, %v1336
        %v1338 = vsub.f32 1.0, %v1337
        %v1339 = vmul.f32 %v1336, %v1338
        %v1340 = vadd.f32 %v1336, %v1339
        %vm1341 = vweird.f32 %v1305
        %vm1342 = vweird.f32 %v1336
        %vm1343 = vmor %vm1341, %vm1342
        %v1344 = vsel %vm1343, %v1336, %v1340
        %v1345 = vand.u32 2147483647, %v1305
        %vm1346 = vcmp.eq.f32.partialorder %v1345, 8.507059e+37
        %v1347 = vand.u32 %v1305, 2147483648
        %v1348 = vor.u32 1.1754944e-38, %v1347
        %v1349 = vsel %vm1346, %v1348, %v1344
        %v1350 = vmul.f32 1.0, %v1349
        %v1351 = vtanh.pop %v1293
        %v1352 = vmul.f32 %v1335, 0.0
        %v1353 = vmul.f32 %v1320, %v1351
        %v1354 = vadd.f32 %v1352, %v1353
        %v1355 = vtanh.pop %v1354
        %v1356 = vmul.f32 %v1350, %v1355
        %v1357 = vld [vmem:[%s369] sm:$0xff]
        %v1358 = vld [vmem:[%s369 + $0x8] sm:$0xff]
        %v1359 = vld [vmem:[%s369 + $0x10] sm:$0xff]
        %v1360 = vld [vmem:[%s369 + $0x18] sm:$0xff]
        %1361 = vmatpush.msra.mxu0 %v1206
        %1362 = vmatpush.msra.mxu0 %v1202
        %1363 = vmatpush.msra.mxu0 %v1198
        %1364 = vmatpush.msra.mxu0 %v1194
        %1365 = vmatpush.msra.mxu0 %v1190
        %1366 = vmatpush.msra.mxu0 %v1186
        %1367 = vmatpush.msra.mxu0 %v1182
        %1368 = vmatpush.msra.mxu0 %v1178
        %1369 = vmatpush.msra.mxu0 %v1174
        %1370 = vmatpush.msra.mxu0 %v1170
        %1371 = vmatpush.msra.mxu0 %v1166
        %1372 = vmatpush.msra.mxu0 %v1162
        %1373 = vmatpush.msra.mxu0 %v1158
        %1374 = vmatpush.msra.mxu0 %v1154
        %1375 = vmatpush.msra.mxu0 %v1150
        %1376 = vmatpush.msra.mxu0 %v1146
        %1377 = vmatmul.f32.gmra.mxu0 %v1356
        %v1378 = vpop.f32.mrf.mxu0
        %v1379 = vadd.f32 0.0, %v1378
        %1380 = vdwg.mxu0
        %1381 = vmatpush.msra.mxu0 %v1207
        %1382 = vmatpush.msra.mxu0 %v1203
        %1383 = vmatpush.msra.mxu0 %v1199
        %1384 = vmatpush.msra.mxu0 %v1195
        %1385 = vmatpush.msra.mxu0 %v1191
        %1386 = vmatpush.msra.mxu0 %v1187
        %1387 = vmatpush.msra.mxu0 %v1183
        %1388 = vmatpush.msra.mxu0 %v1179
        %1389 = vmatpush.msra.mxu0 %v1175
        %1390 = vmatpush.msra.mxu0 %v1171
        %1391 = vmatpush.msra.mxu0 %v1167
        %1392 = vmatpush.msra.mxu0 %v1163
        %1393 = vmatpush.msra.mxu0 %v1159
        %1394 = vmatpush.msra.mxu0 %v1155
        %1395 = vmatpush.msra.mxu0 %v1151
        %1396 = vmatpush.msra.mxu0 %v1147
        %1397 = vmatmul.f32.gmra.mxu0 %v1356
        %v1398 = vpop.f32.mrf.mxu0
        %v1399 = vadd.f32 0.0, %v1398
        %1400 = vdwg.mxu0
        %1401 = vmatpush.msra.mxu0 %v1208
        %1402 = vmatpush.msra.mxu0 %v1204
        %1403 = vmatpush.msra.mxu0 %v1200
        %1404 = vmatpush.msra.mxu0 %v1196
        %1405 = vmatpush.msra.mxu0 %v1192
        %1406 = vmatpush.msra.mxu0 %v1188
        %1407 = vmatpush.msra.mxu0 %v1184
        %1408 = vmatpush.msra.mxu0 %v1180
        %1409 = vmatpush.msra.mxu0 %v1176
        %1410 = vmatpush.msra.mxu0 %v1172
        %1411 = vmatpush.msra.mxu0 %v1168
        %1412 = vmatpush.msra.mxu0 %v1164
        %1413 = vmatpush.msra.mxu0 %v1160
        %1414 = vmatpush.msra.mxu0 %v1156
        %1415 = vmatpush.msra.mxu0 %v1152
        %1416 = vmatpush.msra.mxu0 %v1148
        %1417 = vmatmul.f32.gmra.mxu0 %v1356
        %v1418 = vpop.f32.mrf.mxu0
        %v1419 = vadd.f32 0.0, %v1418
        %1420 = vdwg.mxu0
        %1421 = vmatpush.msra.mxu0 %v1209
        %1422 = vmatpush.msra.mxu0 %v1205
        %1423 = vmatpush.msra.mxu0 %v1201
        %1424 = vmatpush.msra.mxu0 %v1197
        %1425 = vmatpush.msra.mxu0 %v1193
        %1426 = vmatpush.msra.mxu0 %v1189
        %1427 = vmatpush.msra.mxu0 %v1185
        %1428 = vmatpush.msra.mxu0 %v1181
        %1429 = vmatpush.msra.mxu0 %v1177
        %1430 = vmatpush.msra.mxu0 %v1173
        %1431 = vmatpush.msra.mxu0 %v1169
        %1432 = vmatpush.msra.mxu0 %v1165
        %1433 = vmatpush.msra.mxu0 %v1161
        %1434 = vmatpush.msra.mxu0 %v1157
        %1435 = vmatpush.msra.mxu0 %v1153
        %1436 = vmatpush.msra.mxu0 %v1149
        %1437 = vmatmul.f32.gmra.mxu0 %v1356
        %v1438 = vpop.f32.mrf.mxu0
        %v1439 = vadd.f32 0.0, %v1438
        %1440 = vdwg.mxu0
        %v1441 = vadd.f32 %v1357, %v1379
        %v1442 = vadd.f32 %v1358, %v1399
        %v1443 = vadd.f32 %v1359, %v1419
        %v1444 = vadd.f32 %v1360, %v1439
        %v1445 = vxor.u32 %v1441, 2147483648
        %v1446 = vxor.u32 %v1442, 2147483648
        %v1447 = vxor.u32 %v1443, 2147483648
        %v1448 = vmul.f32 %v1445, 1.442695
        %v1449 = vpow.pop %v1448
        %v1450 = vmul.f32 %v1446, 1.442695
        %v1451 = vpow.pop %v1450
        %v1452 = vmul.f32 %v1447, 1.442695
        %v1453 = vpow.pop %v1452
        %v1454 = vadd.f32 %v1449, 1.0
        %v1455 = vadd.f32 %v1451, 1.0
        %v1456 = vadd.f32 %v1453, 1.0
        %v1457 = vrcp.pop %v1454
        %v1458 = vmul.f32 %v1454, %v1457
        %v1459 = vsub.f32 1.0, %v1458
        %v1460 = vmul.f32 %v1457, %v1459
        %v1461 = vadd.f32 %v1457, %v1460
        %vm1462 = vweird.f32 %v1454
        %vm1463 = vweird.f32 %v1457
        %vm1464 = vmor %vm1462, %vm1463
        %v1465 = vsel %vm1464, %v1457, %v1461
        %v1466 = vand.u32 2147483647, %v1454
        %vm1467 = vcmp.eq.f32.partialorder %v1466, 8.507059e+37
        %v1468 = vand.u32 %v1454, 2147483648
        %v1469 = vor.u32 1.1754944e-38, %v1468
        %v1470 = vsel %vm1467, %v1469, %v1465
        %v1471 = vmul.f32 1.0, %v1470
        %v1472 = vrcp.pop %v1455
        %v1473 = vmul.f32 %v1455, %v1472
        %v1474 = vsub.f32 1.0, %v1473
        %v1475 = vmul.f32 %v1472, %v1474
        %v1476 = vadd.f32 %v1472, %v1475
        %vm1477 = vweird.f32 %v1455
        %vm1478 = vweird.f32 %v1472
        %vm1479 = vmor %vm1477, %vm1478
        %v1480 = vsel %vm1479, %v1472, %v1476
        %v1481 = vand.u32 2147483647, %v1455
        %vm1482 = vcmp.eq.f32.partialorder %v1481, 8.507059e+37
        %v1483 = vand.u32 %v1455, 2147483648
        %v1484 = vor.u32 1.1754944e-38, %v1483
        %v1485 = vsel %vm1482, %v1484, %v1480
        %v1486 = vmul.f32 1.0, %v1485
        %v1487 = vrcp.pop %v1456
        %v1488 = vmul.f32 %v1456, %v1487
        %v1489 = vsub.f32 1.0, %v1488
        %v1490 = vmul.f32 %v1487, %v1489
        %v1491 = vadd.f32 %v1487, %v1490
        %vm1492 = vweird.f32 %v1456
        %vm1493 = vweird.f32 %v1487
        %vm1494 = vmor %vm1492, %vm1493
        %v1495 = vsel %vm1494, %v1487, %v1491
        %v1496 = vand.u32 2147483647, %v1456
        %vm1497 = vcmp.eq.f32.partialorder %v1496, 8.507059e+37
        %v1498 = vand.u32 %v1456, 2147483648
        %v1499 = vor.u32 1.1754944e-38, %v1498
        %v1500 = vsel %vm1497, %v1499, %v1495
        %v1501 = vmul.f32 1.0, %v1500
        %v1502 = vtanh.pop %v1444
        %v1503 = vmul.f32 %v1486, %v1354
        %v1504 = vmul.f32 %v1471, %v1502
        %v1505 = vadd.f32 %v1503, %v1504
        %v1506 = vtanh.pop %v1505
        %v1507 = vmul.f32 %v1501, %v1506
        %v1508 = vld [vmem:[%s481] sm:$0xff]
        %v1509 = vld [vmem:[%s481 + $0x8] sm:$0xff]
        %v1510 = vld [vmem:[%s481 + $0x10] sm:$0xff]
        %v1511 = vld [vmem:[%s481 + $0x18] sm:$0xff]
        %1512 = vmatpush.msra.mxu0 %v1206
        %1513 = vmatpush.msra.mxu0 %v1202
        %1514 = vmatpush.msra.mxu0 %v1198
        %1515 = vmatpush.msra.mxu0 %v1194
        %1516 = vmatpush.msra.mxu0 %v1190
        %1517 = vmatpush.msra.mxu0 %v1186
        %1518 = vmatpush.msra.mxu0 %v1182
        %1519 = vmatpush.msra.mxu0 %v1178
        %1520 = vmatpush.msra.mxu0 %v1174
        %1521 = vmatpush.msra.mxu0 %v1170
        %1522 = vmatpush.msra.mxu0 %v1166
        %1523 = vmatpush.msra.mxu0 %v1162
        %1524 = vmatpush.msra.mxu0 %v1158
        %1525 = vmatpush.msra.mxu0 %v1154
        %1526 = vmatpush.msra.mxu0 %v1150
        %1527 = vmatpush.msra.mxu0 %v1146
        %1528 = vmatmul.f32.gmra.mxu0 %v1507
        %v1529 = vpop.f32.mrf.mxu0
        %v1530 = vadd.f32 0.0, %v1529
        %1531 = vdwg.mxu0
        %1532 = vmatpush.msra.mxu0 %v1207
        %1533 = vmatpush.msra.mxu0 %v1203
        %1534 = vmatpush.msra.mxu0 %v1199
        %1535 = vmatpush.msra.mxu0 %v1195
        %1536 = vmatpush.msra.mxu0 %v1191
        %1537 = vmatpush.msra.mxu0 %v1187
        %1538 = vmatpush.msra.mxu0 %v1183
        %1539 = vmatpush.msra.mxu0 %v1179
        %1540 = vmatpush.msra.mxu0 %v1175
        %1541 = vmatpush.msra.mxu0 %v1171
        %1542 = vmatpush.msra.mxu0 %v1167
        %1543 = vmatpush.msra.mxu0 %v1163
        %1544 = vmatpush.msra.mxu0 %v1159
        %1545 = vmatpush.msra.mxu0 %v1155
        %1546 = vmatpush.msra.mxu0 %v1151
        %1547 = vmatpush.msra.mxu0 %v1147
        %1548 = vmatmul.f32.gmra.mxu0 %v1507
        %v1549 = vpop.f32.mrf.mxu0
        %v1550 = vadd.f32 0.0, %v1549
        %1551 = vdwg.mxu0
        %1552 = vmatpush.msra.mxu0 %v1208
        %1553 = vmatpush.msra.mxu0 %v1204
        %1554 = vmatpush.msra.mxu0 %v1200
        %1555 = vmatpush.msra.mxu0 %v1196
        %1556 = vmatpush.msra.mxu0 %v1192
        %1557 = vmatpush.msra.mxu0 %v1188
        %1558 = vmatpush.msra.mxu0 %v1184
        %1559 = vmatpush.msra.mxu0 %v1180
        %1560 = vmatpush.msra.mxu0 %v1176
        %1561 = vmatpush.msra.mxu0 %v1172
        %1562 = vmatpush.msra.mxu0 %v1168
        %1563 = vmatpush.msra.mxu0 %v1164
        %1564 = vmatpush.msra.mxu0 %v1160
        %1565 = vmatpush.msra.mxu0 %v1156
        %1566 = vmatpush.msra.mxu0 %v1152
        %1567 = vmatpush.msra.mxu0 %v1148
        %1568 = vmatmul.f32.gmra.mxu0 %v1507
        %v1569 = vpop.f32.mrf.mxu0
        %v1570 = vadd.f32 0.0, %v1569
        %1571 = vdwg.mxu0
        %1572 = vmatpush.msra.mxu0 %v1209
        %1573 = vmatpush.msra.mxu0 %v1205
        %1574 = vmatpush.msra.mxu0 %v1201
        %1575 = vmatpush.msra.mxu0 %v1197
        %1576 = vmatpush.msra.mxu0 %v1193
        %1577 = vmatpush.msra.mxu0 %v1189
        %1578 = vmatpush.msra.mxu0 %v1185
        %1579 = vmatpush.msra.mxu0 %v1181
        %1580 = vmatpush.msra.mxu0 %v1177
        %1581 = vmatpush.msra.mxu0 %v1173
        %1582 = vmatpush.msra.mxu0 %v1169
        %1583 = vmatpush.msra.mxu0 %v1165
        %1584 = vmatpush.msra.mxu0 %v1161
        %1585 = vmatpush.msra.mxu0 %v1157
        %1586 = vmatpush.msra.mxu0 %v1153
        %1587 = vmatpush.msra.mxu0 %v1149
        %1588 = vmatmul.f32.gmra.mxu0 %v1507
        %v1589 = vpop.f32.mrf.mxu0
        %v1590 = vadd.f32 0.0, %v1589
        %1591 = vdwg.mxu0
        %v1592 = vadd.f32 %v1508, %v1530
        %v1593 = vadd.f32 %v1509, %v1550
        %v1594 = vadd.f32 %v1510, %v1570
        %v1595 = vadd.f32 %v1511, %v1590
        %v1596 = vxor.u32 %v1592, 2147483648
        %v1597 = vxor.u32 %v1593, 2147483648
        %v1598 = vxor.u32 %v1594, 2147483648
        %v1599 = vmul.f32 %v1596, 1.442695
        %v1600 = vpow.pop %v1599
        %v1601 = vmul.f32 %v1597, 1.442695
        %v1602 = vpow.pop %v1601
        %v1603 = vmul.f32 %v1598, 1.442695
        %v1604 = vpow.pop %v1603
        %v1605 = vadd.f32 %v1600, 1.0
        %v1606 = vadd.f32 %v1602, 1.0
        %v1607 = vadd.f32 %v1604, 1.0
        %v1608 = vrcp.pop %v1605
        %v1609 = vmul.f32 %v1605, %v1608
        %v1610 = vsub.f32 1.0, %v1609
        %v1611 = vmul.f32 %v1608, %v1610
        %v1612 = vadd.f32 %v1608, %v1611
        %vm1613 = vweird.f32 %v1605
        %vm1614 = vweird.f32 %v1608
        %vm1615 = vmor %vm1613, %vm1614
        %v1616 = vsel %vm1615, %v1608, %v1612
        %v1617 = vand.u32 2147483647, %v1605
        %vm1618 = vcmp.eq.f32.partialorder %v1617, 8.507059e+37
        %v1619 = vand.u32 %v1605, 2147483648
        %v1620 = vor.u32 1.1754944e-38, %v1619
        %v1621 = vsel %vm1618, %v1620, %v1616
        %v1622 = vmul.f32 1.0, %v1621
        %v1623 = vrcp.pop %v1606
        %v1624 = vmul.f32 %v1606, %v1623
        %v1625 = vsub.f32 1.0, %v1624
        %v1626 = vmul.f32 %v1623, %v1625
        %v1627 = vadd.f32 %v1623, %v1626
        %vm1628 = vweird.f32 %v1606
        %vm1629 = vweird.f32 %v1623
        %vm1630 = vmor %vm1628, %vm1629
        %v1631 = vsel %vm1630, %v1623, %v1627
        %v1632 = vand.u32 2147483647, %v1606
        %vm1633 = vcmp.eq.f32.partialorder %v1632, 8.507059e+37
        %v1634 = vand.u32 %v1606, 2147483648
        %v1635 = vor.u32 1.1754944e-38, %v1634
        %v1636 = vsel %vm1633, %v1635, %v1631
        %v1637 = vmul.f32 1.0, %v1636
        %v1638 = vrcp.pop %v1607
        %v1639 = vmul.f32 %v1607, %v1638
        %v1640 = vsub.f32 1.0, %v1639
        %v1641 = vmul.f32 %v1638, %v1640
        %v1642 = vadd.f32 %v1638, %v1641
        %vm1643 = vweird.f32 %v1607
        %vm1644 = vweird.f32 %v1638
        %vm1645 = vmor %vm1643, %vm1644
        %v1646 = vsel %vm1645, %v1638, %v1642
        %v1647 = vand.u32 2147483647, %v1607
        %vm1648 = vcmp.eq.f32.partialorder %v1647, 8.507059e+37
        %v1649 = vand.u32 %v1607, 2147483648
        %v1650 = vor.u32 1.1754944e-38, %v1649
        %v1651 = vsel %vm1648, %v1650, %v1646
        %v1652 = vmul.f32 1.0, %v1651
        %v1653 = vtanh.pop %v1595
        %v1654 = vmul.f32 %v1637, %v1505
        %v1655 = vmul.f32 %v1622, %v1653
        %v1656 = vadd.f32 %v1654, %v1655
        %v1657 = vtanh.pop %v1656
        %v1658 = vmul.f32 %v1652, %v1657
        %v1659 = vld [vmem:[%s593] sm:$0xff]
        %v1660 = vld [vmem:[%s593 + $0x8] sm:$0xff]
        %v1661 = vld [vmem:[%s593 + $0x10] sm:$0xff]
        %v1662 = vld [vmem:[%s593 + $0x18] sm:$0xff]
        %1663 = vmatpush.msra.mxu0 %v1206
        %1664 = vmatpush.msra.mxu0 %v1202
        %1665 = vmatpush.msra.mxu0 %v1198
        %1666 = vmatpush.msra.mxu0 %v1194
        %1667 = vmatpush.msra.mxu0 %v1190
        %1668 = vmatpush.msra.mxu0 %v1186
        %1669 = vmatpush.msra.mxu0 %v1182
        %1670 = vmatpush.msra.mxu0 %v1178
        %1671 = vmatpush.msra.mxu0 %v1174
        %1672 = vmatpush.msra.mxu0 %v1170
        %1673 = vmatpush.msra.mxu0 %v1166
        %1674 = vmatpush.msra.mxu0 %v1162
        %1675 = vmatpush.msra.mxu0 %v1158
        %1676 = vmatpush.msra.mxu0 %v1154
        %1677 = vmatpush.msra.mxu0 %v1150
        %1678 = vmatpush.msra.mxu0 %v1146
        %1679 = vmatmul.f32.gmra.mxu0 %v1658
        %v1680 = vpop.f32.mrf.mxu0
        %v1681 = vadd.f32 0.0, %v1680
        %1682 = vdwg.mxu0
        %1683 = vmatpush.msra.mxu0 %v1207
        %1684 = vmatpush.msra.mxu0 %v1203
        %1685 = vmatpush.msra.mxu0 %v1199
        %1686 = vmatpush.msra.mxu0 %v1195
        %1687 = vmatpush.msra.mxu0 %v1191
        %1688 = vmatpush.msra.mxu0 %v1187
        %1689 = vmatpush.msra.mxu0 %v1183
        %1690 = vmatpush.msra.mxu0 %v1179
        %1691 = vmatpush.msra.mxu0 %v1175
        %1692 = vmatpush.msra.mxu0 %v1171
        %1693 = vmatpush.msra.mxu0 %v1167
        %1694 = vmatpush.msra.mxu0 %v1163
        %1695 = vmatpush.msra.mxu0 %v1159
        %1696 = vmatpush.msra.mxu0 %v1155
        %1697 = vmatpush.msra.mxu0 %v1151
        %1698 = vmatpush.msra.mxu0 %v1147
        %1699 = vmatmul.f32.gmra.mxu0 %v1658
        %v1700 = vpop.f32.mrf.mxu0
        %v1701 = vadd.f32 0.0, %v1700
        %1702 = vdwg.mxu0
        %1703 = vmatpush.msra.mxu0 %v1208
        %1704 = vmatpush.msra.mxu0 %v1204
        %1705 = vmatpush.msra.mxu0 %v1200
        %1706 = vmatpush.msra.mxu0 %v1196
        %1707 = vmatpush.msra.mxu0 %v1192
        %1708 = vmatpush.msra.mxu0 %v1188
        %1709 = vmatpush.msra.mxu0 %v1184
        %1710 = vmatpush.msra.mxu0 %v1180
        %1711 = vmatpush.msra.mxu0 %v1176
        %1712 = vmatpush.msra.mxu0 %v1172
        %1713 = vmatpush.msra.mxu0 %v1168
        %1714 = vmatpush.msra.mxu0 %v1164
        %1715 = vmatpush.msra.mxu0 %v1160
        %1716 = vmatpush.msra.mxu0 %v1156
        %1717 = vmatpush.msra.mxu0 %v1152
        %1718 = vmatpush.msra.mxu0 %v1148
        %1719 = vmatmul.f32.gmra.mxu0 %v1658
        %v1720 = vpop.f32.mrf.mxu0
        %v1721 = vadd.f32 0.0, %v1720
        %1722 = vdwg.mxu0
        %1723 = vmatpush.msra.mxu0 %v1209
        %1724 = vmatpush.msra.mxu0 %v1205
        %1725 = vmatpush.msra.mxu0 %v1201
        %1726 = vmatpush.msra.mxu0 %v1197
        %1727 = vmatpush.msra.mxu0 %v1193
        %1728 = vmatpush.msra.mxu0 %v1189
        %1729 = vmatpush.msra.mxu0 %v1185
        %1730 = vmatpush.msra.mxu0 %v1181
        %1731 = vmatpush.msra.mxu0 %v1177
        %1732 = vmatpush.msra.mxu0 %v1173
        %1733 = vmatpush.msra.mxu0 %v1169
        %1734 = vmatpush.msra.mxu0 %v1165
        %1735 = vmatpush.msra.mxu0 %v1161
        %1736 = vmatpush.msra.mxu0 %v1157
        %1737 = vmatpush.msra.mxu0 %v1153
        %1738 = vmatpush.msra.mxu0 %v1149
        %1739 = vmatmul.f32.gmra.mxu0 %v1658
        %v1740 = vpop.f32.mrf.mxu0
        %v1741 = vadd.f32 0.0, %v1740
        %1742 = vdwg.mxu0
        %v1743 = vadd.f32 %v1659, %v1681
        %v1744 = vadd.f32 %v1660, %v1701
        %v1745 = vadd.f32 %v1661, %v1721
        %v1746 = vadd.f32 %v1662, %v1741
        %v1747 = vxor.u32 %v1743, 2147483648
        %v1748 = vxor.u32 %v1744, 2147483648
        %v1749 = vxor.u32 %v1745, 2147483648
        %v1750 = vmul.f32 %v1747, 1.442695
        %v1751 = vpow.pop %v1750
        %v1752 = vmul.f32 %v1748, 1.442695
        %v1753 = vpow.pop %v1752
        %v1754 = vmul.f32 %v1749, 1.442695
        %v1755 = vpow.pop %v1754
        %v1756 = vadd.f32 %v1751, 1.0
        %v1757 = vadd.f32 %v1753, 1.0
        %v1758 = vadd.f32 %v1755, 1.0
        %v1759 = vrcp.pop %v1756
        %v1760 = vmul.f32 %v1756, %v1759
        %v1761 = vsub.f32 1.0, %v1760
        %v1762 = vmul.f32 %v1759, %v1761
        %v1763 = vadd.f32 %v1759, %v1762
        %vm1764 = vweird.f32 %v1756
        %vm1765 = vweird.f32 %v1759
        %vm1766 = vmor %vm1764, %vm1765
        %v1767 = vsel %vm1766, %v1759, %v1763
        %v1768 = vand.u32 2147483647, %v1756
        %vm1769 = vcmp.eq.f32.partialorder %v1768, 8.507059e+37
        %v1770 = vand.u32 %v1756, 2147483648
        %v1771 = vor.u32 1.1754944e-38, %v1770
        %v1772 = vsel %vm1769, %v1771, %v1767
        %v1773 = vmul.f32 1.0, %v1772
        %v1774 = vrcp.pop %v1757
        %v1775 = vmul.f32 %v1757, %v1774
        %v1776 = vsub.f32 1.0, %v1775
        %v1777 = vmul.f32 %v1774, %v1776
        %v1778 = vadd.f32 %v1774, %v1777
        %vm1779 = vweird.f32 %v1757
        %vm1780 = vweird.f32 %v1774
        %vm1781 = vmor %vm1779, %vm1780
        %v1782 = vsel %vm1781, %v1774, %v1778
        %v1783 = vand.u32 2147483647, %v1757
        %vm1784 = vcmp.eq.f32.partialorder %v1783, 8.507059e+37
        %v1785 = vand.u32 %v1757, 2147483648
        %v1786 = vor.u32 1.1754944e-38, %v1785
        %v1787 = vsel %vm1784, %v1786, %v1782
        %v1788 = vmul.f32 1.0, %v1787
        %v1789 = vrcp.pop %v1758
        %v1790 = vmul.f32 %v1758, %v1789
        %v1791 = vsub.f32 1.0, %v1790
        %v1792 = vmul.f32 %v1789, %v1791
        %v1793 = vadd.f32 %v1789, %v1792
        %vm1794 = vweird.f32 %v1758
        %vm1795 = vweird.f32 %v1789
        %vm1796 = vmor %vm1794, %vm1795
        %v1797 = vsel %vm1796, %v1789, %v1793
        %v1798 = vand.u32 2147483647, %v1758
        %vm1799 = vcmp.eq.f32.partialorder %v1798, 8.507059e+37
        %v1800 = vand.u32 %v1758, 2147483648
        %v1801 = vor.u32 1.1754944e-38, %v1800
        %v1802 = vsel %vm1799, %v1801, %v1797
        %v1803 = vmul.f32 1.0, %v1802
        %v1804 = vtanh.pop %v1746
        %v1805 = vmul.f32 %v1788, %v1656
        %v1806 = vmul.f32 %v1773, %v1804
        %v1807 = vadd.f32 %v1805, %v1806
        %v1808 = vtanh.pop %v1807
        %v1809 = vmul.f32 %v1803, %v1808
        %v1810 = vld [vmem:[%s705] sm:$0xff]
        %v1811 = vld [vmem:[%s705 + $0x8] sm:$0xff]
        %v1812 = vld [vmem:[%s705 + $0x10] sm:$0xff]
        %v1813 = vld [vmem:[%s705 + $0x18] sm:$0xff]
        %1814 = vmatpush.msra.mxu0 %v1206
        %1815 = vmatpush.msra.mxu0 %v1202
        %1816 = vmatpush.msra.mxu0 %v1198
        %1817 = vmatpush.msra.mxu0 %v1194
        %1818 = vmatpush.msra.mxu0 %v1190
        %1819 = vmatpush.msra.mxu0 %v1186
        %1820 = vmatpush.msra.mxu0 %v1182
        %1821 = vmatpush.msra.mxu0 %v1178
        %1822 = vmatpush.msra.mxu0 %v1174
        %1823 = vmatpush.msra.mxu0 %v1170
        %1824 = vmatpush.msra.mxu0 %v1166
        %1825 = vmatpush.msra.mxu0 %v1162
        %1826 = vmatpush.msra.mxu0 %v1158
        %1827 = vmatpush.msra.mxu0 %v1154
        %1828 = vmatpush.msra.mxu0 %v1150
        %1829 = vmatpush.msra.mxu0 %v1146
        %1830 = vmatmul.f32.gmra.mxu0 %v1809
        %v1831 = vpop.f32.mrf.mxu0
        %v1832 = vadd.f32 0.0, %v1831
        %1833 = vdwg.mxu0
        %1834 = vmatpush.msra.mxu0 %v1207
        %1835 = vmatpush.msra.mxu0 %v1203
        %1836 = vmatpush.msra.mxu0 %v1199
        %1837 = vmatpush.msra.mxu0 %v1195
        %1838 = vmatpush.msra.mxu0 %v1191
        %1839 = vmatpush.msra.mxu0 %v1187
        %1840 = vmatpush.msra.mxu0 %v1183
        %1841 = vmatpush.msra.mxu0 %v1179
        %1842 = vmatpush.msra.mxu0 %v1175
        %1843 = vmatpush.msra.mxu0 %v1171
        %1844 = vmatpush.msra.mxu0 %v1167
        %1845 = vmatpush.msra.mxu0 %v1163
        %1846 = vmatpush.msra.mxu0 %v1159
        %1847 = vmatpush.msra.mxu0 %v1155
        %1848 = vmatpush.msra.mxu0 %v1151
        %1849 = vmatpush.msra.mxu0 %v1147
        %1850 = vmatmul.f32.gmra.mxu0 %v1809
        %v1851 = vpop.f32.mrf.mxu0
        %v1852 = vadd.f32 0.0, %v1851
        %1853 = vdwg.mxu0
        %1854 = vmatpush.msra.mxu0 %v1208
        %1855 = vmatpush.msra.mxu0 %v1204
        %1856 = vmatpush.msra.mxu0 %v1200
        %1857 = vmatpush.msra.mxu0 %v1196
        %1858 = vmatpush.msra.mxu0 %v1192
        %1859 = vmatpush.msra.mxu0 %v1188
        %1860 = vmatpush.msra.mxu0 %v1184
        %1861 = vmatpush.msra.mxu0 %v1180
        %1862 = vmatpush.msra.mxu0 %v1176
        %1863 = vmatpush.msra.mxu0 %v1172
        %1864 = vmatpush.msra.mxu0 %v1168
        %1865 = vmatpush.msra.mxu0 %v1164
        %1866 = vmatpush.msra.mxu0 %v1160
        %1867 = vmatpush.msra.mxu0 %v1156
        %1868 = vmatpush.msra.mxu0 %v1152
        %1869 = vmatpush.msra.mxu0 %v1148
        %1870 = vmatmul.f32.gmra.mxu0 %v1809
        %v1871 = vpop.f32.mrf.mxu0
        %v1872 = vadd.f32 0.0, %v1871
        %1873 = vdwg.mxu0
        %1874 = vmatpush.msra.mxu0 %v1209
        %1875 = vmatpush.msra.mxu0 %v1205
        %1876 = vmatpush.msra.mxu0 %v1201
        %1877 = vmatpush.msra.mxu0 %v1197
        %1878 = vmatpush.msra.mxu0 %v1193
        %1879 = vmatpush.msra.mxu0 %v1189
        %1880 = vmatpush.msra.mxu0 %v1185
        %1881 = vmatpush.msra.mxu0 %v1181
        %1882 = vmatpush.msra.mxu0 %v1177
        %1883 = vmatpush.msra.mxu0 %v1173
        %1884 = vmatpush.msra.mxu0 %v1169
        %1885 = vmatpush.msra.mxu0 %v1165
        %1886 = vmatpush.msra.mxu0 %v1161
        %1887 = vmatpush.msra.mxu0 %v1157
        %1888 = vmatpush.msra.mxu0 %v1153
        %1889 = vmatpush.msra.mxu0 %v1149
        %1890 = vmatmul.f32.gmra.mxu0 %v1809
        %v1891 = vpop.f32.mrf.mxu0
        %v1892 = vadd.f32 0.0, %v1891
        %1893 = vdwg.mxu0
        %v1894 = vadd.f32 %v1810, %v1832
        %v1895 = vadd.f32 %v1811, %v1852
        %v1896 = vadd.f32 %v1812, %v1872
        %v1897 = vadd.f32 %v1813, %v1892
        %v1898 = vxor.u32 %v1894, 2147483648
        %v1899 = vxor.u32 %v1895, 2147483648
        %v1900 = vxor.u32 %v1896, 2147483648
        %v1901 = vmul.f32 %v1898, 1.442695
        %v1902 = vpow.pop %v1901
        %v1903 = vmul.f32 %v1899, 1.442695
        %v1904 = vpow.pop %v1903
        %v1905 = vmul.f32 %v1900, 1.442695
        %v1906 = vpow.pop %v1905
        %v1907 = vadd.f32 %v1902, 1.0
        %v1908 = vadd.f32 %v1904, 1.0
        %v1909 = vadd.f32 %v1906, 1.0
        %v1910 = vrcp.pop %v1907
        %v1911 = vmul.f32 %v1907, %v1910
        %v1912 = vsub.f32 1.0, %v1911
        %v1913 = vmul.f32 %v1910, %v1912
        %v1914 = vadd.f32 %v1910, %v1913
        %vm1915 = vweird.f32 %v1907
        %vm1916 = vweird.f32 %v1910
        %vm1917 = vmor %vm1915, %vm1916
        %v1918 = vsel %vm1917, %v1910, %v1914
        %v1919 = vand.u32 2147483647, %v1907
        %vm1920 = vcmp.eq.f32.partialorder %v1919, 8.507059e+37
        %v1921 = vand.u32 %v1907, 2147483648
        %v1922 = vor.u32 1.1754944e-38, %v1921
        %v1923 = vsel %vm1920, %v1922, %v1918
        %v1924 = vmul.f32 1.0, %v1923
        %v1925 = vrcp.pop %v1908
        %v1926 = vmul.f32 %v1908, %v1925
        %v1927 = vsub.f32 1.0, %v1926
        %v1928 = vmul.f32 %v1925, %v1927
        %v1929 = vadd.f32 %v1925, %v1928
        %vm1930 = vweird.f32 %v1908
        %vm1931 = vweird.f32 %v1925
        %vm1932 = vmor %vm1930, %vm1931
        %v1933 = vsel %vm1932, %v1925, %v1929
        %v1934 = vand.u32 2147483647, %v1908
        %vm1935 = vcmp.eq.f32.partialorder %v1934, 8.507059e+37
        %v1936 = vand.u32 %v1908, 2147483648
        %v1937 = vor.u32 1.1754944e-38, %v1936
        %v1938 = vsel %vm1935, %v1937, %v1933
        %v1939 = vmul.f32 1.0, %v1938
        %v1940 = vrcp.pop %v1909
        %v1941 = vmul.f32 %v1909, %v1940
        %v1942 = vsub.f32 1.0, %v1941
        %v1943 = vmul.f32 %v1940, %v1942
        %v1944 = vadd.f32 %v1940, %v1943
        %vm1945 = vweird.f32 %v1909
        %vm1946 = vweird.f32 %v1940
        %vm1947 = vmor %vm1945, %vm1946
        %v1948 = vsel %vm1947, %v1940, %v1944
        %v1949 = vand.u32 2147483647, %v1909
        %vm1950 = vcmp.eq.f32.partialorder %v1949, 8.507059e+37
        %v1951 = vand.u32 %v1909, 2147483648
        %v1952 = vor.u32 1.1754944e-38, %v1951
        %v1953 = vsel %vm1950, %v1952, %v1948
        %v1954 = vmul.f32 1.0, %v1953
        %v1955 = vtanh.pop %v1897
        %v1956 = vmul.f32 %v1939, %v1807
        %v1957 = vmul.f32 %v1924, %v1955
        %v1958 = vadd.f32 %v1956, %v1957
        %v1959 = vtanh.pop %v1958
        %v1960 = vmul.f32 %v1954, %v1959
        %v1961 = vld [vmem:[%s817] sm:$0xff]
        %v1962 = vld [vmem:[%s817 + $0x8] sm:$0xff]
        %v1963 = vld [vmem:[%s817 + $0x10] sm:$0xff]
        %v1964 = vld [vmem:[%s817 + $0x18] sm:$0xff]
        %1965 = vmatpush.msra.mxu0 %v1206
        %1966 = vmatpush.msra.mxu0 %v1202
        %1967 = vmatpush.msra.mxu0 %v1198
        %1968 = vmatpush.msra.mxu0 %v1194
        %1969 = vmatpush.msra.mxu0 %v1190
        %1970 = vmatpush.msra.mxu0 %v1186
        %1971 = vmatpush.msra.mxu0 %v1182
        %1972 = vmatpush.msra.mxu0 %v1178
        %1973 = vmatpush.msra.mxu0 %v1174
        %1974 = vmatpush.msra.mxu0 %v1170
        %1975 = vmatpush.msra.mxu0 %v1166
        %1976 = vmatpush.msra.mxu0 %v1162
        %1977 = vmatpush.msra.mxu0 %v1158
        %1978 = vmatpush.msra.mxu0 %v1154
        %1979 = vmatpush.msra.mxu0 %v1150
        %1980 = vmatpush.msra.mxu0 %v1146
        %1981 = vmatmul.f32.gmra.mxu0 %v1960
        %v1982 = vpop.f32.mrf.mxu0
        %v1983 = vadd.f32 0.0, %v1982
        %1984 = vdwg.mxu0
        %1985 = vmatpush.msra.mxu0 %v1207
        %1986 = vmatpush.msra.mxu0 %v1203
        %1987 = vmatpush.msra.mxu0 %v1199
        %1988 = vmatpush.msra.mxu0 %v1195
        %1989 = vmatpush.msra.mxu0 %v1191
        %1990 = vmatpush.msra.mxu0 %v1187
        %1991 = vmatpush.msra.mxu0 %v1183
        %1992 = vmatpush.msra.mxu0 %v1179
        %1993 = vmatpush.msra.mxu0 %v1175
        %1994 = vmatpush.msra.mxu0 %v1171
        %1995 = vmatpush.msra.mxu0 %v1167
        %1996 = vmatpush.msra.mxu0 %v1163
        %1997 = vmatpush.msra.mxu0 %v1159
        %1998 = vmatpush.msra.mxu0 %v1155
        %1999 = vmatpush.msra.mxu0 %v1151
        %2000 = vmatpush.msra.mxu0 %v1147
        %2001 = vmatmul.f32.gmra.mxu0 %v1960
        %v2002 = vpop.f32.mrf.mxu0
        %v2003 = vadd.f32 0.0, %v2002
        %2004 = vdwg.mxu0
        %2005 = vmatpush.msra.mxu0 %v1208
        %2006 = vmatpush.msra.mxu0 %v1204
        %2007 = vmatpush.msra.mxu0 %v1200
        %2008 = vmatpush.msra.mxu0 %v1196
        %2009 = vmatpush.msra.mxu0 %v1192
        %2010 = vmatpush.msra.mxu0 %v1188
        %2011 = vmatpush.msra.mxu0 %v1184
        %2012 = vmatpush.msra.mxu0 %v1180
        %2013 = vmatpush.msra.mxu0 %v1176
        %2014 = vmatpush.msra.mxu0 %v1172
        %2015 = vmatpush.msra.mxu0 %v1168
        %2016 = vmatpush.msra.mxu0 %v1164
        %2017 = vmatpush.msra.mxu0 %v1160
        %2018 = vmatpush.msra.mxu0 %v1156
        %2019 = vmatpush.msra.mxu0 %v1152
        %2020 = vmatpush.msra.mxu0 %v1148
        %2021 = vmatmul.f32.gmra.mxu0 %v1960
        %v2022 = vpop.f32.mrf.mxu0
        %v2023 = vadd.f32 0.0, %v2022
        %2024 = vdwg.mxu0
        %2025 = vmatpush.msra.mxu0 %v1209
        %2026 = vmatpush.msra.mxu0 %v1205
        %2027 = vmatpush.msra.mxu0 %v1201
        %2028 = vmatpush.msra.mxu0 %v1197
        %2029 = vmatpush.msra.mxu0 %v1193
        %2030 = vmatpush.msra.mxu0 %v1189
        %2031 = vmatpush.msra.mxu0 %v1185
        %2032 = vmatpush.msra.mxu0 %v1181
        %2033 = vmatpush.msra.mxu0 %v1177
        %2034 = vmatpush.msra.mxu0 %v1173
        %2035 = vmatpush.msra.mxu0 %v1169
        %2036 = vmatpush.msra.mxu0 %v1165
        %2037 = vmatpush.msra.mxu0 %v1161
        %2038 = vmatpush.msra.mxu0 %v1157
        %2039 = vmatpush.msra.mxu0 %v1153
        %2040 = vmatpush.msra.mxu0 %v1149
        %2041 = vmatmul.f32.gmra.mxu0 %v1960
        %v2042 = vpop.f32.mrf.mxu0
        %v2043 = vadd.f32 0.0, %v2042
        %2044 = vdwg.mxu0
        %v2045 = vadd.f32 %v1961, %v1983
        %v2046 = vadd.f32 %v1962, %v2003
        %v2047 = vadd.f32 %v1963, %v2023
        %v2048 = vadd.f32 %v1964, %v2043
        %v2049 = vxor.u32 %v2045, 2147483648
        %v2050 = vxor.u32 %v2046, 2147483648
        %v2051 = vxor.u32 %v2047, 2147483648
        %v2052 = vmul.f32 %v2049, 1.442695
        %v2053 = vpow.pop %v2052
        %v2054 = vmul.f32 %v2050, 1.442695
        %v2055 = vpow.pop %v2054
        %v2056 = vmul.f32 %v2051, 1.442695
        %v2057 = vpow.pop %v2056
        %v2058 = vadd.f32 %v2053, 1.0
        %v2059 = vadd.f32 %v2055, 1.0
        %v2060 = vadd.f32 %v2057, 1.0
        %v2061 = vrcp.pop %v2058
        %v2062 = vmul.f32 %v2058, %v2061
        %v2063 = vsub.f32 1.0, %v2062
        %v2064 = vmul.f32 %v2061, %v2063
        %v2065 = vadd.f32 %v2061, %v2064
        %vm2066 = vweird.f32 %v2058
        %vm2067 = vweird.f32 %v2061
        %vm2068 = vmor %vm2066, %vm2067
        %v2069 = vsel %vm2068, %v2061, %v2065
        %v2070 = vand.u32 2147483647, %v2058
        %vm2071 = vcmp.eq.f32.partialorder %v2070, 8.507059e+37
        %v2072 = vand.u32 %v2058, 2147483648
        %v2073 = vor.u32 1.1754944e-38, %v2072
        %v2074 = vsel %vm2071, %v2073, %v2069
        %v2075 = vmul.f32 1.0, %v2074
        %v2076 = vrcp.pop %v2059
        %v2077 = vmul.f32 %v2059, %v2076
        %v2078 = vsub.f32 1.0, %v2077
        %v2079 = vmul.f32 %v2076, %v2078
        %v2080 = vadd.f32 %v2076, %v2079
        %vm2081 = vweird.f32 %v2059
        %vm2082 = vweird.f32 %v2076
        %vm2083 = vmor %vm2081, %vm2082
        %v2084 = vsel %vm2083, %v2076, %v2080
        %v2085 = vand.u32 2147483647, %v2059
        %vm2086 = vcmp.eq.f32.partialorder %v2085, 8.507059e+37
        %v2087 = vand.u32 %v2059, 2147483648
        %v2088 = vor.u32 1.1754944e-38, %v2087
        %v2089 = vsel %vm2086, %v2088, %v2084
        %v2090 = vmul.f32 1.0, %v2089
        %v2091 = vrcp.pop %v2060
        %v2092 = vmul.f32 %v2060, %v2091
        %v2093 = vsub.f32 1.0, %v2092
        %v2094 = vmul.f32 %v2091, %v2093
        %v2095 = vadd.f32 %v2091, %v2094
        %vm2096 = vweird.f32 %v2060
        %vm2097 = vweird.f32 %v2091
        %vm2098 = vmor %vm2096, %vm2097
        %v2099 = vsel %vm2098, %v2091, %v2095
        %v2100 = vand.u32 2147483647, %v2060
        %vm2101 = vcmp.eq.f32.partialorder %v2100, 8.507059e+37
        %v2102 = vand.u32 %v2060, 2147483648
        %v2103 = vor.u32 1.1754944e-38, %v2102
        %v2104 = vsel %vm2101, %v2103, %v2099
        %v2105 = vmul.f32 1.0, %v2104
        %v2106 = vtanh.pop %v2048
        %v2107 = vmul.f32 %v2090, %v1958
        %v2108 = vmul.f32 %v2075, %v2106
        %v2109 = vadd.f32 %v2107, %v2108
        %v2110 = vtanh.pop %v2109
        %v2111 = vmul.f32 %v2105, %v2110
        %v2112 = vld [vmem:[%s929] sm:$0xff]
        %v2113 = vld [vmem:[%s929 + $0x8] sm:$0xff]
        %v2114 = vld [vmem:[%s929 + $0x10] sm:$0xff]
        %v2115 = vld [vmem:[%s929 + $0x18] sm:$0xff]
        %2116 = vmatpush.msra.mxu0 %v1206
        %2117 = vmatpush.msra.mxu0 %v1202
        %2118 = vmatpush.msra.mxu0 %v1198
        %2119 = vmatpush.msra.mxu0 %v1194
        %2120 = vmatpush.msra.mxu0 %v1190
        %2121 = vmatpush.msra.mxu0 %v1186
        %2122 = vmatpush.msra.mxu0 %v1182
        %2123 = vmatpush.msra.mxu0 %v1178
        %2124 = vmatpush.msra.mxu0 %v1174
        %2125 = vmatpush.msra.mxu0 %v1170
        %2126 = vmatpush.msra.mxu0 %v1166
        %2127 = vmatpush.msra.mxu0 %v1162
        %2128 = vmatpush.msra.mxu0 %v1158
        %2129 = vmatpush.msra.mxu0 %v1154
        %2130 = vmatpush.msra.mxu0 %v1150
        %2131 = vmatpush.msra.mxu0 %v1146
        %2132 = vmatmul.f32.gmra.mxu0 %v2111
        %v2133 = vpop.f32.mrf.mxu0
        %v2134 = vadd.f32 0.0, %v2133
        %2135 = vdwg.mxu0
        %2136 = vmatpush.msra.mxu0 %v1207
        %2137 = vmatpush.msra.mxu0 %v1203
        %2138 = vmatpush.msra.mxu0 %v1199
        %2139 = vmatpush.msra.mxu0 %v1195
        %2140 = vmatpush.msra.mxu0 %v1191
        %2141 = vmatpush.msra.mxu0 %v1187
        %2142 = vmatpush.msra.mxu0 %v1183
        %2143 = vmatpush.msra.mxu0 %v1179
        %2144 = vmatpush.msra.mxu0 %v1175
        %2145 = vmatpush.msra.mxu0 %v1171
        %2146 = vmatpush.msra.mxu0 %v1167
        %2147 = vmatpush.msra.mxu0 %v1163
        %2148 = vmatpush.msra.mxu0 %v1159
        %2149 = vmatpush.msra.mxu0 %v1155
        %2150 = vmatpush.msra.mxu0 %v1151
        %2151 = vmatpush.msra.mxu0 %v1147
        %2152 = vmatmul.f32.gmra.mxu0 %v2111
        %v2153 = vpop.f32.mrf.mxu0
        %v2154 = vadd.f32 0.0, %v2153
        %2155 = vdwg.mxu0
        %2156 = vmatpush.msra.mxu0 %v1208
        %2157 = vmatpush.msra.mxu0 %v1204
        %2158 = vmatpush.msra.mxu0 %v1200
        %2159 = vmatpush.msra.mxu0 %v1196
        %2160 = vmatpush.msra.mxu0 %v1192
        %2161 = vmatpush.msra.mxu0 %v1188
        %2162 = vmatpush.msra.mxu0 %v1184
        %2163 = vmatpush.msra.mxu0 %v1180
        %2164 = vmatpush.msra.mxu0 %v1176
        %2165 = vmatpush.msra.mxu0 %v1172
        %2166 = vmatpush.msra.mxu0 %v1168
        %2167 = vmatpush.msra.mxu0 %v1164
        %2168 = vmatpush.msra.mxu0 %v1160
        %2169 = vmatpush.msra.mxu0 %v1156
        %2170 = vmatpush.msra.mxu0 %v1152
        %2171 = vmatpush.msra.mxu0 %v1148
        %2172 = vmatmul.f32.gmra.mxu0 %v2111
        %v2173 = vpop.f32.mrf.mxu0
        %v2174 = vadd.f32 0.0, %v2173
        %2175 = vdwg.mxu0
        %2176 = vmatpush.msra.mxu0 %v1209
        %2177 = vmatpush.msra.mxu0 %v1205
        %2178 = vmatpush.msra.mxu0 %v1201
        %2179 = vmatpush.msra.mxu0 %v1197
        %2180 = vmatpush.msra.mxu0 %v1193
        %2181 = vmatpush.msra.mxu0 %v1189
        %2182 = vmatpush.msra.mxu0 %v1185
        %2183 = vmatpush.msra.mxu0 %v1181
        %2184 = vmatpush.msra.mxu0 %v1177
        %2185 = vmatpush.msra.mxu0 %v1173
        %2186 = vmatpush.msra.mxu0 %v1169
        %2187 = vmatpush.msra.mxu0 %v1165
        %2188 = vmatpush.msra.mxu0 %v1161
        %2189 = vmatpush.msra.mxu0 %v1157
        %2190 = vmatpush.msra.mxu0 %v1153
        %2191 = vmatpush.msra.mxu0 %v1149
        %2192 = vmatmul.f32.gmra.mxu0 %v2111
        %v2193 = vpop.f32.mrf.mxu0
        %v2194 = vadd.f32 0.0, %v2193
        %2195 = vdwg.mxu0
        %v2196 = vadd.f32 %v2112, %v2134
        %v2197 = vadd.f32 %v2113, %v2154
        %v2198 = vadd.f32 %v2114, %v2174
        %v2199 = vadd.f32 %v2115, %v2194
        %v2200 = vxor.u32 %v2196, 2147483648
        %v2201 = vxor.u32 %v2197, 2147483648
        %v2202 = vxor.u32 %v2198, 2147483648
        %v2203 = vmul.f32 %v2200, 1.442695
        %v2204 = vpow.pop %v2203
        %v2205 = vmul.f32 %v2201, 1.442695
        %v2206 = vpow.pop %v2205
        %v2207 = vmul.f32 %v2202, 1.442695
        %v2208 = vpow.pop %v2207
        %v2209 = vadd.f32 %v2204, 1.0
        %v2210 = vadd.f32 %v2206, 1.0
        %v2211 = vadd.f32 %v2208, 1.0
        %v2212 = vrcp.pop %v2209
        %v2213 = vmul.f32 %v2209, %v2212
        %v2214 = vsub.f32 1.0, %v2213
        %v2215 = vmul.f32 %v2212, %v2214
        %v2216 = vadd.f32 %v2212, %v2215
        %vm2217 = vweird.f32 %v2209
        %vm2218 = vweird.f32 %v2212
        %vm2219 = vmor %vm2217, %vm2218
        %v2220 = vsel %vm2219, %v2212, %v2216
        %v2221 = vand.u32 2147483647, %v2209
        %vm2222 = vcmp.eq.f32.partialorder %v2221, 8.507059e+37
        %v2223 = vand.u32 %v2209, 2147483648
        %v2224 = vor.u32 1.1754944e-38, %v2223
        %v2225 = vsel %vm2222, %v2224, %v2220
        %v2226 = vmul.f32 1.0, %v2225
        %v2227 = vrcp.pop %v2210
        %v2228 = vmul.f32 %v2210, %v2227
        %v2229 = vsub.f32 1.0, %v2228
        %v2230 = vmul.f32 %v2227, %v2229
        %v2231 = vadd.f32 %v2227, %v2230
        %vm2232 = vweird.f32 %v2210
        %vm2233 = vweird.f32 %v2227
        %vm2234 = vmor %vm2232, %vm2233
        %v2235 = vsel %vm2234, %v2227, %v2231
        %v2236 = vand.u32 2147483647, %v2210
        %vm2237 = vcmp.eq.f32.partialorder %v2236, 8.507059e+37
        %v2238 = vand.u32 %v2210, 2147483648
        %v2239 = vor.u32 1.1754944e-38, %v2238
        %v2240 = vsel %vm2237, %v2239, %v2235
        %v2241 = vmul.f32 1.0, %v2240
        %v2242 = vrcp.pop %v2211
        %v2243 = vmul.f32 %v2211, %v2242
        %v2244 = vsub.f32 1.0, %v2243
        %v2245 = vmul.f32 %v2242, %v2244
        %v2246 = vadd.f32 %v2242, %v2245
        %vm2247 = vweird.f32 %v2211
        %vm2248 = vweird.f32 %v2242
        %vm2249 = vmor %vm2247, %vm2248
        %v2250 = vsel %vm2249, %v2242, %v2246
        %v2251 = vand.u32 2147483647, %v2211
        %vm2252 = vcmp.eq.f32.partialorder %v2251, 8.507059e+37
        %v2253 = vand.u32 %v2211, 2147483648
        %v2254 = vor.u32 1.1754944e-38, %v2253
        %v2255 = vsel %vm2252, %v2254, %v2250
        %v2256 = vmul.f32 1.0, %v2255
        %v2257 = vtanh.pop %v2199
        %v2258 = vmul.f32 %v2241, %v2109
        %v2259 = vmul.f32 %v2226, %v2257
        %v2260 = vadd.f32 %v2258, %v2259
        %v2261 = vtanh.pop %v2260
        %v2262 = vmul.f32 %v2256, %v2261
        %v2263 = vld [vmem:[%s1041] sm:$0xff]
        %v2264 = vld [vmem:[%s1041 + $0x8] sm:$0xff]
        %v2265 = vld [vmem:[%s1041 + $0x10] sm:$0xff]
        %v2266 = vld [vmem:[%s1041 + $0x18] sm:$0xff]
        %2267 = vmatpush.msra.mxu0 %v1206
        %2268 = vmatpush.msra.mxu0 %v1202
        %2269 = vmatpush.msra.mxu0 %v1198
        %2270 = vmatpush.msra.mxu0 %v1194
        %2271 = vmatpush.msra.mxu0 %v1190
        %2272 = vmatpush.msra.mxu0 %v1186
        %2273 = vmatpush.msra.mxu0 %v1182
        %2274 = vmatpush.msra.mxu0 %v1178
        %2275 = vmatpush.msra.mxu0 %v1174
        %2276 = vmatpush.msra.mxu0 %v1170
        %2277 = vmatpush.msra.mxu0 %v1166
        %2278 = vmatpush.msra.mxu0 %v1162
        %2279 = vmatpush.msra.mxu0 %v1158
        %2280 = vmatpush.msra.mxu0 %v1154
        %2281 = vmatpush.msra.mxu0 %v1150
        %2282 = vmatpush.msra.mxu0 %v1146
        %2283 = vmatmul.f32.gmra.mxu0 %v2262
        %v2284 = vpop.f32.mrf.mxu0
        %v2285 = vadd.f32 0.0, %v2284
        %2286 = vdwg.mxu0
        %2287 = vmatpush.msra.mxu0 %v1207
        %2288 = vmatpush.msra.mxu0 %v1203
        %2289 = vmatpush.msra.mxu0 %v1199
        %2290 = vmatpush.msra.mxu0 %v1195
        %2291 = vmatpush.msra.mxu0 %v1191
        %2292 = vmatpush.msra.mxu0 %v1187
        %2293 = vmatpush.msra.mxu0 %v1183
        %2294 = vmatpush.msra.mxu0 %v1179
        %2295 = vmatpush.msra.mxu0 %v1175
        %2296 = vmatpush.msra.mxu0 %v1171
        %2297 = vmatpush.msra.mxu0 %v1167
        %2298 = vmatpush.msra.mxu0 %v1163
        %2299 = vmatpush.msra.mxu0 %v1159
        %2300 = vmatpush.msra.mxu0 %v1155
        %2301 = vmatpush.msra.mxu0 %v1151
        %2302 = vmatpush.msra.mxu0 %v1147
        %2303 = vmatmul.f32.gmra.mxu0 %v2262
        %v2304 = vpop.f32.mrf.mxu0
        %v2305 = vadd.f32 0.0, %v2304
        %2306 = vdwg.mxu0
        %2307 = vmatpush.msra.mxu0 %v1208
        %2308 = vmatpush.msra.mxu0 %v1204
        %2309 = vmatpush.msra.mxu0 %v1200
        %2310 = vmatpush.msra.mxu0 %v1196
        %2311 = vmatpush.msra.mxu0 %v1192
        %2312 = vmatpush.msra.mxu0 %v1188
        %2313 = vmatpush.msra.mxu0 %v1184
        %2314 = vmatpush.msra.mxu0 %v1180
        %2315 = vmatpush.msra.mxu0 %v1176
        %2316 = vmatpush.msra.mxu0 %v1172
        %2317 = vmatpush.msra.mxu0 %v1168
        %2318 = vmatpush.msra.mxu0 %v1164
        %2319 = vmatpush.msra.mxu0 %v1160
        %2320 = vmatpush.msra.mxu0 %v1156
        %2321 = vmatpush.msra.mxu0 %v1152
        %2322 = vmatpush.msra.mxu0 %v1148
        %2323 = vmatmul.f32.gmra.mxu0 %v2262
        %v2324 = vpop.f32.mrf.mxu0
        %v2325 = vadd.f32 0.0, %v2324
        %2326 = vdwg.mxu0
        %2327 = vmatpush.msra.mxu0 %v1209
        %2328 = vmatpush.msra.mxu0 %v1205
        %2329 = vmatpush.msra.mxu0 %v1201
        %2330 = vmatpush.msra.mxu0 %v1197
        %2331 = vmatpush.msra.mxu0 %v1193
        %2332 = vmatpush.msra.mxu0 %v1189
        %2333 = vmatpush.msra.mxu0 %v1185
        %2334 = vmatpush.msra.mxu0 %v1181
        %2335 = vmatpush.msra.mxu0 %v1177
        %2336 = vmatpush.msra.mxu0 %v1173
        %2337 = vmatpush.msra.mxu0 %v1169
        %2338 = vmatpush.msra.mxu0 %v1165
        %2339 = vmatpush.msra.mxu0 %v1161
        %2340 = vmatpush.msra.mxu0 %v1157
        %2341 = vmatpush.msra.mxu0 %v1153
        %2342 = vmatpush.msra.mxu0 %v1149
        %2343 = vmatmul.f32.gmra.mxu0 %v2262
        %v2344 = vpop.f32.mrf.mxu0
        %v2345 = vadd.f32 0.0, %v2344
        %2346 = vdwg.mxu0
        %v2347 = vadd.f32 %v2263, %v2285
        %v2348 = vadd.f32 %v2264, %v2305
        %v2349 = vadd.f32 %v2265, %v2325
        %v2350 = vadd.f32 %v2266, %v2345
        %v2351 = vxor.u32 %v2347, 2147483648
        %v2352 = vxor.u32 %v2348, 2147483648
        %v2353 = vxor.u32 %v2349, 2147483648
        %v2354 = vmul.f32 %v2351, 1.442695
        %v2355 = vpow.pop %v2354
        %v2356 = vmul.f32 %v2352, 1.442695
        %v2357 = vpow.pop %v2356
        %v2358 = vmul.f32 %v2353, 1.442695
        %v2359 = vpow.pop %v2358
        %v2360 = vadd.f32 %v2355, 1.0
        %v2361 = vadd.f32 %v2357, 1.0
        %v2362 = vadd.f32 %v2359, 1.0
        %v2363 = vrcp.pop %v2360
        %v2364 = vmul.f32 %v2360, %v2363
        %v2365 = vsub.f32 1.0, %v2364
        %v2366 = vmul.f32 %v2363, %v2365
        %v2367 = vadd.f32 %v2363, %v2366
        %vm2368 = vweird.f32 %v2360
        %vm2369 = vweird.f32 %v2363
        %vm2370 = vmor %vm2368, %vm2369
        %v2371 = vsel %vm2370, %v2363, %v2367
        %v2372 = vand.u32 2147483647, %v2360
        %vm2373 = vcmp.eq.f32.partialorder %v2372, 8.507059e+37
        %v2374 = vand.u32 %v2360, 2147483648
        %v2375 = vor.u32 1.1754944e-38, %v2374
        %v2376 = vsel %vm2373, %v2375, %v2371
        %v2377 = vmul.f32 1.0, %v2376
        %v2378 = vrcp.pop %v2361
        %v2379 = vmul.f32 %v2361, %v2378
        %v2380 = vsub.f32 1.0, %v2379
        %v2381 = vmul.f32 %v2378, %v2380
        %v2382 = vadd.f32 %v2378, %v2381
        %vm2383 = vweird.f32 %v2361
        %vm2384 = vweird.f32 %v2378
        %vm2385 = vmor %vm2383, %vm2384
        %v2386 = vsel %vm2385, %v2378, %v2382
        %v2387 = vand.u32 2147483647, %v2361
        %vm2388 = vcmp.eq.f32.partialorder %v2387, 8.507059e+37
        %v2389 = vand.u32 %v2361, 2147483648
        %v2390 = vor.u32 1.1754944e-38, %v2389
        %v2391 = vsel %vm2388, %v2390, %v2386
        %v2392 = vmul.f32 1.0, %v2391
        %v2393 = vrcp.pop %v2362
        %v2394 = vmul.f32 %v2362, %v2393
        %v2395 = vsub.f32 1.0, %v2394
        %v2396 = vmul.f32 %v2393, %v2395
        %v2397 = vadd.f32 %v2393, %v2396
        %vm2398 = vweird.f32 %v2362
        %vm2399 = vweird.f32 %v2393
        %vm2400 = vmor %vm2398, %vm2399
        %v2401 = vsel %vm2400, %v2393, %v2397
        %v2402 = vand.u32 2147483647, %v2362
        %vm2403 = vcmp.eq.f32.partialorder %v2402, 8.507059e+37
        %v2404 = vand.u32 %v2362, 2147483648
        %v2405 = vor.u32 1.1754944e-38, %v2404
        %v2406 = vsel %vm2403, %v2405, %v2401
        %v2407 = vmul.f32 1.0, %v2406
        %v2408 = vtanh.pop %v2350
        %v2409 = vmul.f32 %v2392, %v2260
        %v2410 = vmul.f32 %v2377, %v2408
        %v2411 = vadd.f32 %v2409, %v2410
        %v2412 = vtanh.pop %v2411
        %v2413 = vmul.f32 %v2407, %v2412
        %v2414 = vld [vmem:[#allocation10] sm:$0xff]
        %v2415 = vld [vmem:[#allocation10 + $0x8] sm:$0xff]
        %v2416 = vld [vmem:[#allocation10 + $0x10] sm:$0xff]
        %v2417 = vld [vmem:[#allocation10 + $0x18] sm:$0xff]
        %v2418 = vld [vmem:[#allocation10 + $0x20] sm:$0xff]
        %v2419 = vld [vmem:[#allocation10 + $0x28] sm:$0xff]
        %v2420 = vld [vmem:[#allocation10 + $0x30] sm:$0xff]
        %v2421 = vld [vmem:[#allocation10 + $0x38] sm:$0xff]
        %v2422 = vld [vmem:[#allocation10 + $0x40] sm:$0xff]
        %v2423 = vld [vmem:[#allocation10 + $0x48] sm:$0xff]
        %v2424 = vld [vmem:[#allocation10 + $0x50] sm:$0xff]
        %v2425 = vld [vmem:[#allocation10 + $0x58] sm:$0xff]
        %v2426 = vld [vmem:[#allocation10 + $0x60] sm:$0xff]
        %v2427 = vld [vmem:[#allocation10 + $0x68] sm:$0xff]
        %v2428 = vld [vmem:[#allocation10 + $0x70] sm:$0xff]
        %v2429 = vld [vmem:[#allocation10 + $0x78] sm:$0xff]
        %v2430 = vld [vmem:[%s4] sm:$0x1]
        %v2432 = vperm.slane %v2430, 0
        %2434 = vmatpush.msra.mxu0 %v2429
        %2435 = vmatpush.msra.mxu0 %v2428
        %2436 = vmatpush.msra.mxu0 %v2427
        %2437 = vmatpush.msra.mxu0 %v2426
        %2438 = vmatpush.msra.mxu0 %v2425
        %2439 = vmatpush.msra.mxu0 %v2424
        %2440 = vmatpush.msra.mxu0 %v2423
        %2441 = vmatpush.msra.mxu0 %v2422
        %2442 = vmatpush.msra.mxu0 %v2421
        %2443 = vmatpush.msra.mxu0 %v2420
        %2444 = vmatpush.msra.mxu0 %v2419
        %2445 = vmatpush.msra.mxu0 %v2418
        %2446 = vmatpush.msra.mxu0 %v2417
        %2447 = vmatpush.msra.mxu0 %v2416
        %2448 = vmatpush.msra.mxu0 %v2415
        %2449 = vmatpush.msra.mxu0 %v2414
        %2450 = vmatmul.f32.gmra.mxu0 %v2413
        %v2451 = vpop.f32.mrf.mxu0
        %v2452 = vadd.f32 %v2432, %v2451
        %2453 = vdwg.mxu0
        %v2454 = vxor.u32 %v2452, 2147483648
        %v2455 = vmul.f32 %v2454, 1.442695
        %v2456 = vpow.pop %v2455
        %v2457 = vadd.f32 %v2456, 1.0
        %v2458 = vrcp.pop %v2457
        %v2459 = vmul.f32 %v2457, %v2458
        %v2460 = vsub.f32 1.0, %v2459
        %v2461 = vmul.f32 %v2458, %v2460
        %v2462 = vadd.f32 %v2458, %v2461
        %vm2463 = vweird.f32 %v2457
        %vm2464 = vweird.f32 %v2458
        %vm2465 = vmor %vm2463, %vm2464
        %v2466 = vsel %vm2465, %v2458, %v2462
        %v2467 = vand.u32 2147483647, %v2457
        %vm2468 = vcmp.eq.f32.partialorder %v2467, 8.507059e+37
        %v2469 = vand.u32 %v2457, 2147483648
        %v2470 = vor.u32 1.1754944e-38, %v2469
        %v2471 = vsel %vm2468, %v2470, %v2466
        %v2472 = vmul.f32 1.0, %v2471
        %2473 = vst [vmem:[%s234] sm:$0xff] %v2472
        %s2474 = sand.u32 %s121, 1
        %s2475 = scalar_lea.sflag [#allocation7], %s2474
        %s2476 = sand.u32 %s121, 1
        %s2477 = smul.addr %s2476, 8
        %s2478 = scalar_lea.vmem [#allocation11], %s2477
        // Predicated region
        $region49: #{tpu_custom_call.1} parent=35 // pred_check
          %p2479 = pneg %p131
        $region50: #{tpu_custom_call.1} parent=35 // pred_check_branch
          %2481 = sbr.rel (%p2479) target = $region52
        $region51: #{tpu_custom_call.1} parent=35 // pred_region
          %2483 = vsyncadd %s2475, 0
          %s2484 = smul.addr %s29, 8
          %s2485 = scalar_lea.hbm %s5, %s2484
          %s2487 = sshll.u32 %s2478, 4
          %s2488 = int_to_ptr.vmem [resolvable:$true] %s2487
          %s2489 = sshll.u32 %s2485, 4
          %s2490 = int_to_ptr.hbm [resolvable:$true] %s2489
          %2492 = dma.vmem_to_hbm [thread:$0]  %s2488, 128, %s2490, %s2475
        $region52: #{tpu_custom_call.1} parent=35 // pred_fallthru
          _
      $region36: #{tpu_custom_call.1} parent=5 // pred_fallthru
        _
      %p2493 = scmp.le.s32.totalorder 2, %s24
      // Predicated region
      $region53: #{tpu_custom_call.1} parent=5 // pred_check
        %p2494 = pneg %p2493
      $region54: #{tpu_custom_call.1} parent=5 // pred_check_branch
        %2496 = sbr.rel (%p2494) target = $region56
      $region55: #{tpu_custom_call.1} parent=5 // pred_region
        %s2497 = ssub.s32 %s24, 2
        // Predicated region
        $region57: #{tpu_custom_call.1} parent=55 // pred_check
          %p2498 = pneg %p137
        $region58: #{tpu_custom_call.1} parent=55 // pred_check_branch
          %2500 = sbr.rel (%p2498) target = $region60
        $region59: #{tpu_custom_call.1} parent=55 // pred_region
          %s2501 = sand.u32 %s122, 1
          %s2502 = scalar_lea.sflag [#allocation7], %s2501
          %s2503 = sand.u32 %s122, 1
          %s2504 = smul.addr %s2503, 8
          %s2505 = scalar_lea.vmem [#allocation11], %s2504
          %2507 = dma.done %s2502, 128
        $region60: #{tpu_custom_call.1} parent=55 // pred_fallthru
          _
      $region56: #{tpu_custom_call.1} parent=5 // pred_fallthru
        _
    $region6: #{tpu_custom_call.1} parent=1 // loop_footer
      %s28 = sadd.s32 1, %s24
    $region7: #{tpu_custom_call.1} parent=1 // loop_footer_branch
      %23 = sbr.rel target = $region3
    $region8: #{tpu_custom_call.1} parent=1 // loop_exit
      _
    %2508 = vsyncpa [#allocation6], 1
    %s2509 = scalar_lea.sflag [#allocation6], 1
    %2510 = vsyncpa %s2509, 1
    %2511 = vsyncpa [#allocation9], 1
    %2512 = vsyncpa [#allocation7], 1
    %s2513 = scalar_lea.sflag [#allocation7], 1
    %2514 = vsyncpa %s2513, 1

</llo_original>
